<compile_context>
chip_gen: v5e
topology: v5e:2x2
jax: 0.10.0
libtpu: 0.0.40
codegen_flags: <defaults>
</compile_context>

<pallas_src>
import numpy as np
import jax
import jax.numpy as jnp
from jax.experimental import pallas as pl
from jax.experimental.pallas import tpu as pltpu

EPS = 1e-5      # InstanceNorm2d default eps
SLOPE = 0.01    # LeakyReLU default negative_slope


def _round_up(x, m):
    return -(-x // m) * m


def _build_convt_scatter(H1, W1, H2, W2, py0, px0):
    """0/1 matrix scattering ConvT(k=2,s=2) tap outputs into the padded H2*W2 plane.

    Row t*HW1 + (h*W1+w) -> column oh*W2+ow with oh = 2h+di+py0, ow = 2w+dj+px0,
    t = di*2+dj.  `valid` marks positions covered by the (padded/cropped) ConvT
    output, i.e. where the ConvT bias applies (F.pad border stays exactly zero).
    """
    HW1, HW2 = H1 * W1, H2 * W2
    P = np.zeros((4, HW1, HW2), np.float32)
    valid = np.zeros((HW2,), np.float32)
    for di in range(2):
        for dj in range(2):
            t = di * 2 + dj
            for h in range(H1):
                oh = 2 * h + di + py0
                if not 0 <= oh < H2:
                    continue
                for w in range(W1):
                    ow = 2 * w + dj + px0
                    if not 0 <= ow < W2:
                        continue
                    P[t, h * W1 + w, oh * W2 + ow] = 1.0
                    valid[oh * W2 + ow] = 1.0
    return P.reshape(4 * HW1, HW2), valid


def up_forward(x1_nchw, x2_nchw, params, *, b_tile=4):
    """Up.forward: x1 (N,Cin1,H1,W1), x2 (N,C2,H2,W2) -> (N,Cout,H2,W2), all NCHW."""
    N, Cin1, H1, W1 = x1_nchw.shape
    _, C2, H2, W2 = x2_nchw.shape
    HW1, HW2 = H1 * W1, H2 * W2
    bf16 = jnp.bfloat16

    up_w, up_b = params["up_w"], params["up_b"]          # torch layouts
    c1_w, c2_w, c3_w = params["c1_w"], params["c2_w"], params["c3_w"]

    Cup = up_w.shape[1]
    Cmid = c1_w.shape[0]
    Cout = c3_w.shape[0]
    Ccat = C2 + Cup
    assert c1_w.shape[1] == Ccat, "DoubleConv in_channels must equal C(x2)+C(up)"

    # Channel padding: each concat segment padded to 8 rows (aligned segment
    # starts for stores); stacked im2col pieces padded to 16 rows (bf16 tile).
    SUB = 16
    C2P = _round_up(C2, 8)
    CupP = _round_up(Cup, 8)
    CcatP = _round_up(C2P + CupP, SUB)
    CmidP = _round_up(Cmid, SUB)

    ZW = W2 + 1                           # halo strip width actually read by 3x3 taps
    HALO = _round_up(ZW, 128)             # interior starts lane-aligned
    PADW = HALO + _round_up(HW2 + ZW, 128)

    # Batch tile: amortize per-step overhead, but keep >= 2 grid steps when
    # possible so both v7x TensorCores get work under "parallel" semantics.
    bt = max(1, min(b_tile, N))
    while bt > 1 and -(-N // bt) < 2:
        bt //= 2
    Npad = _round_up(N, bt)

    # ---- static (shape-only) scatter / mask tables, built at trace time ----
    diffY, diffX = H2 - 2 * H1, W2 - 2 * W1
    P_np, valid_np = _build_convt_scatter(H1, W1, H2, W2, diffY // 2, diffX // 2)
    col = np.arange(HW2) % W2
    mask_np = np.stack([(col != 0), (col != W2 - 1)]).astype(np.float32)  # (2, HW2)

    # ---- weights converted to kernel (C, HW) matmul layouts; MXU operands bf16 ----
    # ConvT weight (Cin1, Cup, 2, 2) -> per-tap (Cup, Cin1)
    wup_k = jnp.transpose(up_w, (2, 3, 1, 0)).reshape(4, Cup, Cin1).astype(bf16)
    p_all = jnp.asarray(P_np).astype(bf16)                            # exact 0/1
    bmap = (up_b[:, None] * jnp.asarray(valid_np)[None, :]).astype(jnp.float32)
    mask_tbl = jnp.asarray(mask_np).astype(bf16)                      # exact 0/1

    # conv1 (Cmid, Ccat, 3, 3) -> (CmidP, 9*CcatP) im2col weights, columns laid out
    # as [x2 channels (padded to C2P), up channels (padded to CcatP-C2P)] per tap.
    w1r = jnp.transpose(c1_w, (0, 2, 3, 1))                           # (Cmid,3,3,Ccat)
    w1_x2 = jnp.pad(w1r[..., :C2], ((0, 0), (0, 0), (0, 0), (0, C2P - C2)))
    w1_up = jnp.pad(w1r[..., C2:], ((0, 0), (0, 0), (0, 0), (0, CcatP - C2P - Cup)))
    w1p = jnp.concatenate([w1_x2, w1_up], axis=-1).reshape(Cmid, 9 * CcatP)
    w1p = jnp.pad(w1p, ((0, CmidP - Cmid), (0, 0))).astype(bf16)
    # conv2 (Cmid, Cmid, 3, 3) -> (Cmid, 9*CmidP)
    w2r = jnp.transpose(c2_w, (0, 2, 3, 1))
    w2r = jnp.pad(w2r, ((0, 0), (0, 0), (0, 0), (0, CmidP - Cmid)))
    w2p = w2r.reshape(Cmid, 9 * CmidP).astype(bf16)
    # conv3 1x1 (Cout, Cmid, 1, 1) -> (Cout, Cmid)
    w3 = c3_w[:, :, 0, 0].astype(bf16)

    # NCHW inputs with HW flattened (free reshape); bf16 halves input DMA traffic.
    x1r = x1_nchw.reshape(N, Cin1, HW1).astype(bf16)
    x2r = x2_nchw.reshape(N, C2, HW2).astype(bf16)
    if Npad != N:
        x1r = jnp.pad(x1r, ((0, Npad - N), (0, 0), (0, 0)))
        x2r = jnp.pad(x2r, ((0, Npad - N), (0, 0), (0, 0)))

    def kernel(x1_ref, x2_ref, wup_ref, p_ref, bmap_ref, mask_ref,
               w1_ref, w2_ref, w3_ref, o_ref, ysc, xin_pad, h1_pad):
        f32 = jnp.float32

        # hoisted constant operands (loaded once per grid step, reused by all images)
        ml = mask_ref[pl.ds(0, 1), :]                 # (1, HW2) dx=-1 column mask
        mr = mask_ref[pl.ds(1, 1), :]                 # (1, HW2) dx=+1 column mask
        w1v = w1_ref[...]
        w2v = w2_ref[...]
        w3v = w3_ref[...]
        pv = p_ref[...]
        bmv = bmap_ref[...]
        wupv = [wup_ref[t] for t in range(4)]

        def inorm_lrelu(h):
            # InstanceNorm2d (biased var over spatial = lane axis) + LeakyReLU(0.01)
            m = jnp.mean(h, axis=1, keepdims=True)
            c = h - m
            v = jnp.mean(c * c, axis=1, keepdims=True)
            y = c * jax.lax.rsqrt(v + EPS)
            return jnp.where(y >= 0, y, SLOPE * y)

        def conv3x3(src, w_flat):
            # im2col: 9 lane-shifted windows off the halo'd scratch, one MXU matmul.
            # dy shifts are fully covered by the zeroed halo strips; only dx != 0
            # taps need a row-wrap column mask.
            cols = []
            for dy in (-1, 0, 1):
                for dx in (-1, 0, 1):
                    win = src[:, pl.ds(HALO + dy * W2 + dx, HW2)]   # (Cpad, HW2) bf16
                    if dx == -1:
                        win = win * ml
                    elif dx == 1:
                        win = win * mr
                    cols.append(win)
            stacked = jnp.concatenate(cols, axis=0)    # (9*Cpad, HW2), 16-row aligned
            return jnp.dot(w_flat, stacked, preferred_element_type=f32)

        # Unrolled loop over the images of this grid step: the per-image chains
        # (matmul -> XLU reduce -> rsqrt) are independent and overlap.
        for b in range(bt):
            xin = xin_pad.at[b]                        # (CcatP, PADW) bf16 view
            h1s = h1_pad.at[b]                         # (CmidP, PADW) bf16 view
            yb = ysc.at[b]                             # (Cup, 4*HW1) bf16 view

            # ---- ConvTranspose2d(k=2,s=2): stage the 4 tap outputs side by side,
            #      then ONE K=4*HW1 scatter matmul (interleave + F.pad), + bias ----
            x1b = x1_ref[b]                            # (Cin1, HW1) bf16
            for t in range(4):
                y_t = jnp.dot(wupv[t], x1b, preferred_element_type=f32)
                yb[:, pl.ds(t * HW1, HW1)] = y_t.astype(jnp.bfloat16)
            up = bmv + jnp.dot(yb[...], pv, preferred_element_type=f32)   # (Cup, HW2)

            # ---- assemble concat([x2, up]) into the halo'd bf16 scratch ----
            # zero only the thin halo strips + phantom channel rows (interior of
            # real channels is fully overwritten; per-step zeroing keeps scratch
            # state correct under megacore "parallel" sharding of the batch axis).
            zcat = jnp.zeros((CcatP, ZW), jnp.bfloat16)
            xin[:, pl.ds(HALO - ZW, ZW)] = zcat
            xin[:, pl.ds(HALO + HW2, ZW)] = zcat
            if C2P > C2:          # static: phantom rows between the two segments
                xin[pl.ds(C2, C2P - C2), pl.ds(HALO, HW2)] = jnp.zeros(
                    (C2P - C2, HW2), jnp.bfloat16)
            if CcatP > C2P + Cup:  # static: phantom rows after the `up` segment
                xin[pl.ds(C2P + Cup, CcatP - C2P - Cup), pl.ds(HALO, HW2)] = jnp.zeros(
                    (CcatP - C2P - Cup, HW2), jnp.bfloat16)
            xin[pl.ds(0, C2), pl.ds(HALO, HW2)] = x2_ref[b]          # lane-aligned
            xin[pl.ds(C2P, Cup), pl.ds(HALO, HW2)] = up.astype(jnp.bfloat16)

            # ---- conv1 3x3 (Ccat -> Cmid, rows padded to CmidP) + IN + LeakyReLU ----
            h1 = inorm_lrelu(conv3x3(xin, w1v))        # (CmidP, HW2) f32
            # TODO(synk): Dropout(0.1) layers are eval-mode identity (no RNG drop).

            # stage h1 in its own halo'd scratch for the second 3x3 window pass
            zmid = jnp.zeros((CmidP, ZW), jnp.bfloat16)
            h1s[:, pl.ds(HALO - ZW, ZW)] = zmid
            h1s[:, pl.ds(HALO + HW2, ZW)] = zmid
            h1s[:, pl.ds(HALO, HW2)] = h1.astype(jnp.bfloat16)

            # ---- conv2 3x3 (Cmid -> Cmid) + IN + LeakyReLU ----
            h2 = inorm_lrelu(conv3x3(h1s, w2v))        # (Cmid, HW2) f32

            # ---- conv3 1x1 (Cmid -> Cout) + IN + LeakyReLU; lane-dense NCHW store ----
            h3 = inorm_lrelu(jnp.dot(w3v, h2.astype(jnp.bfloat16),
                                     preferred_element_type=f32))
            o_ref[b] = h3                              # (Cout, HW2) f32

    out = pl.pallas_call(
        kernel,
        out_shape=jax.ShapeDtypeStruct((Npad, Cout, HW2), jnp.float32),
        grid=(Npad // bt,),
        in_specs=[
            pl.BlockSpec((bt, Cin1, HW1), lambda n: (n, 0, 0)),     # x1 (per batch tile)
            pl.BlockSpec((bt, C2, HW2), lambda n: (n, 0, 0)),       # x2 (per batch tile)
            pl.BlockSpec((4, Cup, Cin1), lambda n: (0, 0, 0)),      # ConvT tap weights
            pl.BlockSpec((4 * HW1, HW2), lambda n: (0, 0)),         # fused scatter matrix
            pl.BlockSpec((Cup, HW2), lambda n: (0, 0)),             # masked bias plane
            pl.BlockSpec((2, HW2), lambda n: (0, 0)),               # dx column masks
            pl.BlockSpec((CmidP, 9 * CcatP), lambda n: (0, 0)),     # conv1 im2col W
            pl.BlockSpec((Cmid, 9 * CmidP), lambda n: (0, 0)),      # conv2 im2col W
            pl.BlockSpec((Cout, Cmid), lambda n: (0, 0)),           # conv3 W
        ],
        out_specs=pl.BlockSpec((bt, Cout, HW2), lambda n: (n, 0, 0)),
        scratch_shapes=[
            pltpu.VMEM((bt, Cup, 4 * HW1), jnp.bfloat16),   # staged ConvT tap outputs
            pltpu.VMEM((bt, CcatP, PADW), jnp.bfloat16),    # concat([x2, up]) + halo
            pltpu.VMEM((bt, CmidP, PADW), jnp.bfloat16),    # h1 + halo
        ],
        compiler_params=pltpu.CompilerParams(
            dimension_semantics=("parallel",),
            vmem_limit_bytes=48 * 1024 * 1024,
        ),
    )(x1r, x2r, wup_k, p_all, bmap, mask_tbl, w1p, w2p, w3)

    # drop batch padding; free reshape back to NCHW image form
    return out[:N].reshape(N, Cout, H2, W2)


if __name__ == "__main__":
    key = jax.random.PRNGKey(0)
    ks = jax.random.split(key, 7)

    in_channels, out_channels = 8, 4          # Up(8, 4); DoubleConv mid = out = 4
    N, H1, W1 = 4, 8, 8                       # low-res feature map
    H2, W2 = 16, 16                           # skip-connection feature map

    # module inputs (NCHW, matching PyTorch)
    x1 = jax.random.normal(ks[0], (N, in_channels, H1, W1), jnp.float32)
    x2 = jax.random.normal(ks[1], (N, out_channels, H2, W2), jnp.float32)

    # parameters kept in torch layouts; the wrapper converts them
    params = dict(
        up_w=0.1 * jax.random.normal(ks[2], (in_channels, out_channels, 2, 2), jnp.float32),
        up_b=0.1 * jax.random.normal(ks[3], (out_channels,), jnp.float32),
        c1_w=0.1 * jax.random.normal(ks[4], (out_channels, in_channels, 3, 3), jnp.float32),
        c2_w=0.1 * jax.random.normal(ks[5], (out_channels, out_channels, 3, 3), jnp.float32),
        c3_w=0.1 * jax.random.normal(ks[6], (out_channels, out_channels, 1, 1), jnp.float32),
    )

    y = jax.jit(up_forward)(x1, x2, params)
    jax.block_until_ready(y)
    assert y.shape == (N, out_channels, H2, W2), y.shape
    assert y.dtype == jnp.float32
    print("KERNEL_OK")
</pallas_src>

<mosaic_0001>
module attributes {stable_mosaic.version = 11 : i64} {
  func.func @kernel(%arg0: i32, %arg1: memref<2x8x64xbf16, #tpu.memory_space<vmem>>, %arg2: memref<2x4x256xbf16, #tpu.memory_space<vmem>>, %arg3: memref<4x4x8xbf16, #tpu.memory_space<vmem>>, %arg4: memref<256x256xbf16, #tpu.memory_space<vmem>>, %arg5: memref<4x256xf32, #tpu.memory_space<vmem>>, %arg6: memref<2x256xbf16, #tpu.memory_space<vmem>>, %arg7: memref<16x144xbf16, #tpu.memory_space<vmem>>, %arg8: memref<4x144xbf16, #tpu.memory_space<vmem>>, %arg9: memref<4x4xbf16, #tpu.memory_space<vmem>>, %arg10: memref<2x4x256xf32, #tpu.memory_space<vmem>>, %arg11: memref<2x4x256xbf16, #tpu.memory_space<vmem>>, %arg12: memref<2x16x512xbf16, #tpu.memory_space<vmem>>, %arg13: memref<2x16x512xbf16, #tpu.memory_space<vmem>>) attributes {dimension_semantics = [#tpu.dimension_semantics<parallel>], iteration_bounds = array<i64: 2>, scalar_prefetch = 0 : i64, scratch_operands = 3 : i64, tpu.core_type = #tpu.core_type<tc>, window_params = [{transform_indices = @transform_0, window_bounds = array<i64: 2, 8, 64>}, {transform_indices = @transform_1, window_bounds = array<i64: 2, 4, 256>}, {pipeline_mode = #tpu.pipeline_mode<synchronous>, transform_indices = @transform_2, window_bounds = array<i64: 4, 4, 8>}, {pipeline_mode = #tpu.pipeline_mode<synchronous>, transform_indices = @transform_3, window_bounds = array<i64: 256, 256>}, {pipeline_mode = #tpu.pipeline_mode<synchronous>, transform_indices = @transform_4, window_bounds = array<i64: 4, 256>}, {pipeline_mode = #tpu.pipeline_mode<synchronous>, transform_indices = @transform_5, window_bounds = array<i64: 2, 256>}, {pipeline_mode = #tpu.pipeline_mode<synchronous>, transform_indices = @transform_6, window_bounds = array<i64: 16, 144>}, {pipeline_mode = #tpu.pipeline_mode<synchronous>, transform_indices = @transform_7, window_bounds = array<i64: 4, 144>}, {pipeline_mode = #tpu.pipeline_mode<synchronous>, transform_indices = @transform_8, window_bounds = array<i64: 4, 4>}, {transform_indices = @transform_9, window_bounds = array<i64: 2, 4, 256>}]} {
    %c0 = arith.constant 0 : index
    %c0_0 = arith.constant 0 : index
    %0 = vector.load %arg6[%c0, %c0_0] : memref<2x256xbf16, #tpu.memory_space<vmem>>, vector<1x256xbf16>
    %c1 = arith.constant 1 : index
    %c0_1 = arith.constant 0 : index
    %1 = vector.load %arg6[%c1, %c0_1] : memref<2x256xbf16, #tpu.memory_space<vmem>>, vector<1x256xbf16>
    %c0_2 = arith.constant 0 : index
    %c0_3 = arith.constant 0 : index
    %2 = vector.load %arg7[%c0_2, %c0_3] : memref<16x144xbf16, #tpu.memory_space<vmem>>, vector<16x144xbf16>
    %c0_4 = arith.constant 0 : index
    %c0_5 = arith.constant 0 : index
    %3 = vector.load %arg8[%c0_4, %c0_5] : memref<4x144xbf16, #tpu.memory_space<vmem>>, vector<4x144xbf16>
    %c0_6 = arith.constant 0 : index
    %c0_7 = arith.constant 0 : index
    %4 = vector.load %arg9[%c0_6, %c0_7] : memref<4x4xbf16, #tpu.memory_space<vmem>>, vector<4x4xbf16>
    %c0_8 = arith.constant 0 : index
    %c0_9 = arith.constant 0 : index
    %5 = vector.load %arg4[%c0_8, %c0_9] : memref<256x256xbf16, #tpu.memory_space<vmem>>, vector<256x256xbf16>
    %c0_10 = arith.constant 0 : index
    %c0_11 = arith.constant 0 : index
    %6 = vector.load %arg5[%c0_10, %c0_11] : memref<4x256xf32, #tpu.memory_space<vmem>>, vector<4x256xf32>
    %c0_12 = arith.constant 0 : index
    %c0_13 = arith.constant 0 : index
    %c0_14 = arith.constant 0 : index
    %7 = vector.load %arg3[%c0_12, %c0_13, %c0_14] : memref<4x4x8xbf16, #tpu.memory_space<vmem>>, vector<1x4x8xbf16>
    %8 = vector.shape_cast %7 : vector<1x4x8xbf16> to vector<4x8xbf16>
    %c1_15 = arith.constant 1 : index
    %c0_16 = arith.constant 0 : index
    %c0_17 = arith.constant 0 : index
    %9 = vector.load %arg3[%c1_15, %c0_16, %c0_17] : memref<4x4x8xbf16, #tpu.memory_space<vmem>>, vector<1x4x8xbf16>
    %10 = vector.shape_cast %9 : vector<1x4x8xbf16> to vector<4x8xbf16>
    %c2 = arith.constant 2 : index
    %c0_18 = arith.constant 0 : index
    %c0_19 = arith.constant 0 : index
    %11 = vector.load %arg3[%c2, %c0_18, %c0_19] : memref<4x4x8xbf16, #tpu.memory_space<vmem>>, vector<1x4x8xbf16>
    %12 = vector.shape_cast %11 : vector<1x4x8xbf16> to vector<4x8xbf16>
    %c3 = arith.constant 3 : index
    %c0_20 = arith.constant 0 : index
    %c0_21 = arith.constant 0 : index
    %13 = vector.load %arg3[%c3, %c0_20, %c0_21] : memref<4x4x8xbf16, #tpu.memory_space<vmem>>, vector<1x4x8xbf16>
    %14 = vector.shape_cast %13 : vector<1x4x8xbf16> to vector<4x8xbf16>
    %c0_22 = arith.constant 0 : index
    %c0_23 = arith.constant 0 : index
    %c0_24 = arith.constant 0 : index
    %15 = vector.load %arg1[%c0_22, %c0_23, %c0_24] : memref<2x8x64xbf16, #tpu.memory_space<vmem>>, vector<1x8x64xbf16>
    %16 = vector.shape_cast %15 : vector<1x8x64xbf16> to vector<8x64xbf16>
    %cst = arith.constant dense<0.000000e+00> : vector<4x64xf32>
    %17 = tpu.matmul %8, %16, %cst {dimension_numbers = #tpu.dot_dimension_numbers<[1], [0], [0], [1], [0, 0, 1, 1], [], []>} : vector<4x8xbf16>, vector<8x64xbf16>, vector<4x64xf32> -> vector<4x64xf32>
    %18 = arith.truncf %17 : vector<4x64xf32> to vector<4x64xbf16>
    %c0_i32 = arith.constant 0 : i32
    %c0_i32_25 = arith.constant 0 : i32
    %c0_i32_26 = arith.constant 0 : i32
    %19 = tpu.memref_slice %arg11[%c0_i32, %c0_i32_25, %c0_i32_26] : memref<2x4x256xbf16, #tpu.memory_space<vmem>> -> memref<1x4x256xbf16, #tpu.memory_space<vmem>>
    %20 = tpu.memref_squeeze %19 : memref<1x4x256xbf16, #tpu.memory_space<vmem>> -> memref<4x256xbf16, #tpu.memory_space<vmem>>
    %c0_27 = arith.constant 0 : index
    %c0_28 = arith.constant 0 : index
    %21 = vector.load %20[%c0_27, %c0_28] : memref<4x256xbf16, #tpu.memory_space<vmem>>, vector<4x64xbf16>
    tpu.vector_store %20[%c0_27, %c0_28], %18 {strides = array<i32>} : memref<4x256xbf16, #tpu.memory_space<vmem>>, vector<4x64xbf16>,
    %cst_29 = arith.constant dense<0.000000e+00> : vector<4x64xf32>
    %22 = tpu.matmul %10, %16, %cst_29 {dimension_numbers = #tpu.dot_dimension_numbers<[1], [0], [0], [1], [0, 0, 1, 1], [], []>} : vector<4x8xbf16>, vector<8x64xbf16>, vector<4x64xf32> -> vector<4x64xf32>
    %23 = arith.truncf %22 : vector<4x64xf32> to vector<4x64xbf16>
    %c0_i32_30 = arith.constant 0 : i32
    %c0_i32_31 = arith.constant 0 : i32
    %c0_i32_32 = arith.constant 0 : i32
    %24 = tpu.memref_slice %arg11[%c0_i32_30, %c0_i32_31, %c0_i32_32] : memref<2x4x256xbf16, #tpu.memory_space<vmem>> -> memref<1x4x256xbf16, #tpu.memory_space<vmem>>
    %25 = tpu.memref_squeeze %24 : memref<1x4x256xbf16, #tpu.memory_space<vmem>> -> memref<4x256xbf16, #tpu.memory_space<vmem>>
    %c0_33 = arith.constant 0 : index
    %c64 = arith.constant 64 : index
    %26 = vector.load %25[%c0_33, %c64] : memref<4x256xbf16, #tpu.memory_space<vmem>>, vector<4x64xbf16>
    tpu.vector_store %25[%c0_33, %c64], %23 {strides = array<i32>} : memref<4x256xbf16, #tpu.memory_space<vmem>>, vector<4x64xbf16>,
    %cst_34 = arith.constant dense<0.000000e+00> : vector<4x64xf32>
    %27 = tpu.matmul %12, %16, %cst_34 {dimension_numbers = #tpu.dot_dimension_numbers<[1], [0], [0], [1], [0, 0, 1, 1], [], []>} : vector<4x8xbf16>, vector<8x64xbf16>, vector<4x64xf32> -> vector<4x64xf32>
    %28 = arith.truncf %27 : vector<4x64xf32> to vector<4x64xbf16>
    %c0_i32_35 = arith.constant 0 : i32
    %c0_i32_36 = arith.constant 0 : i32
    %c0_i32_37 = arith.constant 0 : i32
    %29 = tpu.memref_slice %arg11[%c0_i32_35, %c0_i32_36, %c0_i32_37] : memref<2x4x256xbf16, #tpu.memory_space<vmem>> -> memref<1x4x256xbf16, #tpu.memory_space<vmem>>
    %30 = tpu.memref_squeeze %29 : memref<1x4x256xbf16, #tpu.memory_space<vmem>> -> memref<4x256xbf16, #tpu.memory_space<vmem>>
    %c0_38 = arith.constant 0 : index
    %c128 = arith.constant 128 : index
    %31 = vector.load %30[%c0_38, %c128] : memref<4x256xbf16, #tpu.memory_space<vmem>>, vector<4x64xbf16>
    tpu.vector_store %30[%c0_38, %c128], %28 {strides = array<i32>} : memref<4x256xbf16, #tpu.memory_space<vmem>>, vector<4x64xbf16>,
    %cst_39 = arith.constant dense<0.000000e+00> : vector<4x64xf32>
    %32 = tpu.matmul %14, %16, %cst_39 {dimension_numbers = #tpu.dot_dimension_numbers<[1], [0], [0], [1], [0, 0, 1, 1], [], []>} : vector<4x8xbf16>, vector<8x64xbf16>, vector<4x64xf32> -> vector<4x64xf32>
    %33 = arith.truncf %32 : vector<4x64xf32> to vector<4x64xbf16>
    %c0_i32_40 = arith.constant 0 : i32
    %c0_i32_41 = arith.constant 0 : i32
    %c0_i32_42 = arith.constant 0 : i32
    %34 = tpu.memref_slice %arg11[%c0_i32_40, %c0_i32_41, %c0_i32_42] : memref<2x4x256xbf16, #tpu.memory_space<vmem>> -> memref<1x4x256xbf16, #tpu.memory_space<vmem>>
    %35 = tpu.memref_squeeze %34 : memref<1x4x256xbf16, #tpu.memory_space<vmem>> -> memref<4x256xbf16, #tpu.memory_space<vmem>>
    %c0_43 = arith.constant 0 : index
    %c192 = arith.constant 192 : index
    %36 = vector.load %35[%c0_43, %c192] : memref<4x256xbf16, #tpu.memory_space<vmem>>, vector<4x64xbf16>
    tpu.vector_store %35[%c0_43, %c192], %33 {strides = array<i32>} : memref<4x256xbf16, #tpu.memory_space<vmem>>, vector<4x64xbf16>,
    %c0_44 = arith.constant 0 : index
    %c0_45 = arith.constant 0 : index
    %c0_46 = arith.constant 0 : index
    %37 = vector.load %arg11[%c0_44, %c0_45, %c0_46] : memref<2x4x256xbf16, #tpu.memory_space<vmem>>, vector<1x4x256xbf16>
    %38 = vector.shape_cast %37 : vector<1x4x256xbf16> to vector<4x256xbf16>
    %cst_47 = arith.constant dense<0.000000e+00> : vector<4x256xf32>
    %39 = tpu.matmul %38, %5, %cst_47 {dimension_numbers = #tpu.dot_dimension_numbers<[1], [0], [0], [1], [0, 0, 1, 1], [], []>} : vector<4x256xbf16>, vector<256x256xbf16>, vector<4x256xf32> -> vector<4x256xf32>
    %40 = arith.addf %6, %39 : vector<4x256xf32>
    %cst_48 = arith.constant 0.000000e+00 : bf16
    %41 = vector.broadcast %cst_48 : bf16 to vector<16x17xbf16>
    %c0_i32_49 = arith.constant 0 : i32
    %c0_i32_50 = arith.constant 0 : i32
    %c0_i32_51 = arith.constant 0 : i32
    %42 = tpu.memref_slice %arg12[%c0_i32_49, %c0_i32_50, %c0_i32_51] : memref<2x16x512xbf16, #tpu.memory_space<vmem>> -> memref<1x16x512xbf16, #tpu.memory_space<vmem>>
    %43 = tpu.memref_squeeze %42 : memref<1x16x512xbf16, #tpu.memory_space<vmem>> -> memref<16x512xbf16, #tpu.memory_space<vmem>>
    %c0_52 = arith.constant 0 : index
    %c111 = arith.constant 111 : index
    %44 = vector.load %43[%c0_52, %c111] : memref<16x512xbf16, #tpu.memory_space<vmem>>, vector<16x17xbf16>
    tpu.vector_store %43[%c0_52, %c111], %41 {strides = array<i32>} : memref<16x512xbf16, #tpu.memory_space<vmem>>, vector<16x17xbf16>,
    %c0_i32_53 = arith.constant 0 : i32
    %c0_i32_54 = arith.constant 0 : i32
    %c0_i32_55 = arith.constant 0 : i32
    %45 = tpu.memref_slice %arg12[%c0_i32_53, %c0_i32_54, %c0_i32_55] : memref<2x16x512xbf16, #tpu.memory_space<vmem>> -> memref<1x16x512xbf16, #tpu.memory_space<vmem>>
    %46 = tpu.memref_squeeze %45 : memref<1x16x512xbf16, #tpu.memory_space<vmem>> -> memref<16x512xbf16, #tpu.memory_space<vmem>>
    %c0_56 = arith.constant 0 : index
    %c384 = arith.constant 384 : index
    %47 = vector.load %46[%c0_56, %c384] : memref<16x512xbf16, #tpu.memory_space<vmem>>, vector<16x17xbf16>
    tpu.vector_store %46[%c0_56, %c384], %41 {strides = array<i32>} : memref<16x512xbf16, #tpu.memory_space<vmem>>, vector<16x17xbf16>,
    %cst_57 = arith.constant 0.000000e+00 : bf16
    %48 = vector.broadcast %cst_57 : bf16 to vector<4x256xbf16>
    %c0_i32_58 = arith.constant 0 : i32
    %c0_i32_59 = arith.constant 0 : i32
    %c0_i32_60 = arith.constant 0 : i32
    %49 = tpu.memref_slice %arg12[%c0_i32_58, %c0_i32_59, %c0_i32_60] : memref<2x16x512xbf16, #tpu.memory_space<vmem>> -> memref<1x16x512xbf16, #tpu.memory_space<vmem>>
    %50 = tpu.memref_squeeze %49 : memref<1x16x512xbf16, #tpu.memory_space<vmem>> -> memref<16x512xbf16, #tpu.memory_space<vmem>>
    %c4 = arith.constant 4 : index
    %c128_61 = arith.constant 128 : index
    %51 = vector.load %50[%c4, %c128_61] : memref<16x512xbf16, #tpu.memory_space<vmem>>, vector<4x256xbf16>
    tpu.vector_store %50[%c4, %c128_61], %48 {strides = array<i32>} : memref<16x512xbf16, #tpu.memory_space<vmem>>, vector<4x256xbf16>,
    %cst_62 = arith.constant 0.000000e+00 : bf16
    %52 = vector.broadcast %cst_62 : bf16 to vector<4x256xbf16>
    %c0_i32_63 = arith.constant 0 : i32
    %c0_i32_64 = arith.constant 0 : i32
    %c0_i32_65 = arith.constant 0 : i32
    %53 = tpu.memref_slice %arg12[%c0_i32_63, %c0_i32_64, %c0_i32_65] : memref<2x16x512xbf16, #tpu.memory_space<vmem>> -> memref<1x16x512xbf16, #tpu.memory_space<vmem>>
    %54 = tpu.memref_squeeze %53 : memref<1x16x512xbf16, #tpu.memory_space<vmem>> -> memref<16x512xbf16, #tpu.memory_space<vmem>>
    %c12 = arith.constant 12 : index
    %c128_66 = arith.constant 128 : index
    %55 = vector.load %54[%c12, %c128_66] : memref<16x512xbf16, #tpu.memory_space<vmem>>, vector<4x256xbf16>
    tpu.vector_store %54[%c12, %c128_66], %52 {strides = array<i32>} : memref<16x512xbf16, #tpu.memory_space<vmem>>, vector<4x256xbf16>,
    %c0_67 = arith.constant 0 : index
    %c0_68 = arith.constant 0 : index
    %c0_69 = arith.constant 0 : index
    %56 = vector.load %arg2[%c0_67, %c0_68, %c0_69] : memref<2x4x256xbf16, #tpu.memory_space<vmem>>, vector<1x4x256xbf16>
    %57 = vector.shape_cast %56 : vector<1x4x256xbf16> to vector<4x256xbf16>
    %c0_i32_70 = arith.constant 0 : i32
    %c0_i32_71 = arith.constant 0 : i32
    %c0_i32_72 = arith.constant 0 : i32
    %58 = tpu.memref_slice %arg12[%c0_i32_70, %c0_i32_71, %c0_i32_72] : memref<2x16x512xbf16, #tpu.memory_space<vmem>> -> memref<1x16x512xbf16, #tpu.memory_space<vmem>>
    %59 = tpu.memref_squeeze %58 : memref<1x16x512xbf16, #tpu.memory_space<vmem>> -> memref<16x512xbf16, #tpu.memory_space<vmem>>
    %c0_73 = arith.constant 0 : index
    %c128_74 = arith.constant 128 : index
    %60 = vector.load %59[%c0_73, %c128_74] : memref<16x512xbf16, #tpu.memory_space<vmem>>, vector<4x256xbf16>
    tpu.vector_store %59[%c0_73, %c128_74], %57 {strides = array<i32>} : memref<16x512xbf16, #tpu.memory_space<vmem>>, vector<4x256xbf16>,
    %61 = arith.truncf %40 : vector<4x256xf32> to vector<4x256xbf16>
    %c0_i32_75 = arith.constant 0 : i32
    %c0_i32_76 = arith.constant 0 : i32
    %c0_i32_77 = arith.constant 0 : i32
    %62 = tpu.memref_slice %arg12[%c0_i32_75, %c0_i32_76, %c0_i32_77] : memref<2x16x512xbf16, #tpu.memory_space<vmem>> -> memref<1x16x512xbf16, #tpu.memory_space<vmem>>
    %63 = tpu.memref_squeeze %62 : memref<1x16x512xbf16, #tpu.memory_space<vmem>> -> memref<16x512xbf16, #tpu.memory_space<vmem>>
    %c8 = arith.constant 8 : index
    %c128_78 = arith.constant 128 : index
    %64 = vector.load %63[%c8, %c128_78] : memref<16x512xbf16, #tpu.memory_space<vmem>>, vector<4x256xbf16>
    tpu.vector_store %63[%c8, %c128_78], %61 {strides = array<i32>} : memref<16x512xbf16, #tpu.memory_space<vmem>>, vector<4x256xbf16>,
    %c0_i32_79 = arith.constant 0 : i32
    %c0_i32_80 = arith.constant 0 : i32
    %c0_i32_81 = arith.constant 0 : i32
    %65 = tpu.memref_slice %arg12[%c0_i32_79, %c0_i32_80, %c0_i32_81] : memref<2x16x512xbf16, #tpu.memory_space<vmem>> -> memref<1x16x512xbf16, #tpu.memory_space<vmem>>
    %66 = tpu.memref_squeeze %65 : memref<1x16x512xbf16, #tpu.memory_space<vmem>> -> memref<16x512xbf16, #tpu.memory_space<vmem>>
    %c0_82 = arith.constant 0 : index
    %c111_83 = arith.constant 111 : index
    %67 = vector.load %66[%c0_82, %c111_83] : memref<16x512xbf16, #tpu.memory_space<vmem>>, vector<16x256xbf16>
    %68 = vector.broadcast %0 : vector<1x256xbf16> to vector<16x256xbf16>
    %69 = arith.mulf %67, %68 : vector<16x256xbf16>
    %c0_i32_84 = arith.constant 0 : i32
    %c0_i32_85 = arith.constant 0 : i32
    %c0_i32_86 = arith.constant 0 : i32
    %70 = tpu.memref_slice %arg12[%c0_i32_84, %c0_i32_85, %c0_i32_86] : memref<2x16x512xbf16, #tpu.memory_space<vmem>> -> memref<1x16x512xbf16, #tpu.memory_space<vmem>>
    %71 = tpu.memref_squeeze %70 : memref<1x16x512xbf16, #tpu.memory_space<vmem>> -> memref<16x512xbf16, #tpu.memory_space<vmem>>
    %c0_87 = arith.constant 0 : index
    %c112 = arith.constant 112 : index
    %72 = vector.load %71[%c0_87, %c112] : memref<16x512xbf16, #tpu.memory_space<vmem>>, vector<16x256xbf16>
    %c0_i32_88 = arith.constant 0 : i32
    %c0_i32_89 = arith.constant 0 : i32
    %c0_i32_90 = arith.constant 0 : i32
    %73 = tpu.memref_slice %arg12[%c0_i32_88, %c0_i32_89, %c0_i32_90] : memref<2x16x512xbf16, #tpu.memory_space<vmem>> -> memref<1x16x512xbf16, #tpu.memory_space<vmem>>
    %74 = tpu.memref_squeeze %73 : memref<1x16x512xbf16, #tpu.memory_space<vmem>> -> memref<16x512xbf16, #tpu.memory_space<vmem>>
    %c0_91 = arith.constant 0 : index
    %c113 = arith.constant 113 : index
    %75 = vector.load %74[%c0_91, %c113] : memref<16x512xbf16, #tpu.memory_space<vmem>>, vector<16x256xbf16>
    %76 = vector.broadcast %1 : vector<1x256xbf16> to vector<16x256xbf16>
    %77 = arith.mulf %75, %76 : vector<16x256xbf16>
    %c0_i32_92 = arith.constant 0 : i32
    %c0_i32_93 = arith.constant 0 : i32
    %c0_i32_94 = arith.constant 0 : i32
    %78 = tpu.memref_slice %arg12[%c0_i32_92, %c0_i32_93, %c0_i32_94] : memref<2x16x512xbf16, #tpu.memory_space<vmem>> -> memref<1x16x512xbf16, #tpu.memory_space<vmem>>
    %79 = tpu.memref_squeeze %78 : memref<1x16x512xbf16, #tpu.memory_space<vmem>> -> memref<16x512xbf16, #tpu.memory_space<vmem>>
    %c0_95 = arith.constant 0 : index
    %c127 = arith.constant 127 : index
    %80 = vector.load %79[%c0_95, %c127] : memref<16x512xbf16, #tpu.memory_space<vmem>>, vector<16x256xbf16>
    %81 = vector.broadcast %0 : vector<1x256xbf16> to vector<16x256xbf16>
    %82 = arith.mulf %80, %81 : vector<16x256xbf16>
    %c0_i32_96 = arith.constant 0 : i32
    %c0_i32_97 = arith.constant 0 : i32
    %c0_i32_98 = arith.constant 0 : i32
    %83 = tpu.memref_slice %arg12[%c0_i32_96, %c0_i32_97, %c0_i32_98] : memref<2x16x512xbf16, #tpu.memory_space<vmem>> -> memref<1x16x512xbf16, #tpu.memory_space<vmem>>
    %84 = tpu.memref_squeeze %83 : memref<1x16x512xbf16, #tpu.memory_space<vmem>> -> memref<16x512xbf16, #tpu.memory_space<vmem>>
    %c0_99 = arith.constant 0 : index
    %c128_100 = arith.constant 128 : index
    %85 = vector.load %84[%c0_99, %c128_100] : memref<16x512xbf16, #tpu.memory_space<vmem>>, vector<16x256xbf16>
    %c0_i32_101 = arith.constant 0 : i32
    %c0_i32_102 = arith.constant 0 : i32
    %c0_i32_103 = arith.constant 0 : i32
    %86 = tpu.memref_slice %arg12[%c0_i32_101, %c0_i32_102, %c0_i32_103] : memref<2x16x512xbf16, #tpu.memory_space<vmem>> -> memref<1x16x512xbf16, #tpu.memory_space<vmem>>
    %87 = tpu.memref_squeeze %86 : memref<1x16x512xbf16, #tpu.memory_space<vmem>> -> memref<16x512xbf16, #tpu.memory_space<vmem>>
    %c0_104 = arith.constant 0 : index
    %c129 = arith.constant 129 : index
    %88 = vector.load %87[%c0_104, %c129] : memref<16x512xbf16, #tpu.memory_space<vmem>>, vector<16x256xbf16>
    %89 = vector.broadcast %1 : vector<1x256xbf16> to vector<16x256xbf16>
    %90 = arith.mulf %88, %89 : vector<16x256xbf16>
    %c0_i32_105 = arith.constant 0 : i32
    %c0_i32_106 = arith.constant 0 : i32
    %c0_i32_107 = arith.constant 0 : i32
    %91 = tpu.memref_slice %arg12[%c0_i32_105, %c0_i32_106, %c0_i32_107] : memref<2x16x512xbf16, #tpu.memory_space<vmem>> -> memref<1x16x512xbf16, #tpu.memory_space<vmem>>
    %92 = tpu.memref_squeeze %91 : memref<1x16x512xbf16, #tpu.memory_space<vmem>> -> memref<16x512xbf16, #tpu.memory_space<vmem>>
    %c0_108 = arith.constant 0 : index
    %c143 = arith.constant 143 : index
    %93 = vector.load %92[%c0_108, %c143] : memref<16x512xbf16, #tpu.memory_space<vmem>>, vector<16x256xbf16>
    %94 = vector.broadcast %0 : vector<1x256xbf16> to vector<16x256xbf16>
    %95 = arith.mulf %93, %94 : vector<16x256xbf16>
    %c0_i32_109 = arith.constant 0 : i32
    %c0_i32_110 = arith.constant 0 : i32
    %c0_i32_111 = arith.constant 0 : i32
    %96 = tpu.memref_slice %arg12[%c0_i32_109, %c0_i32_110, %c0_i32_111] : memref<2x16x512xbf16, #tpu.memory_space<vmem>> -> memref<1x16x512xbf16, #tpu.memory_space<vmem>>
    %97 = tpu.memref_squeeze %96 : memref<1x16x512xbf16, #tpu.memory_space<vmem>> -> memref<16x512xbf16, #tpu.memory_space<vmem>>
    %c0_112 = arith.constant 0 : index
    %c144 = arith.constant 144 : index
    %98 = vector.load %97[%c0_112, %c144] : memref<16x512xbf16, #tpu.memory_space<vmem>>, vector<16x256xbf16>
    %c0_i32_113 = arith.constant 0 : i32
    %c0_i32_114 = arith.constant 0 : i32
    %c0_i32_115 = arith.constant 0 : i32
    %99 = tpu.memref_slice %arg12[%c0_i32_113, %c0_i32_114, %c0_i32_115] : memref<2x16x512xbf16, #tpu.memory_space<vmem>> -> memref<1x16x512xbf16, #tpu.memory_space<vmem>>
    %100 = tpu.memref_squeeze %99 : memref<1x16x512xbf16, #tpu.memory_space<vmem>> -> memref<16x512xbf16, #tpu.memory_space<vmem>>
    %c0_116 = arith.constant 0 : index
    %c145 = arith.constant 145 : index
    %101 = vector.load %100[%c0_116, %c145] : memref<16x512xbf16, #tpu.memory_space<vmem>>, vector<16x256xbf16>
    %102 = vector.broadcast %1 : vector<1x256xbf16> to vector<16x256xbf16>
    %103 = arith.mulf %101, %102 : vector<16x256xbf16>
    %104 = tpu.concatenate %69, %72, %77, %82, %85, %90, %95, %98, %103 in 0 : vector<16x256xbf16>, vector<16x256xbf16>, vector<16x256xbf16>, vector<16x256xbf16>, vector<16x256xbf16>, vector<16x256xbf16>, vector<16x256xbf16>, vector<16x256xbf16>, vector<16x256xbf16> -> vector<144x256xbf16>
    %cst_117 = arith.constant dense<0.000000e+00> : vector<16x256xf32>
    %105 = tpu.matmul %2, %104, %cst_117 {dimension_numbers = #tpu.dot_dimension_numbers<[1], [0], [0], [1], [0, 0, 1, 1], [], []>} : vector<16x144xbf16>, vector<144x256xbf16>, vector<16x256xf32> -> vector<16x256xf32>
    %cst_118 = arith.constant dense<0.000000e+00> : vector<16xf32>
    %106 = vector.multi_reduction <add>, %105, %cst_118 [1] : vector<16x256xf32> to vector<16xf32>
    %107 = vector.shape_cast %106 : vector<16xf32> to vector<16x1xf32>
    %cst_119 = arith.constant 2.560000e+02 : f32
    %108 = vector.broadcast %cst_119 : f32 to vector<16x1xf32>
    %109 = arith.divf %107, %108 : vector<16x1xf32>
    %110 = vector.broadcast %109 : vector<16x1xf32> to vector<16x256xf32>
    %111 = arith.subf %105, %110 : vector<16x256xf32>
    %112 = arith.mulf %111, %111 : vector<16x256xf32>
    %cst_120 = arith.constant dense<0.000000e+00> : vector<16xf32>
    %113 = vector.multi_reduction <add>, %112, %cst_120 [1] : vector<16x256xf32> to vector<16xf32>
    %114 = vector.shape_cast %113 : vector<16xf32> to vector<16x1xf32>
    %cst_121 = arith.constant 2.560000e+02 : f32
    %115 = vector.broadcast %cst_121 : f32 to vector<16x1xf32>
    %116 = arith.divf %114, %115 : vector<16x1xf32>
    %cst_122 = arith.constant 9.99999974E-6 : f32
    %117 = vector.broadcast %cst_122 : f32 to vector<16x1xf32>
    %118 = arith.addf %116, %117 : vector<16x1xf32>
    %119 = math.rsqrt %118 : vector<16x1xf32>
    %120 = vector.broadcast %119 : vector<16x1xf32> to vector<16x256xf32>
    %121 = arith.mulf %111, %120 : vector<16x256xf32>
    %cst_123 = arith.constant 0.000000e+00 : f32
    %122 = vector.broadcast %cst_123 : f32 to vector<16x256xf32>
    %123 = arith.cmpf oge, %121, %122 : vector<16x256xf32>
    %cst_124 = arith.constant 0.00999999977 : f32
    %124 = vector.broadcast %cst_124 : f32 to vector<16x256xf32>
    %125 = arith.mulf %124, %121 : vector<16x256xf32>
    %126 = arith.select %123, %121, %125 : vector<16x256xi1>, vector<16x256xf32>
    %cst_125 = arith.constant 0.000000e+00 : bf16
    %127 = vector.broadcast %cst_125 : bf16 to vector<16x17xbf16>
    %c0_i32_126 = arith.constant 0 : i32
    %c0_i32_127 = arith.constant 0 : i32
    %c0_i32_128 = arith.constant 0 : i32
    %128 = tpu.memref_slice %arg13[%c0_i32_126, %c0_i32_127, %c0_i32_128] : memref<2x16x512xbf16, #tpu.memory_space<vmem>> -> memref<1x16x512xbf16, #tpu.memory_space<vmem>>
    %129 = tpu.memref_squeeze %128 : memref<1x16x512xbf16, #tpu.memory_space<vmem>> -> memref<16x512xbf16, #tpu.memory_space<vmem>>
    %c0_129 = arith.constant 0 : index
    %c111_130 = arith.constant 111 : index
    %130 = vector.load %129[%c0_129, %c111_130] : memref<16x512xbf16, #tpu.memory_space<vmem>>, vector<16x17xbf16>
    tpu.vector_store %129[%c0_129, %c111_130], %127 {strides = array<i32>} : memref<16x512xbf16, #tpu.memory_space<vmem>>, vector<16x17xbf16>,
    %c0_i32_131 = arith.constant 0 : i32
    %c0_i32_132 = arith.constant 0 : i32
    %c0_i32_133 = arith.constant 0 : i32
    %131 = tpu.memref_slice %arg13[%c0_i32_131, %c0_i32_132, %c0_i32_133] : memref<2x16x512xbf16, #tpu.memory_space<vmem>> -> memref<1x16x512xbf16, #tpu.memory_space<vmem>>
    %132 = tpu.memref_squeeze %131 : memref<1x16x512xbf16, #tpu.memory_space<vmem>> -> memref<16x512xbf16, #tpu.memory_space<vmem>>
    %c0_134 = arith.constant 0 : index
    %c384_135 = arith.constant 384 : index
    %133 = vector.load %132[%c0_134, %c384_135] : memref<16x512xbf16, #tpu.memory_space<vmem>>, vector<16x17xbf16>
    tpu.vector_store %132[%c0_134, %c384_135], %127 {strides = array<i32>} : memref<16x512xbf16, #tpu.memory_space<vmem>>, vector<16x17xbf16>,
    %134 = arith.truncf %126 : vector<16x256xf32> to vector<16x256xbf16>
    %c0_i32_136 = arith.constant 0 : i32
    %c0_i32_137 = arith.constant 0 : i32
    %c0_i32_138 = arith.constant 0 : i32
    %135 = tpu.memref_slice %arg13[%c0_i32_136, %c0_i32_137, %c0_i32_138] : memref<2x16x512xbf16, #tpu.memory_space<vmem>> -> memref<1x16x512xbf16, #tpu.memory_space<vmem>>
    %136 = tpu.memref_squeeze %135 : memref<1x16x512xbf16, #tpu.memory_space<vmem>> -> memref<16x512xbf16, #tpu.memory_space<vmem>>
    %c0_139 = arith.constant 0 : index
    %c128_140 = arith.constant 128 : index
    %137 = vector.load %136[%c0_139, %c128_140] : memref<16x512xbf16, #tpu.memory_space<vmem>>, vector<16x256xbf16>
    tpu.vector_store %136[%c0_139, %c128_140], %134 {strides = array<i32>} : memref<16x512xbf16, #tpu.memory_space<vmem>>, vector<16x256xbf16>,
    %c0_i32_141 = arith.constant 0 : i32
    %c0_i32_142 = arith.constant 0 : i32
    %c0_i32_143 = arith.constant 0 : i32
    %138 = tpu.memref_slice %arg13[%c0_i32_141, %c0_i32_142, %c0_i32_143] : memref<2x16x512xbf16, #tpu.memory_space<vmem>> -> memref<1x16x512xbf16, #tpu.memory_space<vmem>>
    %139 = tpu.memref_squeeze %138 : memref<1x16x512xbf16, #tpu.memory_space<vmem>> -> memref<16x512xbf16, #tpu.memory_space<vmem>>
    %c0_144 = arith.constant 0 : index
    %c111_145 = arith.constant 111 : index
    %140 = vector.load %139[%c0_144, %c111_145] : memref<16x512xbf16, #tpu.memory_space<vmem>>, vector<16x256xbf16>
    %141 = vector.broadcast %0 : vector<1x256xbf16> to vector<16x256xbf16>
    %142 = arith.mulf %140, %141 : vector<16x256xbf16>
    %c0_i32_146 = arith.constant 0 : i32
    %c0_i32_147 = arith.constant 0 : i32
    %c0_i32_148 = arith.constant 0 : i32
    %143 = tpu.memref_slice %arg13[%c0_i32_146, %c0_i32_147, %c0_i32_148] : memref<2x16x512xbf16, #tpu.memory_space<vmem>> -> memref<1x16x512xbf16, #tpu.memory_space<vmem>>
    %144 = tpu.memref_squeeze %143 : memref<1x16x512xbf16, #tpu.memory_space<vmem>> -> memref<16x512xbf16, #tpu.memory_space<vmem>>
    %c0_149 = arith.constant 0 : index
    %c112_150 = arith.constant 112 : index
    %145 = vector.load %144[%c0_149, %c112_150] : memref<16x512xbf16, #tpu.memory_space<vmem>>, vector<16x256xbf16>
    %c0_i32_151 = arith.constant 0 : i32
    %c0_i32_152 = arith.constant 0 : i32
    %c0_i32_153 = arith.constant 0 : i32
    %146 = tpu.memref_slice %arg13[%c0_i32_151, %c0_i32_152, %c0_i32_153] : memref<2x16x512xbf16, #tpu.memory_space<vmem>> -> memref<1x16x512xbf16, #tpu.memory_space<vmem>>
    %147 = tpu.memref_squeeze %146 : memref<1x16x512xbf16, #tpu.memory_space<vmem>> -> memref<16x512xbf16, #tpu.memory_space<vmem>>
    %c0_154 = arith.constant 0 : index
    %c113_155 = arith.constant 113 : index
    %148 = vector.load %147[%c0_154, %c113_155] : memref<16x512xbf16, #tpu.memory_space<vmem>>, vector<16x256xbf16>
    %149 = vector.broadcast %1 : vector<1x256xbf16> to vector<16x256xbf16>
    %150 = arith.mulf %148, %149 : vector<16x256xbf16>
    %c0_i32_156 = arith.constant 0 : i32
    %c0_i32_157 = arith.constant 0 : i32
    %c0_i32_158 = arith.constant 0 : i32
    %151 = tpu.memref_slice %arg13[%c0_i32_156, %c0_i32_157, %c0_i32_158] : memref<2x16x512xbf16, #tpu.memory_space<vmem>> -> memref<1x16x512xbf16, #tpu.memory_space<vmem>>
    %152 = tpu.memref_squeeze %151 : memref<1x16x512xbf16, #tpu.memory_space<vmem>> -> memref<16x512xbf16, #tpu.memory_space<vmem>>
    %c0_159 = arith.constant 0 : index
    %c127_160 = arith.constant 127 : index
    %153 = vector.load %152[%c0_159, %c127_160] : memref<16x512xbf16, #tpu.memory_space<vmem>>, vector<16x256xbf16>
    %154 = vector.broadcast %0 : vector<1x256xbf16> to vector<16x256xbf16>
    %155 = arith.mulf %153, %154 : vector<16x256xbf16>
    %c0_i32_161 = arith.constant 0 : i32
    %c0_i32_162 = arith.constant 0 : i32
    %c0_i32_163 = arith.constant 0 : i32
    %156 = tpu.memref_slice %arg13[%c0_i32_161, %c0_i32_162, %c0_i32_163] : memref<2x16x512xbf16, #tpu.memory_space<vmem>> -> memref<1x16x512xbf16, #tpu.memory_space<vmem>>
    %157 = tpu.memref_squeeze %156 : memref<1x16x512xbf16, #tpu.memory_space<vmem>> -> memref<16x512xbf16, #tpu.memory_space<vmem>>
    %c0_164 = arith.constant 0 : index
    %c128_165 = arith.constant 128 : index
    %158 = vector.load %157[%c0_164, %c128_165] : memref<16x512xbf16, #tpu.memory_space<vmem>>, vector<16x256xbf16>
    %c0_i32_166 = arith.constant 0 : i32
    %c0_i32_167 = arith.constant 0 : i32
    %c0_i32_168 = arith.constant 0 : i32
    %159 = tpu.memref_slice %arg13[%c0_i32_166, %c0_i32_167, %c0_i32_168] : memref<2x16x512xbf16, #tpu.memory_space<vmem>> -> memref<1x16x512xbf16, #tpu.memory_space<vmem>>
    %160 = tpu.memref_squeeze %159 : memref<1x16x512xbf16, #tpu.memory_space<vmem>> -> memref<16x512xbf16, #tpu.memory_space<vmem>>
    %c0_169 = arith.constant 0 : index
    %c129_170 = arith.constant 129 : index
    %161 = vector.load %160[%c0_169, %c129_170] : memref<16x512xbf16, #tpu.memory_space<vmem>>, vector<16x256xbf16>
    %162 = vector.broadcast %1 : vector<1x256xbf16> to vector<16x256xbf16>
    %163 = arith.mulf %161, %162 : vector<16x256xbf16>
    %c0_i32_171 = arith.constant 0 : i32
    %c0_i32_172 = arith.constant 0 : i32
    %c0_i32_173 = arith.constant 0 : i32
    %164 = tpu.memref_slice %arg13[%c0_i32_171, %c0_i32_172, %c0_i32_173] : memref<2x16x512xbf16, #tpu.memory_space<vmem>> -> memref<1x16x512xbf16, #tpu.memory_space<vmem>>
    %165 = tpu.memref_squeeze %164 : memref<1x16x512xbf16, #tpu.memory_space<vmem>> -> memref<16x512xbf16, #tpu.memory_space<vmem>>
    %c0_174 = arith.constant 0 : index
    %c143_175 = arith.constant 143 : index
    %166 = vector.load %165[%c0_174, %c143_175] : memref<16x512xbf16, #tpu.memory_space<vmem>>, vector<16x256xbf16>
    %167 = vector.broadcast %0 : vector<1x256xbf16> to vector<16x256xbf16>
    %168 = arith.mulf %166, %167 : vector<16x256xbf16>
    %c0_i32_176 = arith.constant 0 : i32
    %c0_i32_177 = arith.constant 0 : i32
    %c0_i32_178 = arith.constant 0 : i32
    %169 = tpu.memref_slice %arg13[%c0_i32_176, %c0_i32_177, %c0_i32_178] : memref<2x16x512xbf16, #tpu.memory_space<vmem>> -> memref<1x16x512xbf16, #tpu.memory_space<vmem>>
    %170 = tpu.memref_squeeze %169 : memref<1x16x512xbf16, #tpu.memory_space<vmem>> -> memref<16x512xbf16, #tpu.memory_space<vmem>>
    %c0_179 = arith.constant 0 : index
    %c144_180 = arith.constant 144 : index
    %171 = vector.load %170[%c0_179, %c144_180] : memref<16x512xbf16, #tpu.memory_space<vmem>>, vector<16x256xbf16>
    %c0_i32_181 = arith.constant 0 : i32
    %c0_i32_182 = arith.constant 0 : i32
    %c0_i32_183 = arith.constant 0 : i32
    %172 = tpu.memref_slice %arg13[%c0_i32_181, %c0_i32_182, %c0_i32_183] : memref<2x16x512xbf16, #tpu.memory_space<vmem>> -> memref<1x16x512xbf16, #tpu.memory_space<vmem>>
    %173 = tpu.memref_squeeze %172 : memref<1x16x512xbf16, #tpu.memory_space<vmem>> -> memref<16x512xbf16, #tpu.memory_space<vmem>>
    %c0_184 = arith.constant 0 : index
    %c145_185 = arith.constant 145 : index
    %174 = vector.load %173[%c0_184, %c145_185] : memref<16x512xbf16, #tpu.memory_space<vmem>>, vector<16x256xbf16>
    %175 = vector.broadcast %1 : vector<1x256xbf16> to vector<16x256xbf16>
    %176 = arith.mulf %174, %175 : vector<16x256xbf16>
    %177 = tpu.concatenate %142, %145, %150, %155, %158, %163, %168, %171, %176 in 0 : vector<16x256xbf16>, vector<16x256xbf16>, vector<16x256xbf16>, vector<16x256xbf16>, vector<16x256xbf16>, vector<16x256xbf16>, vector<16x256xbf16>, vector<16x256xbf16>, vector<16x256xbf16> -> vector<144x256xbf16>
    %cst_186 = arith.constant dense<0.000000e+00> : vector<4x256xf32>
    %178 = tpu.matmul %3, %177, %cst_186 {dimension_numbers = #tpu.dot_dimension_numbers<[1], [0], [0], [1], [0, 0, 1, 1], [], []>} : vector<4x144xbf16>, vector<144x256xbf16>, vector<4x256xf32> -> vector<4x256xf32>
    %cst_187 = arith.constant dense<0.000000e+00> : vector<4xf32>
    %179 = vector.multi_reduction <add>, %178, %cst_187 [1] : vector<4x256xf32> to vector<4xf32>
    %180 = vector.shape_cast %179 : vector<4xf32> to vector<4x1xf32>
    %cst_188 = arith.constant 2.560000e+02 : f32
    %181 = vector.broadcast %cst_188 : f32 to vector<4x1xf32>
    %182 = arith.divf %180, %181 : vector<4x1xf32>
    %183 = vector.broadcast %182 : vector<4x1xf32> to vector<4x256xf32>
    %184 = arith.subf %178, %183 : vector<4x256xf32>
    %185 = arith.mulf %184, %184 : vector<4x256xf32>
    %cst_189 = arith.constant dense<0.000000e+00> : vector<4xf32>
    %186 = vector.multi_reduction <add>, %185, %cst_189 [1] : vector<4x256xf32> to vector<4xf32>
    %187 = vector.shape_cast %186 : vector<4xf32> to vector<4x1xf32>
    %cst_190 = arith.constant 2.560000e+02 : f32
    %188 = vector.broadcast %cst_190 : f32 to vector<4x1xf32>
    %189 = arith.divf %187, %188 : vector<4x1xf32>
    %cst_191 = arith.constant 9.99999974E-6 : f32
    %190 = vector.broadcast %cst_191 : f32 to vector<4x1xf32>
    %191 = arith.addf %189, %190 : vector<4x1xf32>
    %192 = math.rsqrt %191 : vector<4x1xf32>
    %193 = vector.broadcast %192 : vector<4x1xf32> to vector<4x256xf32>
    %194 = arith.mulf %184, %193 : vector<4x256xf32>
    %cst_192 = arith.constant 0.000000e+00 : f32
    %195 = vector.broadcast %cst_192 : f32 to vector<4x256xf32>
    %196 = arith.cmpf oge, %194, %195 : vector<4x256xf32>
    %cst_193 = arith.constant 0.00999999977 : f32
    %197 = vector.broadcast %cst_193 : f32 to vector<4x256xf32>
    %198 = arith.mulf %197, %194 : vector<4x256xf32>
    %199 = arith.select %196, %194, %198 : vector<4x256xi1>, vector<4x256xf32>
    %200 = arith.truncf %199 : vector<4x256xf32> to vector<4x256xbf16>
    %cst_194 = arith.constant dense<0.000000e+00> : vector<4x256xf32>
    %201 = tpu.matmul %4, %200, %cst_194 {dimension_numbers = #tpu.dot_dimension_numbers<[1], [0], [0], [1], [0, 0, 1, 1], [], []>} : vector<4x4xbf16>, vector<4x256xbf16>, vector<4x256xf32> -> vector<4x256xf32>
    %cst_195 = arith.constant dense<0.000000e+00> : vector<4xf32>
    %202 = vector.multi_reduction <add>, %201, %cst_195 [1] : vector<4x256xf32> to vector<4xf32>
    %203 = vector.shape_cast %202 : vector<4xf32> to vector<4x1xf32>
    %cst_196 = arith.constant 2.560000e+02 : f32
    %204 = vector.broadcast %cst_196 : f32 to vector<4x1xf32>
    %205 = arith.divf %203, %204 : vector<4x1xf32>
    %206 = vector.broadcast %205 : vector<4x1xf32> to vector<4x256xf32>
    %207 = arith.subf %201, %206 : vector<4x256xf32>
    %208 = arith.mulf %207, %207 : vector<4x256xf32>
    %cst_197 = arith.constant dense<0.000000e+00> : vector<4xf32>
    %209 = vector.multi_reduction <add>, %208, %cst_197 [1] : vector<4x256xf32> to vector<4xf32>
    %210 = vector.shape_cast %209 : vector<4xf32> to vector<4x1xf32>
    %cst_198 = arith.constant 2.560000e+02 : f32
    %211 = vector.broadcast %cst_198 : f32 to vector<4x1xf32>
    %212 = arith.divf %210, %211 : vector<4x1xf32>
    %cst_199 = arith.constant 9.99999974E-6 : f32
    %213 = vector.broadcast %cst_199 : f32 to vector<4x1xf32>
    %214 = arith.addf %212, %213 : vector<4x1xf32>
    %215 = math.rsqrt %214 : vector<4x1xf32>
    %216 = vector.broadcast %215 : vector<4x1xf32> to vector<4x256xf32>
    %217 = arith.mulf %207, %216 : vector<4x256xf32>
    %cst_200 = arith.constant 0.000000e+00 : f32
    %218 = vector.broadcast %cst_200 : f32 to vector<4x256xf32>
    %219 = arith.cmpf oge, %217, %218 : vector<4x256xf32>
    %cst_201 = arith.constant 0.00999999977 : f32
    %220 = vector.broadcast %cst_201 : f32 to vector<4x256xf32>
    %221 = arith.mulf %220, %217 : vector<4x256xf32>
    %222 = arith.select %219, %217, %221 : vector<4x256xi1>, vector<4x256xf32>
    %c0_202 = arith.constant 0 : index
    %c0_203 = arith.constant 0 : index
    %c0_204 = arith.constant 0 : index
    %223 = vector.load %arg10[%c0_202, %c0_203, %c0_204] : memref<2x4x256xf32, #tpu.memory_space<vmem>>, vector<1x4x256xf32>
    %224 = vector.shape_cast %223 : vector<1x4x256xf32> to vector<4x256xf32>
    %225 = vector.shape_cast %222 : vector<4x256xf32> to vector<1x4x256xf32>
    tpu.vector_store %arg10[%c0_202, %c0_203, %c0_204], %225 {strides = array<i32>} : memref<2x4x256xf32, #tpu.memory_space<vmem>>, vector<1x4x256xf32>,
    %c1_205 = arith.constant 1 : index
    %c0_206 = arith.constant 0 : index
    %c0_207 = arith.constant 0 : index
    %226 = vector.load %arg1[%c1_205, %c0_206, %c0_207] : memref<2x8x64xbf16, #tpu.memory_space<vmem>>, vector<1x8x64xbf16>
    %227 = vector.shape_cast %226 : vector<1x8x64xbf16> to vector<8x64xbf16>
    %cst_208 = arith.constant dense<0.000000e+00> : vector<4x64xf32>
    %228 = tpu.matmul %8, %227, %cst_208 {dimension_numbers = #tpu.dot_dimension_numbers<[1], [0], [0], [1], [0, 0, 1, 1], [], []>} : vector<4x8xbf16>, vector<8x64xbf16>, vector<4x64xf32> -> vector<4x64xf32>
    %229 = arith.truncf %228 : vector<4x64xf32> to vector<4x64xbf16>
    %c1_i32 = arith.constant 1 : i32
    %c0_i32_209 = arith.constant 0 : i32
    %c0_i32_210 = arith.constant 0 : i32
    %230 = tpu.memref_slice %arg11[%c1_i32, %c0_i32_209, %c0_i32_210] : memref<2x4x256xbf16, #tpu.memory_space<vmem>> -> memref<1x4x256xbf16, #tpu.memory_space<vmem>>
    %231 = tpu.memref_squeeze %230 : memref<1x4x256xbf16, #tpu.memory_space<vmem>> -> memref<4x256xbf16, #tpu.memory_space<vmem>>
    %c0_211 = arith.constant 0 : index
    %c0_212 = arith.constant 0 : index
    %232 = vector.load %231[%c0_211, %c0_212] : memref<4x256xbf16, #tpu.memory_space<vmem>>, vector<4x64xbf16>
    tpu.vector_store %231[%c0_211, %c0_212], %229 {strides = array<i32>} : memref<4x256xbf16, #tpu.memory_space<vmem>>, vector<4x64xbf16>,
    %cst_213 = arith.constant dense<0.000000e+00> : vector<4x64xf32>
    %233 = tpu.matmul %10, %227, %cst_213 {dimension_numbers = #tpu.dot_dimension_numbers<[1], [0], [0], [1], [0, 0, 1, 1], [], []>} : vector<4x8xbf16>, vector<8x64xbf16>, vector<4x64xf32> -> vector<4x64xf32>
    %234 = arith.truncf %233 : vector<4x64xf32> to vector<4x64xbf16>
    %c1_i32_214 = arith.constant 1 : i32
    %c0_i32_215 = arith.constant 0 : i32
    %c0_i32_216 = arith.constant 0 : i32
    %235 = tpu.memref_slice %arg11[%c1_i32_214, %c0_i32_215, %c0_i32_216] : memref<2x4x256xbf16, #tpu.memory_space<vmem>> -> memref<1x4x256xbf16, #tpu.memory_space<vmem>>
    %236 = tpu.memref_squeeze %235 : memref<1x4x256xbf16, #tpu.memory_space<vmem>> -> memref<4x256xbf16, #tpu.memory_space<vmem>>
    %c0_217 = arith.constant 0 : index
    %c64_218 = arith.constant 64 : index
    %237 = vector.load %236[%c0_217, %c64_218] : memref<4x256xbf16, #tpu.memory_space<vmem>>, vector<4x64xbf16>
    tpu.vector_store %236[%c0_217, %c64_218], %234 {strides = array<i32>} : memref<4x256xbf16, #tpu.memory_space<vmem>>, vector<4x64xbf16>,
    %cst_219 = arith.constant dense<0.000000e+00> : vector<4x64xf32>
    %238 = tpu.matmul %12, %227, %cst_219 {dimension_numbers = #tpu.dot_dimension_numbers<[1], [0], [0], [1], [0, 0, 1, 1], [], []>} : vector<4x8xbf16>, vector<8x64xbf16>, vector<4x64xf32> -> vector<4x64xf32>
    %239 = arith.truncf %238 : vector<4x64xf32> to vector<4x64xbf16>
    %c1_i32_220 = arith.constant 1 : i32
    %c0_i32_221 = arith.constant 0 : i32
    %c0_i32_222 = arith.constant 0 : i32
    %240 = tpu.memref_slice %arg11[%c1_i32_220, %c0_i32_221, %c0_i32_222] : memref<2x4x256xbf16, #tpu.memory_space<vmem>> -> memref<1x4x256xbf16, #tpu.memory_space<vmem>>
    %241 = tpu.memref_squeeze %240 : memref<1x4x256xbf16, #tpu.memory_space<vmem>> -> memref<4x256xbf16, #tpu.memory_space<vmem>>
    %c0_223 = arith.constant 0 : index
    %c128_224 = arith.constant 128 : index
    %242 = vector.load %241[%c0_223, %c128_224] : memref<4x256xbf16, #tpu.memory_space<vmem>>, vector<4x64xbf16>
    tpu.vector_store %241[%c0_223, %c128_224], %239 {strides = array<i32>} : memref<4x256xbf16, #tpu.memory_space<vmem>>, vector<4x64xbf16>,
    %cst_225 = arith.constant dense<0.000000e+00> : vector<4x64xf32>
    %243 = tpu.matmul %14, %227, %cst_225 {dimension_numbers = #tpu.dot_dimension_numbers<[1], [0], [0], [1], [0, 0, 1, 1], [], []>} : vector<4x8xbf16>, vector<8x64xbf16>, vector<4x64xf32> -> vector<4x64xf32>
    %244 = arith.truncf %243 : vector<4x64xf32> to vector<4x64xbf16>
    %c1_i32_226 = arith.constant 1 : i32
    %c0_i32_227 = arith.constant 0 : i32
    %c0_i32_228 = arith.constant 0 : i32
    %245 = tpu.memref_slice %arg11[%c1_i32_226, %c0_i32_227, %c0_i32_228] : memref<2x4x256xbf16, #tpu.memory_space<vmem>> -> memref<1x4x256xbf16, #tpu.memory_space<vmem>>
    %246 = tpu.memref_squeeze %245 : memref<1x4x256xbf16, #tpu.memory_space<vmem>> -> memref<4x256xbf16, #tpu.memory_space<vmem>>
    %c0_229 = arith.constant 0 : index
    %c192_230 = arith.constant 192 : index
    %247 = vector.load %246[%c0_229, %c192_230] : memref<4x256xbf16, #tpu.memory_space<vmem>>, vector<4x64xbf16>
    tpu.vector_store %246[%c0_229, %c192_230], %244 {strides = array<i32>} : memref<4x256xbf16, #tpu.memory_space<vmem>>, vector<4x64xbf16>,
    %c1_231 = arith.constant 1 : index
    %c0_232 = arith.constant 0 : index
    %c0_233 = arith.constant 0 : index
    %248 = vector.load %arg11[%c1_231, %c0_232, %c0_233] : memref<2x4x256xbf16, #tpu.memory_space<vmem>>, vector<1x4x256xbf16>
    %249 = vector.shape_cast %248 : vector<1x4x256xbf16> to vector<4x256xbf16>
    %cst_234 = arith.constant dense<0.000000e+00> : vector<4x256xf32>
    %250 = tpu.matmul %249, %5, %cst_234 {dimension_numbers = #tpu.dot_dimension_numbers<[1], [0], [0], [1], [0, 0, 1, 1], [], []>} : vector<4x256xbf16>, vector<256x256xbf16>, vector<4x256xf32> -> vector<4x256xf32>
    %251 = arith.addf %6, %250 : vector<4x256xf32>
    %cst_235 = arith.constant 0.000000e+00 : bf16
    %252 = vector.broadcast %cst_235 : bf16 to vector<16x17xbf16>
    %c1_i32_236 = arith.constant 1 : i32
    %c0_i32_237 = arith.constant 0 : i32
    %c0_i32_238 = arith.constant 0 : i32
    %253 = tpu.memref_slice %arg12[%c1_i32_236, %c0_i32_237, %c0_i32_238] : memref<2x16x512xbf16, #tpu.memory_space<vmem>> -> memref<1x16x512xbf16, #tpu.memory_space<vmem>>
    %254 = tpu.memref_squeeze %253 : memref<1x16x512xbf16, #tpu.memory_space<vmem>> -> memref<16x512xbf16, #tpu.memory_space<vmem>>
    %c0_239 = arith.constant 0 : index
    %c111_240 = arith.constant 111 : index
    %255 = vector.load %254[%c0_239, %c111_240] : memref<16x512xbf16, #tpu.memory_space<vmem>>, vector<16x17xbf16>
    tpu.vector_store %254[%c0_239, %c111_240], %252 {strides = array<i32>} : memref<16x512xbf16, #tpu.memory_space<vmem>>, vector<16x17xbf16>,
    %c1_i32_241 = arith.constant 1 : i32
    %c0_i32_242 = arith.constant 0 : i32
    %c0_i32_243 = arith.constant 0 : i32
    %256 = tpu.memref_slice %arg12[%c1_i32_241, %c0_i32_242, %c0_i32_243] : memref<2x16x512xbf16, #tpu.memory_space<vmem>> -> memref<1x16x512xbf16, #tpu.memory_space<vmem>>
    %257 = tpu.memref_squeeze %256 : memref<1x16x512xbf16, #tpu.memory_space<vmem>> -> memref<16x512xbf16, #tpu.memory_space<vmem>>
    %c0_244 = arith.constant 0 : index
    %c384_245 = arith.constant 384 : index
    %258 = vector.load %257[%c0_244, %c384_245] : memref<16x512xbf16, #tpu.memory_space<vmem>>, vector<16x17xbf16>
    tpu.vector_store %257[%c0_244, %c384_245], %252 {strides = array<i32>} : memref<16x512xbf16, #tpu.memory_space<vmem>>, vector<16x17xbf16>,
    %cst_246 = arith.constant 0.000000e+00 : bf16
    %259 = vector.broadcast %cst_246 : bf16 to vector<4x256xbf16>
    %c1_i32_247 = arith.constant 1 : i32
    %c0_i32_248 = arith.constant 0 : i32
    %c0_i32_249 = arith.constant 0 : i32
    %260 = tpu.memref_slice %arg12[%c1_i32_247, %c0_i32_248, %c0_i32_249] : memref<2x16x512xbf16, #tpu.memory_space<vmem>> -> memref<1x16x512xbf16, #tpu.memory_space<vmem>>
    %261 = tpu.memref_squeeze %260 : memref<1x16x512xbf16, #tpu.memory_space<vmem>> -> memref<16x512xbf16, #tpu.memory_space<vmem>>
    %c4_250 = arith.constant 4 : index
    %c128_251 = arith.constant 128 : index
    %262 = vector.load %261[%c4_250, %c128_251] : memref<16x512xbf16, #tpu.memory_space<vmem>>, vector<4x256xbf16>
    tpu.vector_store %261[%c4_250, %c128_251], %259 {strides = array<i32>} : memref<16x512xbf16, #tpu.memory_space<vmem>>, vector<4x256xbf16>,
    %cst_252 = arith.constant 0.000000e+00 : bf16
    %263 = vector.broadcast %cst_252 : bf16 to vector<4x256xbf16>
    %c1_i32_253 = arith.constant 1 : i32
    %c0_i32_254 = arith.constant 0 : i32
    %c0_i32_255 = arith.constant 0 : i32
    %264 = tpu.memref_slice %arg12[%c1_i32_253, %c0_i32_254, %c0_i32_255] : memref<2x16x512xbf16, #tpu.memory_space<vmem>> -> memref<1x16x512xbf16, #tpu.memory_space<vmem>>
    %265 = tpu.memref_squeeze %264 : memref<1x16x512xbf16, #tpu.memory_space<vmem>> -> memref<16x512xbf16, #tpu.memory_space<vmem>>
    %c12_256 = arith.constant 12 : index
    %c128_257 = arith.constant 128 : index
    %266 = vector.load %265[%c12_256, %c128_257] : memref<16x512xbf16, #tpu.memory_space<vmem>>, vector<4x256xbf16>
    tpu.vector_store %265[%c12_256, %c128_257], %263 {strides = array<i32>} : memref<16x512xbf16, #tpu.memory_space<vmem>>, vector<4x256xbf16>,
    %c1_258 = arith.constant 1 : index
    %c0_259 = arith.constant 0 : index
    %c0_260 = arith.constant 0 : index
    %267 = vector.load %arg2[%c1_258, %c0_259, %c0_260] : memref<2x4x256xbf16, #tpu.memory_space<vmem>>, vector<1x4x256xbf16>
    %268 = vector.shape_cast %267 : vector<1x4x256xbf16> to vector<4x256xbf16>
    %c1_i32_261 = arith.constant 1 : i32
    %c0_i32_262 = arith.constant 0 : i32
    %c0_i32_263 = arith.constant 0 : i32
    %269 = tpu.memref_slice %arg12[%c1_i32_261, %c0_i32_262, %c0_i32_263] : memref<2x16x512xbf16, #tpu.memory_space<vmem>> -> memref<1x16x512xbf16, #tpu.memory_space<vmem>>
    %270 = tpu.memref_squeeze %269 : memref<1x16x512xbf16, #tpu.memory_space<vmem>> -> memref<16x512xbf16, #tpu.memory_space<vmem>>
    %c0_264 = arith.constant 0 : index
    %c128_265 = arith.constant 128 : index
    %271 = vector.load %270[%c0_264, %c128_265] : memref<16x512xbf16, #tpu.memory_space<vmem>>, vector<4x256xbf16>
    tpu.vector_store %270[%c0_264, %c128_265], %268 {strides = array<i32>} : memref<16x512xbf16, #tpu.memory_space<vmem>>, vector<4x256xbf16>,
    %272 = arith.truncf %251 : vector<4x256xf32> to vector<4x256xbf16>
    %c1_i32_266 = arith.constant 1 : i32
    %c0_i32_267 = arith.constant 0 : i32
    %c0_i32_268 = arith.constant 0 : i32
    %273 = tpu.memref_slice %arg12[%c1_i32_266, %c0_i32_267, %c0_i32_268] : memref<2x16x512xbf16, #tpu.memory_space<vmem>> -> memref<1x16x512xbf16, #tpu.memory_space<vmem>>
    %274 = tpu.memref_squeeze %273 : memref<1x16x512xbf16, #tpu.memory_space<vmem>> -> memref<16x512xbf16, #tpu.memory_space<vmem>>
    %c8_269 = arith.constant 8 : index
    %c128_270 = arith.constant 128 : index
    %275 = vector.load %274[%c8_269, %c128_270] : memref<16x512xbf16, #tpu.memory_space<vmem>>, vector<4x256xbf16>
    tpu.vector_store %274[%c8_269, %c128_270], %272 {strides = array<i32>} : memref<16x512xbf16, #tpu.memory_space<vmem>>, vector<4x256xbf16>,
    %c1_i32_271 = arith.constant 1 : i32
    %c0_i32_272 = arith.constant 0 : i32
    %c0_i32_273 = arith.constant 0 : i32
    %276 = tpu.memref_slice %arg12[%c1_i32_271, %c0_i32_272, %c0_i32_273] : memref<2x16x512xbf16, #tpu.memory_space<vmem>> -> memref<1x16x512xbf16, #tpu.memory_space<vmem>>
    %277 = tpu.memref_squeeze %276 : memref<1x16x512xbf16, #tpu.memory_space<vmem>> -> memref<16x512xbf16, #tpu.memory_space<vmem>>
    %c0_274 = arith.constant 0 : index
    %c111_275 = arith.constant 111 : index
    %278 = vector.load %277[%c0_274, %c111_275] : memref<16x512xbf16, #tpu.memory_space<vmem>>, vector<16x256xbf16>
    %279 = vector.broadcast %0 : vector<1x256xbf16> to vector<16x256xbf16>
    %280 = arith.mulf %278, %279 : vector<16x256xbf16>
    %c1_i32_276 = arith.constant 1 : i32
    %c0_i32_277 = arith.constant 0 : i32
    %c0_i32_278 = arith.constant 0 : i32
    %281 = tpu.memref_slice %arg12[%c1_i32_276, %c0_i32_277, %c0_i32_278] : memref<2x16x512xbf16, #tpu.memory_space<vmem>> -> memref<1x16x512xbf16, #tpu.memory_space<vmem>>
    %282 = tpu.memref_squeeze %281 : memref<1x16x512xbf16, #tpu.memory_space<vmem>> -> memref<16x512xbf16, #tpu.memory_space<vmem>>
    %c0_279 = arith.constant 0 : index
    %c112_280 = arith.constant 112 : index
    %283 = vector.load %282[%c0_279, %c112_280] : memref<16x512xbf16, #tpu.memory_space<vmem>>, vector<16x256xbf16>
    %c1_i32_281 = arith.constant 1 : i32
    %c0_i32_282 = arith.constant 0 : i32
    %c0_i32_283 = arith.constant 0 : i32
    %284 = tpu.memref_slice %arg12[%c1_i32_281, %c0_i32_282, %c0_i32_283] : memref<2x16x512xbf16, #tpu.memory_space<vmem>> -> memref<1x16x512xbf16, #tpu.memory_space<vmem>>
    %285 = tpu.memref_squeeze %284 : memref<1x16x512xbf16, #tpu.memory_space<vmem>> -> memref<16x512xbf16, #tpu.memory_space<vmem>>
    %c0_284 = arith.constant 0 : index
    %c113_285 = arith.constant 113 : index
    %286 = vector.load %285[%c0_284, %c113_285] : memref<16x512xbf16, #tpu.memory_space<vmem>>, vector<16x256xbf16>
    %287 = vector.broadcast %1 : vector<1x256xbf16> to vector<16x256xbf16>
    %288 = arith.mulf %286, %287 : vector<16x256xbf16>
    %c1_i32_286 = arith.constant 1 : i32
    %c0_i32_287 = arith.constant 0 : i32
    %c0_i32_288 = arith.constant 0 : i32
    %289 = tpu.memref_slice %arg12[%c1_i32_286, %c0_i32_287, %c0_i32_288] : memref<2x16x512xbf16, #tpu.memory_space<vmem>> -> memref<1x16x512xbf16, #tpu.memory_space<vmem>>
    %290 = tpu.memref_squeeze %289 : memref<1x16x512xbf16, #tpu.memory_space<vmem>> -> memref<16x512xbf16, #tpu.memory_space<vmem>>
    %c0_289 = arith.constant 0 : index
    %c127_290 = arith.constant 127 : index
    %291 = vector.load %290[%c0_289, %c127_290] : memref<16x512xbf16, #tpu.memory_space<vmem>>, vector<16x256xbf16>
    %292 = vector.broadcast %0 : vector<1x256xbf16> to vector<16x256xbf16>
    %293 = arith.mulf %291, %292 : vector<16x256xbf16>
    %c1_i32_291 = arith.constant 1 : i32
    %c0_i32_292 = arith.constant 0 : i32
    %c0_i32_293 = arith.constant 0 : i32
    %294 = tpu.memref_slice %arg12[%c1_i32_291, %c0_i32_292, %c0_i32_293] : memref<2x16x512xbf16, #tpu.memory_space<vmem>> -> memref<1x16x512xbf16, #tpu.memory_space<vmem>>
    %295 = tpu.memref_squeeze %294 : memref<1x16x512xbf16, #tpu.memory_space<vmem>> -> memref<16x512xbf16, #tpu.memory_space<vmem>>
    %c0_294 = arith.constant 0 : index
    %c128_295 = arith.constant 128 : index
    %296 = vector.load %295[%c0_294, %c128_295] : memref<16x512xbf16, #tpu.memory_space<vmem>>, vector<16x256xbf16>
    %c1_i32_296 = arith.constant 1 : i32
    %c0_i32_297 = arith.constant 0 : i32
    %c0_i32_298 = arith.constant 0 : i32
    %297 = tpu.memref_slice %arg12[%c1_i32_296, %c0_i32_297, %c0_i32_298] : memref<2x16x512xbf16, #tpu.memory_space<vmem>> -> memref<1x16x512xbf16, #tpu.memory_space<vmem>>
    %298 = tpu.memref_squeeze %297 : memref<1x16x512xbf16, #tpu.memory_space<vmem>> -> memref<16x512xbf16, #tpu.memory_space<vmem>>
    %c0_299 = arith.constant 0 : index
    %c129_300 = arith.constant 129 : index
    %299 = vector.load %298[%c0_299, %c129_300] : memref<16x512xbf16, #tpu.memory_space<vmem>>, vector<16x256xbf16>
    %300 = vector.broadcast %1 : vector<1x256xbf16> to vector<16x256xbf16>
    %301 = arith.mulf %299, %300 : vector<16x256xbf16>
    %c1_i32_301 = arith.constant 1 : i32
    %c0_i32_302 = arith.constant 0 : i32
    %c0_i32_303 = arith.constant 0 : i32
    %302 = tpu.memref_slice %arg12[%c1_i32_301, %c0_i32_302, %c0_i32_303] : memref<2x16x512xbf16, #tpu.memory_space<vmem>> -> memref<1x16x512xbf16, #tpu.memory_space<vmem>>
    %303 = tpu.memref_squeeze %302 : memref<1x16x512xbf16, #tpu.memory_space<vmem>> -> memref<16x512xbf16, #tpu.memory_space<vmem>>
    %c0_304 = arith.constant 0 : index
    %c143_305 = arith.constant 143 : index
    %304 = vector.load %303[%c0_304, %c143_305] : memref<16x512xbf16, #tpu.memory_space<vmem>>, vector<16x256xbf16>
    %305 = vector.broadcast %0 : vector<1x256xbf16> to vector<16x256xbf16>
    %306 = arith.mulf %304, %305 : vector<16x256xbf16>
    %c1_i32_306 = arith.constant 1 : i32
    %c0_i32_307 = arith.constant 0 : i32
    %c0_i32_308 = arith.constant 0 : i32
    %307 = tpu.memref_slice %arg12[%c1_i32_306, %c0_i32_307, %c0_i32_308] : memref<2x16x512xbf16, #tpu.memory_space<vmem>> -> memref<1x16x512xbf16, #tpu.memory_space<vmem>>
    %308 = tpu.memref_squeeze %307 : memref<1x16x512xbf16, #tpu.memory_space<vmem>> -> memref<16x512xbf16, #tpu.memory_space<vmem>>
    %c0_309 = arith.constant 0 : index
    %c144_310 = arith.constant 144 : index
    %309 = vector.load %308[%c0_309, %c144_310] : memref<16x512xbf16, #tpu.memory_space<vmem>>, vector<16x256xbf16>
    %c1_i32_311 = arith.constant 1 : i32
    %c0_i32_312 = arith.constant 0 : i32
    %c0_i32_313 = arith.constant 0 : i32
    %310 = tpu.memref_slice %arg12[%c1_i32_311, %c0_i32_312, %c0_i32_313] : memref<2x16x512xbf16, #tpu.memory_space<vmem>> -> memref<1x16x512xbf16, #tpu.memory_space<vmem>>
    %311 = tpu.memref_squeeze %310 : memref<1x16x512xbf16, #tpu.memory_space<vmem>> -> memref<16x512xbf16, #tpu.memory_space<vmem>>
    %c0_314 = arith.constant 0 : index
    %c145_315 = arith.constant 145 : index
    %312 = vector.load %311[%c0_314, %c145_315] : memref<16x512xbf16, #tpu.memory_space<vmem>>, vector<16x256xbf16>
    %313 = vector.broadcast %1 : vector<1x256xbf16> to vector<16x256xbf16>
    %314 = arith.mulf %312, %313 : vector<16x256xbf16>
    %315 = tpu.concatenate %280, %283, %288, %293, %296, %301, %306, %309, %314 in 0 : vector<16x256xbf16>, vector<16x256xbf16>, vector<16x256xbf16>, vector<16x256xbf16>, vector<16x256xbf16>, vector<16x256xbf16>, vector<16x256xbf16>, vector<16x256xbf16>, vector<16x256xbf16> -> vector<144x256xbf16>
    %cst_316 = arith.constant dense<0.000000e+00> : vector<16x256xf32>
    %316 = tpu.matmul %2, %315, %cst_316 {dimension_numbers = #tpu.dot_dimension_numbers<[1], [0], [0], [1], [0, 0, 1, 1], [], []>} : vector<16x144xbf16>, vector<144x256xbf16>, vector<16x256xf32> -> vector<16x256xf32>
    %cst_317 = arith.constant dense<0.000000e+00> : vector<16xf32>
    %317 = vector.multi_reduction <add>, %316, %cst_317 [1] : vector<16x256xf32> to vector<16xf32>
    %318 = vector.shape_cast %317 : vector<16xf32> to vector<16x1xf32>
    %cst_318 = arith.constant 2.560000e+02 : f32
    %319 = vector.broadcast %cst_318 : f32 to vector<16x1xf32>
    %320 = arith.divf %318, %319 : vector<16x1xf32>
    %321 = vector.broadcast %320 : vector<16x1xf32> to vector<16x256xf32>
    %322 = arith.subf %316, %321 : vector<16x256xf32>
    %323 = arith.mulf %322, %322 : vector<16x256xf32>
    %cst_319 = arith.constant dense<0.000000e+00> : vector<16xf32>
    %324 = vector.multi_reduction <add>, %323, %cst_319 [1] : vector<16x256xf32> to vector<16xf32>
    %325 = vector.shape_cast %324 : vector<16xf32> to vector<16x1xf32>
    %cst_320 = arith.constant 2.560000e+02 : f32
    %326 = vector.broadcast %cst_320 : f32 to vector<16x1xf32>
    %327 = arith.divf %325, %326 : vector<16x1xf32>
    %cst_321 = arith.constant 9.99999974E-6 : f32
    %328 = vector.broadcast %cst_321 : f32 to vector<16x1xf32>
    %329 = arith.addf %327, %328 : vector<16x1xf32>
    %330 = math.rsqrt %329 : vector<16x1xf32>
    %331 = vector.broadcast %330 : vector<16x1xf32> to vector<16x256xf32>
    %332 = arith.mulf %322, %331 : vector<16x256xf32>
    %cst_322 = arith.constant 0.000000e+00 : f32
    %333 = vector.broadcast %cst_322 : f32 to vector<16x256xf32>
    %334 = arith.cmpf oge, %332, %333 : vector<16x256xf32>
    %cst_323 = arith.constant 0.00999999977 : f32
    %335 = vector.broadcast %cst_323 : f32 to vector<16x256xf32>
    %336 = arith.mulf %335, %332 : vector<16x256xf32>
    %337 = arith.select %334, %332, %336 : vector<16x256xi1>, vector<16x256xf32>
    %cst_324 = arith.constant 0.000000e+00 : bf16
    %338 = vector.broadcast %cst_324 : bf16 to vector<16x17xbf16>
    %c1_i32_325 = arith.constant 1 : i32
    %c0_i32_326 = arith.constant 0 : i32
    %c0_i32_327 = arith.constant 0 : i32
    %339 = tpu.memref_slice %arg13[%c1_i32_325, %c0_i32_326, %c0_i32_327] : memref<2x16x512xbf16, #tpu.memory_space<vmem>> -> memref<1x16x512xbf16, #tpu.memory_space<vmem>>
    %340 = tpu.memref_squeeze %339 : memref<1x16x512xbf16, #tpu.memory_space<vmem>> -> memref<16x512xbf16, #tpu.memory_space<vmem>>
    %c0_328 = arith.constant 0 : index
    %c111_329 = arith.constant 111 : index
    %341 = vector.load %340[%c0_328, %c111_329] : memref<16x512xbf16, #tpu.memory_space<vmem>>, vector<16x17xbf16>
    tpu.vector_store %340[%c0_328, %c111_329], %338 {strides = array<i32>} : memref<16x512xbf16, #tpu.memory_space<vmem>>, vector<16x17xbf16>,
    %c1_i32_330 = arith.constant 1 : i32
    %c0_i32_331 = arith.constant 0 : i32
    %c0_i32_332 = arith.constant 0 : i32
    %342 = tpu.memref_slice %arg13[%c1_i32_330, %c0_i32_331, %c0_i32_332] : memref<2x16x512xbf16, #tpu.memory_space<vmem>> -> memref<1x16x512xbf16, #tpu.memory_space<vmem>>
    %343 = tpu.memref_squeeze %342 : memref<1x16x512xbf16, #tpu.memory_space<vmem>> -> memref<16x512xbf16, #tpu.memory_space<vmem>>
    %c0_333 = arith.constant 0 : index
    %c384_334 = arith.constant 384 : index
    %344 = vector.load %343[%c0_333, %c384_334] : memref<16x512xbf16, #tpu.memory_space<vmem>>, vector<16x17xbf16>
    tpu.vector_store %343[%c0_333, %c384_334], %338 {strides = array<i32>} : memref<16x512xbf16, #tpu.memory_space<vmem>>, vector<16x17xbf16>,
    %345 = arith.truncf %337 : vector<16x256xf32> to vector<16x256xbf16>
    %c1_i32_335 = arith.constant 1 : i32
    %c0_i32_336 = arith.constant 0 : i32
    %c0_i32_337 = arith.constant 0 : i32
    %346 = tpu.memref_slice %arg13[%c1_i32_335, %c0_i32_336, %c0_i32_337] : memref<2x16x512xbf16, #tpu.memory_space<vmem>> -> memref<1x16x512xbf16, #tpu.memory_space<vmem>>
    %347 = tpu.memref_squeeze %346 : memref<1x16x512xbf16, #tpu.memory_space<vmem>> -> memref<16x512xbf16, #tpu.memory_space<vmem>>
    %c0_338 = arith.constant 0 : index
    %c128_339 = arith.constant 128 : index
    %348 = vector.load %347[%c0_338, %c128_339] : memref<16x512xbf16, #tpu.memory_space<vmem>>, vector<16x256xbf16>
    tpu.vector_store %347[%c0_338, %c128_339], %345 {strides = array<i32>} : memref<16x512xbf16, #tpu.memory_space<vmem>>, vector<16x256xbf16>,
    %c1_i32_340 = arith.constant 1 : i32
    %c0_i32_341 = arith.constant 0 : i32
    %c0_i32_342 = arith.constant 0 : i32
    %349 = tpu.memref_slice %arg13[%c1_i32_340, %c0_i32_341, %c0_i32_342] : memref<2x16x512xbf16, #tpu.memory_space<vmem>> -> memref<1x16x512xbf16, #tpu.memory_space<vmem>>
    %350 = tpu.memref_squeeze %349 : memref<1x16x512xbf16, #tpu.memory_space<vmem>> -> memref<16x512xbf16, #tpu.memory_space<vmem>>
    %c0_343 = arith.constant 0 : index
    %c111_344 = arith.constant 111 : index
    %351 = vector.load %350[%c0_343, %c111_344] : memref<16x512xbf16, #tpu.memory_space<vmem>>, vector<16x256xbf16>
    %352 = vector.broadcast %0 : vector<1x256xbf16> to vector<16x256xbf16>
    %353 = arith.mulf %351, %352 : vector<16x256xbf16>
    %c1_i32_345 = arith.constant 1 : i32
    %c0_i32_346 = arith.constant 0 : i32
    %c0_i32_347 = arith.constant 0 : i32
    %354 = tpu.memref_slice %arg13[%c1_i32_345, %c0_i32_346, %c0_i32_347] : memref<2x16x512xbf16, #tpu.memory_space<vmem>> -> memref<1x16x512xbf16, #tpu.memory_space<vmem>>
    %355 = tpu.memref_squeeze %354 : memref<1x16x512xbf16, #tpu.memory_space<vmem>> -> memref<16x512xbf16, #tpu.memory_space<vmem>>
    %c0_348 = arith.constant 0 : index
    %c112_349 = arith.constant 112 : index
    %356 = vector.load %355[%c0_348, %c112_349] : memref<16x512xbf16, #tpu.memory_space<vmem>>, vector<16x256xbf16>
    %c1_i32_350 = arith.constant 1 : i32
    %c0_i32_351 = arith.constant 0 : i32
    %c0_i32_352 = arith.constant 0 : i32
    %357 = tpu.memref_slice %arg13[%c1_i32_350, %c0_i32_351, %c0_i32_352] : memref<2x16x512xbf16, #tpu.memory_space<vmem>> -> memref<1x16x512xbf16, #tpu.memory_space<vmem>>
    %358 = tpu.memref_squeeze %357 : memref<1x16x512xbf16, #tpu.memory_space<vmem>> -> memref<16x512xbf16, #tpu.memory_space<vmem>>
    %c0_353 = arith.constant 0 : index
    %c113_354 = arith.constant 113 : index
    %359 = vector.load %358[%c0_353, %c113_354] : memref<16x512xbf16, #tpu.memory_space<vmem>>, vector<16x256xbf16>
    %360 = vector.broadcast %1 : vector<1x256xbf16> to vector<16x256xbf16>
    %361 = arith.mulf %359, %360 : vector<16x256xbf16>
    %c1_i32_355 = arith.constant 1 : i32
    %c0_i32_356 = arith.constant 0 : i32
    %c0_i32_357 = arith.constant 0 : i32
    %362 = tpu.memref_slice %arg13[%c1_i32_355, %c0_i32_356, %c0_i32_357] : memref<2x16x512xbf16, #tpu.memory_space<vmem>> -> memref<1x16x512xbf16, #tpu.memory_space<vmem>>
    %363 = tpu.memref_squeeze %362 : memref<1x16x512xbf16, #tpu.memory_space<vmem>> -> memref<16x512xbf16, #tpu.memory_space<vmem>>
    %c0_358 = arith.constant 0 : index
    %c127_359 = arith.constant 127 : index
    %364 = vector.load %363[%c0_358, %c127_359] : memref<16x512xbf16, #tpu.memory_space<vmem>>, vector<16x256xbf16>
    %365 = vector.broadcast %0 : vector<1x256xbf16> to vector<16x256xbf16>
    %366 = arith.mulf %364, %365 : vector<16x256xbf16>
    %c1_i32_360 = arith.constant 1 : i32
    %c0_i32_361 = arith.constant 0 : i32
    %c0_i32_362 = arith.constant 0 : i32
    %367 = tpu.memref_slice %arg13[%c1_i32_360, %c0_i32_361, %c0_i32_362] : memref<2x16x512xbf16, #tpu.memory_space<vmem>> -> memref<1x16x512xbf16, #tpu.memory_space<vmem>>
    %368 = tpu.memref_squeeze %367 : memref<1x16x512xbf16, #tpu.memory_space<vmem>> -> memref<16x512xbf16, #tpu.memory_space<vmem>>
    %c0_363 = arith.constant 0 : index
    %c128_364 = arith.constant 128 : index
    %369 = vector.load %368[%c0_363, %c128_364] : memref<16x512xbf16, #tpu.memory_space<vmem>>, vector<16x256xbf16>
    %c1_i32_365 = arith.constant 1 : i32
    %c0_i32_366 = arith.constant 0 : i32
    %c0_i32_367 = arith.constant 0 : i32
    %370 = tpu.memref_slice %arg13[%c1_i32_365, %c0_i32_366, %c0_i32_367] : memref<2x16x512xbf16, #tpu.memory_space<vmem>> -> memref<1x16x512xbf16, #tpu.memory_space<vmem>>
    %371 = tpu.memref_squeeze %370 : memref<1x16x512xbf16, #tpu.memory_space<vmem>> -> memref<16x512xbf16, #tpu.memory_space<vmem>>
    %c0_368 = arith.constant 0 : index
    %c129_369 = arith.constant 129 : index
    %372 = vector.load %371[%c0_368, %c129_369] : memref<16x512xbf16, #tpu.memory_space<vmem>>, vector<16x256xbf16>
    %373 = vector.broadcast %1 : vector<1x256xbf16> to vector<16x256xbf16>
    %374 = arith.mulf %372, %373 : vector<16x256xbf16>
    %c1_i32_370 = arith.constant 1 : i32
    %c0_i32_371 = arith.constant 0 : i32
    %c0_i32_372 = arith.constant 0 : i32
    %375 = tpu.memref_slice %arg13[%c1_i32_370, %c0_i32_371, %c0_i32_372] : memref<2x16x512xbf16, #tpu.memory_space<vmem>> -> memref<1x16x512xbf16, #tpu.memory_space<vmem>>
    %376 = tpu.memref_squeeze %375 : memref<1x16x512xbf16, #tpu.memory_space<vmem>> -> memref<16x512xbf16, #tpu.memory_space<vmem>>
    %c0_373 = arith.constant 0 : index
    %c143_374 = arith.constant 143 : index
    %377 = vector.load %376[%c0_373, %c143_374] : memref<16x512xbf16, #tpu.memory_space<vmem>>, vector<16x256xbf16>
    %378 = vector.broadcast %0 : vector<1x256xbf16> to vector<16x256xbf16>
    %379 = arith.mulf %377, %378 : vector<16x256xbf16>
    %c1_i32_375 = arith.constant 1 : i32
    %c0_i32_376 = arith.constant 0 : i32
    %c0_i32_377 = arith.constant 0 : i32
    %380 = tpu.memref_slice %arg13[%c1_i32_375, %c0_i32_376, %c0_i32_377] : memref<2x16x512xbf16, #tpu.memory_space<vmem>> -> memref<1x16x512xbf16, #tpu.memory_space<vmem>>
    %381 = tpu.memref_squeeze %380 : memref<1x16x512xbf16, #tpu.memory_space<vmem>> -> memref<16x512xbf16, #tpu.memory_space<vmem>>
    %c0_378 = arith.constant 0 : index
    %c144_379 = arith.constant 144 : index
    %382 = vector.load %381[%c0_378, %c144_379] : memref<16x512xbf16, #tpu.memory_space<vmem>>, vector<16x256xbf16>
    %c1_i32_380 = arith.constant 1 : i32
    %c0_i32_381 = arith.constant 0 : i32
    %c0_i32_382 = arith.constant 0 : i32
    %383 = tpu.memref_slice %arg13[%c1_i32_380, %c0_i32_381, %c0_i32_382] : memref<2x16x512xbf16, #tpu.memory_space<vmem>> -> memref<1x16x512xbf16, #tpu.memory_space<vmem>>
    %384 = tpu.memref_squeeze %383 : memref<1x16x512xbf16, #tpu.memory_space<vmem>> -> memref<16x512xbf16, #tpu.memory_space<vmem>>
    %c0_383 = arith.constant 0 : index
    %c145_384 = arith.constant 145 : index
    %385 = vector.load %384[%c0_383, %c145_384] : memref<16x512xbf16, #tpu.memory_space<vmem>>, vector<16x256xbf16>
    %386 = vector.broadcast %1 : vector<1x256xbf16> to vector<16x256xbf16>
    %387 = arith.mulf %385, %386 : vector<16x256xbf16>
    %388 = tpu.concatenate %353, %356, %361, %366, %369, %374, %379, %382, %387 in 0 : vector<16x256xbf16>, vector<16x256xbf16>, vector<16x256xbf16>, vector<16x256xbf16>, vector<16x256xbf16>, vector<16x256xbf16>, vector<16x256xbf16>, vector<16x256xbf16>, vector<16x256xbf16> -> vector<144x256xbf16>
    %cst_385 = arith.constant dense<0.000000e+00> : vector<4x256xf32>
    %389 = tpu.matmul %3, %388, %cst_385 {dimension_numbers = #tpu.dot_dimension_numbers<[1], [0], [0], [1], [0, 0, 1, 1], [], []>} : vector<4x144xbf16>, vector<144x256xbf16>, vector<4x256xf32> -> vector<4x256xf32>
    %cst_386 = arith.constant dense<0.000000e+00> : vector<4xf32>
    %390 = vector.multi_reduction <add>, %389, %cst_386 [1] : vector<4x256xf32> to vector<4xf32>
    %391 = vector.shape_cast %390 : vector<4xf32> to vector<4x1xf32>
    %cst_387 = arith.constant 2.560000e+02 : f32
    %392 = vector.broadcast %cst_387 : f32 to vector<4x1xf32>
    %393 = arith.divf %391, %392 : vector<4x1xf32>
    %394 = vector.broadcast %393 : vector<4x1xf32> to vector<4x256xf32>
    %395 = arith.subf %389, %394 : vector<4x256xf32>
    %396 = arith.mulf %395, %395 : vector<4x256xf32>
    %cst_388 = arith.constant dense<0.000000e+00> : vector<4xf32>
    %397 = vector.multi_reduction <add>, %396, %cst_388 [1] : vector<4x256xf32> to vector<4xf32>
    %398 = vector.shape_cast %397 : vector<4xf32> to vector<4x1xf32>
    %cst_389 = arith.constant 2.560000e+02 : f32
    %399 = vector.broadcast %cst_389 : f32 to vector<4x1xf32>
    %400 = arith.divf %398, %399 : vector<4x1xf32>
    %cst_390 = arith.constant 9.99999974E-6 : f32
    %401 = vector.broadcast %cst_390 : f32 to vector<4x1xf32>
    %402 = arith.addf %400, %401 : vector<4x1xf32>
    %403 = math.rsqrt %402 : vector<4x1xf32>
    %404 = vector.broadcast %403 : vector<4x1xf32> to vector<4x256xf32>
    %405 = arith.mulf %395, %404 : vector<4x256xf32>
    %cst_391 = arith.constant 0.000000e+00 : f32
    %406 = vector.broadcast %cst_391 : f32 to vector<4x256xf32>
    %407 = arith.cmpf oge, %405, %406 : vector<4x256xf32>
    %cst_392 = arith.constant 0.00999999977 : f32
    %408 = vector.broadcast %cst_392 : f32 to vector<4x256xf32>
    %409 = arith.mulf %408, %405 : vector<4x256xf32>
    %410 = arith.select %407, %405, %409 : vector<4x256xi1>, vector<4x256xf32>
    %411 = arith.truncf %410 : vector<4x256xf32> to vector<4x256xbf16>
    %cst_393 = arith.constant dense<0.000000e+00> : vector<4x256xf32>
    %412 = tpu.matmul %4, %411, %cst_393 {dimension_numbers = #tpu.dot_dimension_numbers<[1], [0], [0], [1], [0, 0, 1, 1], [], []>} : vector<4x4xbf16>, vector<4x256xbf16>, vector<4x256xf32> -> vector<4x256xf32>
    %cst_394 = arith.constant dense<0.000000e+00> : vector<4xf32>
    %413 = vector.multi_reduction <add>, %412, %cst_394 [1] : vector<4x256xf32> to vector<4xf32>
    %414 = vector.shape_cast %413 : vector<4xf32> to vector<4x1xf32>
    %cst_395 = arith.constant 2.560000e+02 : f32
    %415 = vector.broadcast %cst_395 : f32 to vector<4x1xf32>
    %416 = arith.divf %414, %415 : vector<4x1xf32>
    %417 = vector.broadcast %416 : vector<4x1xf32> to vector<4x256xf32>
    %418 = arith.subf %412, %417 : vector<4x256xf32>
    %419 = arith.mulf %418, %418 : vector<4x256xf32>
    %cst_396 = arith.constant dense<0.000000e+00> : vector<4xf32>
    %420 = vector.multi_reduction <add>, %419, %cst_396 [1] : vector<4x256xf32> to vector<4xf32>
    %421 = vector.shape_cast %420 : vector<4xf32> to vector<4x1xf32>
    %cst_397 = arith.constant 2.560000e+02 : f32
    %422 = vector.broadcast %cst_397 : f32 to vector<4x1xf32>
    %423 = arith.divf %421, %422 : vector<4x1xf32>
    %cst_398 = arith.constant 9.99999974E-6 : f32
    %424 = vector.broadcast %cst_398 : f32 to vector<4x1xf32>
    %425 = arith.addf %423, %424 : vector<4x1xf32>
    %426 = math.rsqrt %425 : vector<4x1xf32>
    %427 = vector.broadcast %426 : vector<4x1xf32> to vector<4x256xf32>
    %428 = arith.mulf %418, %427 : vector<4x256xf32>
    %cst_399 = arith.constant 0.000000e+00 : f32
    %429 = vector.broadcast %cst_399 : f32 to vector<4x256xf32>
    %430 = arith.cmpf oge, %428, %429 : vector<4x256xf32>
    %cst_400 = arith.constant 0.00999999977 : f32
    %431 = vector.broadcast %cst_400 : f32 to vector<4x256xf32>
    %432 = arith.mulf %431, %428 : vector<4x256xf32>
    %433 = arith.select %430, %428, %432 : vector<4x256xi1>, vector<4x256xf32>
    %c1_401 = arith.constant 1 : index
    %c0_402 = arith.constant 0 : index
    %c0_403 = arith.constant 0 : index
    %434 = vector.load %arg10[%c1_401, %c0_402, %c0_403] : memref<2x4x256xf32, #tpu.memory_space<vmem>>, vector<1x4x256xf32>
    %435 = vector.shape_cast %434 : vector<1x4x256xf32> to vector<4x256xf32>
    %436 = vector.shape_cast %433 : vector<4x256xf32> to vector<1x4x256xf32>
    tpu.vector_store %arg10[%c1_401, %c0_402, %c0_403], %436 {strides = array<i32>} : memref<2x4x256xf32, #tpu.memory_space<vmem>>, vector<1x4x256xf32>,
    return
  }
  func.func @transform_0(%arg0: i32) -> (i32, i32, i32) {
    %c0_i32 = arith.constant 0 : i32
    %c0_i32_0 = arith.constant 0 : i32
    %c0_i32_1 = arith.constant 0 : i32
    return %arg0, %c0_i32, %c0_i32_0 : i32, i32, i32
  }
  func.func @transform_1(%arg0: i32) -> (i32, i32, i32) {
    %c0_i32 = arith.constant 0 : i32
    %c0_i32_0 = arith.constant 0 : i32
    %c0_i32_1 = arith.constant 0 : i32
    return %arg0, %c0_i32, %c0_i32_0 : i32, i32, i32
  }
  func.func @transform_2(%arg0: i32) -> (i32, i32, i32) {
    %c0_i32 = arith.constant 0 : i32
    %c0_i32_0 = arith.constant 0 : i32
    %c0_i32_1 = arith.constant 0 : i32
    %c0_i32_2 = arith.constant 0 : i32
    return %c0_i32, %c0_i32_0, %c0_i32_1 : i32, i32, i32
  }
  func.func @transform_3(%arg0: i32) -> (i32, i32) {
    %c0_i32 = arith.constant 0 : i32
    %c0_i32_0 = arith.constant 0 : i32
    %c0_i32_1 = arith.constant 0 : i32
    return %c0_i32, %c0_i32_0 : i32, i32
  }
  func.func @transform_4(%arg0: i32) -> (i32, i32) {
    %c0_i32 = arith.constant 0 : i32
    %c0_i32_0 = arith.constant 0 : i32
    %c0_i32_1 = arith.constant 0 : i32
    return %c0_i32, %c0_i32_0 : i32, i32
  }
  func.func @transform_5(%arg0: i32) -> (i32, i32) {
    %c0_i32 = arith.constant 0 : i32
    %c0_i32_0 = arith.constant 0 : i32
    %c0_i32_1 = arith.constant 0 : i32
    return %c0_i32, %c0_i32_0 : i32, i32
  }
  func.func @transform_6(%arg0: i32) -> (i32, i32) {
    %c0_i32 = arith.constant 0 : i32
    %c0_i32_0 = arith.constant 0 : i32
    %c0_i32_1 = arith.constant 0 : i32
    return %c0_i32, %c0_i32_0 : i32, i32
  }
  func.func @transform_7(%arg0: i32) -> (i32, i32) {
    %c0_i32 = arith.constant 0 : i32
    %c0_i32_0 = arith.constant 0 : i32
    %c0_i32_1 = arith.constant 0 : i32
    return %c0_i32, %c0_i32_0 : i32, i32
  }
  func.func @transform_8(%arg0: i32) -> (i32, i32) {
    %c0_i32 = arith.constant 0 : i32
    %c0_i32_0 = arith.constant 0 : i32
    %c0_i32_1 = arith.constant 0 : i32
    return %c0_i32, %c0_i32_0 : i32, i32
  }
  func.func @transform_9(%arg0: i32) -> (i32, i32, i32) {
    %c0_i32 = arith.constant 0 : i32
    %c0_i32_0 = arith.constant 0 : i32
    %c0_i32_1 = arith.constant 0 : i32
    return %arg0, %c0_i32, %c0_i32_0 : i32, i32, i32
  }
}

</mosaic_0001>

<llo_original>
// kernel: mul.5
$region0: #{mul.5}
  #allocation0 [shape = 's32[1]{0}', space=sflag, size = 0x4, scoped, tag = 'scoped memory for mul.5']
  %s0 = inlined_call_operand.vmem [shape: f32[4], index: 0, kind: input, shape index: {}]
  %s1 = inlined_call_operand.vmem [shape: f32[4,256], index: 1, kind: output, shape index: {}]
  // Predicated region
  $region2: #{mul.5} parent=0 // pred_check
    _
  $region3: #{mul.5} parent=0 // pred_check_branch
    %3 = sbr.rel (0) target = $region5
  $region4: #{mul.5} parent=0 // pred_region
    _
  $region5: #{mul.5} parent=0 // pred_fallthru
    _
  %v4 = vld [vmem:[%s0] ss:$0 sm:$0xff]
  %v5 = vlaneseq
  %v6 = vshrl.u32 %v5, 7
  %8 = vset.pattern.permute.xlu0 %v6
  %9 = vperm.xlu0 %8, %v4
  %v10 = vpop.permute.xlu0 %9
  %11 = vst [vmem:[%s1] sm:$0xf] %v10
  %s12 = scalar_lea.vmem %s1, 4
  %13 = vst [vmem:[%s12] sm:$0xf] %v10

// kernel: up_forward.1
$region0: #{up_forward.1}
  #allocation0 [shape = 'u32[]', space=smem, size = 0x4, offset = 0x4, fixed_abs, tag = 'smem constant byte address 0x4 - core index']
  #allocation1 [shape = 'u32[72,128]{1,0:T(1,128)}', space=vmem, size = 0x9000, scoped, tag = 'internal scratch']
  #allocation2 [shape = 'bf16[2,4,256]{2,1,0:T(4,128)(2,1)}', space=vmem, size = 0x1000, scoped, tag = 'scratch operand']
  #allocation3 [shape = 'bf16[2,16,512]{2,1,0:T(8,128)(2,1)}', space=vmem, size = 0x8000, scoped, tag = 'scratch operand']
  #allocation4 [shape = 'bf16[2,16,512]{2,1,0:T(8,128)(2,1)}', space=vmem, size = 0x8000, scoped, tag = 'scratch operand']
  %s0 = inlined_call_operand.vmem [shape: bf16[4,8,64], index: 0, kind: input, shape index: {}]
  %s1 = inlined_call_operand.vmem [shape: bf16[4,4,256], index: 1, kind: input, shape index: {}]
  %s2 = inlined_call_operand.vmem [shape: bf16[4,4,8], index: 2, kind: input, shape index: {}]
  %s3 = inlined_call_operand.vmem [shape: bf16[256,256], index: 3, kind: input, shape index: {}]
  %s4 = inlined_call_operand.vmem [shape: f32[4,256], index: 4, kind: input, shape index: {}]
  %s5 = inlined_call_operand.vmem [shape: bf16[2,256], index: 5, kind: input, shape index: {}]
  %s6 = inlined_call_operand.vmem [shape: bf16[16,144], index: 6, kind: input, shape index: {}]
  %s7 = inlined_call_operand.vmem [shape: bf16[4,144], index: 7, kind: input, shape index: {}]
  %s8 = inlined_call_operand.vmem [shape: bf16[4,4], index: 8, kind: input, shape index: {}]
  %s9 = inlined_call_operand.vmem [shape: f32[4,4,256], index: 9, kind: output, shape index: {}]
  %s10 = sld [smem:[#allocation0]]
  $region69: #{up_forward.1} parent=0
    _
  %s12 = ssub.s32 1, %s10
  %s13 = scalar_select 0, %s12, %s10
  loop: start=0, step=1, limit=4
  $region2: #{up_forward.1} parent=0 // loop_pre_header
    _
  $region3: #{up_forward.1} parent=0 // loop_header
    %s15 = sphi 0, %s19
    %p16 = scmp.ge.s32.totalorder %s15, 4
    %s25 = sphi 0, %s27
    %s28 = sphi 0, %s25
    %s29 = sphi 0, %s28
    %s45 = sphi 0, %s29
    %s51 = sphi 0, %s53
    %s54 = sphi 0, %s51
    %s55 = sphi 0, %s54
    %s71 = sphi 0, %s55
    %s75 = sphi 0, %s75
    %s77 = sphi 0, %s75
    %s78 = sphi 0, %s77
    %s92 = sphi 0, %s78
    %s96 = sphi 0, %s96
    %s98 = sphi 0, %s96
    %s99 = sphi 0, %s98
    %s113 = sphi 0, %s99
    %s117 = sphi 0, %s117
    %s119 = sphi 0, %s117
    %s120 = sphi 0, %s119
    %s134 = sphi 0, %s120
    %s138 = sphi 0, %s138
    %s140 = sphi 0, %s138
    %s141 = sphi 0, %s140
    %s155 = sphi 0, %s141
    %s159 = sphi 0, %s159
    %s161 = sphi 0, %s159
    %s162 = sphi 0, %s161
    %s176 = sphi 0, %s162
    %s180 = sphi 0, %s180
    %s182 = sphi 0, %s180
    %s183 = sphi 0, %s182
    %s197 = sphi 0, %s183
    %s201 = sphi 0, %s201
    %s203 = sphi 0, %s201
    %s204 = sphi 0, %s203
    %s218 = sphi 0, %s204
    %s224 = sphi 0, %s226
    %s227 = sphi 0, %s224
    %s228 = sphi 0, %s227
    %s244 = sphi 0, %s228
  $region4: #{up_forward.1} parent=0 // loop_header_branch
    %18 = sbr.rel (%p16) target = $region8
  $region5: #{up_forward.1} parent=0 // loop_body
    %s20 = ssub.s32 %s15, 1
    %s21 = ssub.s32 %s15, 2
    %s22 = sadd.s32 %s15, 1
    %s23 = ssub.s32 %s15, %s22
    %p24 = scmp.eq.s32.totalorder %s23, 0
    %s26 = sadd.s32 %s25, 1
    %s27 = scalar_select %p24, %s25, %s26
    %p30 = pneg %p24
    %p31 = scmp.eq.s32.totalorder %s15, 1
    %p32 = por %p30, %p31
    %p33 = scmp.ne.s32.totalorder %s25, %s28
    %p34 = scmp.eq.s32.totalorder %s15, 0
    %p35 = por %p33, %p34
    %p36 = scmp.ne.s32.totalorder %s25, %s28
    %p37 = scmp.eq.s32.totalorder %s20, 1
    %p38 = por %p36, %p37
    %p39 = scmp.ne.s32.totalorder %s28, %s29
    %p40 = scmp.eq.s32.totalorder %s20, 0
    %p41 = por %p39, %p40
    %p42 = scmp.ne.s32.totalorder %s28, %s29
    %p43 = scmp.eq.s32.totalorder %s21, 1
    %p44 = por %p42, %p43
    %p46 = scmp.ne.s32.totalorder %s29, %s45
    %p47 = scmp.eq.s32.totalorder %s21, 0
    %p48 = por %p46, %p47
    %s49 = ssub.s32 %s15, %s22
    %p50 = scmp.eq.s32.totalorder %s49, 0
    %s52 = sadd.s32 %s51, 1
    %s53 = scalar_select %p50, %s51, %s52
    %p56 = pneg %p50
    %p57 = scmp.eq.s32.totalorder %s15, 1
    %p58 = por %p56, %p57
    %p59 = scmp.ne.s32.totalorder %s51, %s54
    %p60 = scmp.eq.s32.totalorder %s15, 0
    %p61 = por %p59, %p60
    %p62 = scmp.ne.s32.totalorder %s51, %s54
    %p63 = scmp.eq.s32.totalorder %s20, 1
    %p64 = por %p62, %p63
    %p65 = scmp.ne.s32.totalorder %s54, %s55
    %p66 = scmp.eq.s32.totalorder %s20, 0
    %p67 = por %p65, %p66
    %p68 = scmp.ne.s32.totalorder %s54, %s55
    %p69 = scmp.eq.s32.totalorder %s21, 1
    %p70 = por %p68, %p69
    %p72 = scmp.ne.s32.totalorder %s55, %s71
    %p73 = scmp.eq.s32.totalorder %s21, 0
    %p74 = por %p72, %p73
    %s76 = sadd.s32 %s75, 1
    %p79 = scmp.eq.s32.totalorder %s15, 1
    %p80 = scmp.ne.s32.totalorder %s75, %s77
    %p81 = scmp.eq.s32.totalorder %s15, 0
    %p82 = por %p80, %p81
    %p83 = scmp.ne.s32.totalorder %s75, %s77
    %p84 = scmp.eq.s32.totalorder %s20, 1
    %p85 = por %p83, %p84
    %p86 = scmp.ne.s32.totalorder %s77, %s78
    %p87 = scmp.eq.s32.totalorder %s20, 0
    %p88 = por %p86, %p87
    %p89 = scmp.ne.s32.totalorder %s77, %s78
    %p90 = scmp.eq.s32.totalorder %s21, 1
    %p91 = por %p89, %p90
    %p93 = scmp.ne.s32.totalorder %s78, %s92
    %p94 = scmp.eq.s32.totalorder %s21, 0
    %p95 = por %p93, %p94
    %s97 = sadd.s32 %s96, 1
    %p100 = scmp.eq.s32.totalorder %s15, 1
    %p101 = scmp.ne.s32.totalorder %s96, %s98
    %p102 = scmp.eq.s32.totalorder %s15, 0
    %p103 = por %p101, %p102
    %p104 = scmp.ne.s32.totalorder %s96, %s98
    %p105 = scmp.eq.s32.totalorder %s20, 1
    %p106 = por %p104, %p105
    %p107 = scmp.ne.s32.totalorder %s98, %s99
    %p108 = scmp.eq.s32.totalorder %s20, 0
    %p109 = por %p107, %p108
    %p110 = scmp.ne.s32.totalorder %s98, %s99
    %p111 = scmp.eq.s32.totalorder %s21, 1
    %p112 = por %p110, %p111
    %p114 = scmp.ne.s32.totalorder %s99, %s113
    %p115 = scmp.eq.s32.totalorder %s21, 0
    %p116 = por %p114, %p115
    %s118 = sadd.s32 %s117, 1
    %p121 = scmp.eq.s32.totalorder %s15, 1
    %p122 = scmp.ne.s32.totalorder %s117, %s119
    %p123 = scmp.eq.s32.totalorder %s15, 0
    %p124 = por %p122, %p123
    %p125 = scmp.ne.s32.totalorder %s117, %s119
    %p126 = scmp.eq.s32.totalorder %s20, 1
    %p127 = por %p125, %p126
    %p128 = scmp.ne.s32.totalorder %s119, %s120
    %p129 = scmp.eq.s32.totalorder %s20, 0
    %p130 = por %p128, %p129
    %p131 = scmp.ne.s32.totalorder %s119, %s120
    %p132 = scmp.eq.s32.totalorder %s21, 1
    %p133 = por %p131, %p132
    %p135 = scmp.ne.s32.totalorder %s120, %s134
    %p136 = scmp.eq.s32.totalorder %s21, 0
    %p137 = por %p135, %p136
    %s139 = sadd.s32 %s138, 1
    %p142 = scmp.eq.s32.totalorder %s15, 1
    %p143 = scmp.ne.s32.totalorder %s138, %s140
    %p144 = scmp.eq.s32.totalorder %s15, 0
    %p145 = por %p143, %p144
    %p146 = scmp.ne.s32.totalorder %s138, %s140
    %p147 = scmp.eq.s32.totalorder %s20, 1
    %p148 = por %p146, %p147
    %p149 = scmp.ne.s32.totalorder %s140, %s141
    %p150 = scmp.eq.s32.totalorder %s20, 0
    %p151 = por %p149, %p150
    %p152 = scmp.ne.s32.totalorder %s140, %s141
    %p153 = scmp.eq.s32.totalorder %s21, 1
    %p154 = por %p152, %p153
    %p156 = scmp.ne.s32.totalorder %s141, %s155
    %p157 = scmp.eq.s32.totalorder %s21, 0
    %p158 = por %p156, %p157
    %s160 = sadd.s32 %s159, 1
    %p163 = scmp.eq.s32.totalorder %s15, 1
    %p164 = scmp.ne.s32.totalorder %s159, %s161
    %p165 = scmp.eq.s32.totalorder %s15, 0
    %p166 = por %p164, %p165
    %p167 = scmp.ne.s32.totalorder %s159, %s161
    %p168 = scmp.eq.s32.totalorder %s20, 1
    %p169 = por %p167, %p168
    %p170 = scmp.ne.s32.totalorder %s161, %s162
    %p171 = scmp.eq.s32.totalorder %s20, 0
    %p172 = por %p170, %p171
    %p173 = scmp.ne.s32.totalorder %s161, %s162
    %p174 = scmp.eq.s32.totalorder %s21, 1
    %p175 = por %p173, %p174
    %p177 = scmp.ne.s32.totalorder %s162, %s176
    %p178 = scmp.eq.s32.totalorder %s21, 0
    %p179 = por %p177, %p178
    %s181 = sadd.s32 %s180, 1
    %p184 = scmp.eq.s32.totalorder %s15, 1
    %p185 = scmp.ne.s32.totalorder %s180, %s182
    %p186 = scmp.eq.s32.totalorder %s15, 0
    %p187 = por %p185, %p186
    %p188 = scmp.ne.s32.totalorder %s180, %s182
    %p189 = scmp.eq.s32.totalorder %s20, 1
    %p190 = por %p188, %p189
    %p191 = scmp.ne.s32.totalorder %s182, %s183
    %p192 = scmp.eq.s32.totalorder %s20, 0
    %p193 = por %p191, %p192
    %p194 = scmp.ne.s32.totalorder %s182, %s183
    %p195 = scmp.eq.s32.totalorder %s21, 1
    %p196 = por %p194, %p195
    %p198 = scmp.ne.s32.totalorder %s183, %s197
    %p199 = scmp.eq.s32.totalorder %s21, 0
    %p200 = por %p198, %p199
    %s202 = sadd.s32 %s201, 1
    %p205 = scmp.eq.s32.totalorder %s15, 1
    %p206 = scmp.ne.s32.totalorder %s201, %s203
    %p207 = scmp.eq.s32.totalorder %s15, 0
    %p208 = por %p206, %p207
    %p209 = scmp.ne.s32.totalorder %s201, %s203
    %p210 = scmp.eq.s32.totalorder %s20, 1
    %p211 = por %p209, %p210
    %p212 = scmp.ne.s32.totalorder %s203, %s204
    %p213 = scmp.eq.s32.totalorder %s20, 0
    %p214 = por %p212, %p213
    %p215 = scmp.ne.s32.totalorder %s203, %s204
    %p216 = scmp.eq.s32.totalorder %s21, 1
    %p217 = por %p215, %p216
    %p219 = scmp.ne.s32.totalorder %s204, %s218
    %p220 = scmp.eq.s32.totalorder %s21, 0
    %p221 = por %p219, %p220
    %s222 = ssub.s32 %s15, %s22
    %p223 = scmp.eq.s32.totalorder %s222, 0
    %s225 = sadd.s32 %s224, 1
    %s226 = scalar_select %p223, %s224, %s225
    %p229 = pneg %p223
    %p230 = scmp.eq.s32.totalorder %s15, 1
    %p231 = por %p229, %p230
    %p232 = scmp.ne.s32.totalorder %s224, %s227
    %p233 = scmp.eq.s32.totalorder %s15, 0
    %p234 = por %p232, %p233
    %p235 = scmp.ne.s32.totalorder %s224, %s227
    %p236 = scmp.eq.s32.totalorder %s20, 1
    %p237 = por %p235, %p236
    %p238 = scmp.ne.s32.totalorder %s227, %s228
    %p239 = scmp.eq.s32.totalorder %s20, 0
    %p240 = por %p238, %p239
    %p241 = scmp.ne.s32.totalorder %s227, %s228
    %p242 = scmp.eq.s32.totalorder %s21, 1
    %p243 = por %p241, %p242
    %p245 = scmp.ne.s32.totalorder %s228, %s244
    %p246 = scmp.eq.s32.totalorder %s21, 0
    %p247 = por %p245, %p246
    %p248 = scmp.le.s32.totalorder 1, %s15
    %p249 = scmp.lt.s32.totalorder %s15, 3
    %p250 = pnand %p248, %p249
    %p251 = pneg %p250
    // Predicated region
    $region9: #{up_forward.1} parent=5 // pred_check
      _
    $region10: #{up_forward.1} parent=5 // pred_check_branch
      %253 = sbr.rel (%p250) target = $region12
    $region11: #{up_forward.1} parent=5 // pred_region
      %s254 = ssub.s32 %s15, 1
      // Predicated region
      $region13: #{up_forward.1} parent=11 // pred_check
        %p255 = pneg %p88
      $region14: #{up_forward.1} parent=11 // pred_check_branch
        %257 = sbr.rel (%p255) target = $region16
      $region15: #{up_forward.1} parent=11 // pred_region
        _
      $region16: #{up_forward.1} parent=11 // pred_fallthru
        _
      // Predicated region
      $region17: #{up_forward.1} parent=11 // pred_check
        %p258 = pneg %p109
      $region18: #{up_forward.1} parent=11 // pred_check_branch
        %260 = sbr.rel (%p258) target = $region20
      $region19: #{up_forward.1} parent=11 // pred_region
        _
      $region20: #{up_forward.1} parent=11 // pred_fallthru
        _
      // Predicated region
      $region21: #{up_forward.1} parent=11 // pred_check
        %p261 = pneg %p130
      $region22: #{up_forward.1} parent=11 // pred_check_branch
        %263 = sbr.rel (%p261) target = $region24
      $region23: #{up_forward.1} parent=11 // pred_region
        _
      $region24: #{up_forward.1} parent=11 // pred_fallthru
        _
      // Predicated region
      $region25: #{up_forward.1} parent=11 // pred_check
        %p264 = pneg %p151
      $region26: #{up_forward.1} parent=11 // pred_check_branch
        %266 = sbr.rel (%p264) target = $region28
      $region27: #{up_forward.1} parent=11 // pred_region
        _
      $region28: #{up_forward.1} parent=11 // pred_fallthru
        _
      // Predicated region
      $region29: #{up_forward.1} parent=11 // pred_check
        %p267 = pneg %p172
      $region30: #{up_forward.1} parent=11 // pred_check_branch
        %269 = sbr.rel (%p267) target = $region32
      $region31: #{up_forward.1} parent=11 // pred_region
        _
      $region32: #{up_forward.1} parent=11 // pred_fallthru
        _
      // Predicated region
      $region33: #{up_forward.1} parent=11 // pred_check
        %p270 = pneg %p193
      $region34: #{up_forward.1} parent=11 // pred_check_branch
        %272 = sbr.rel (%p270) target = $region36
      $region35: #{up_forward.1} parent=11 // pred_region
        _
      $region36: #{up_forward.1} parent=11 // pred_fallthru
        _
      // Predicated region
      $region37: #{up_forward.1} parent=11 // pred_check
        %p273 = pneg %p214
      $region38: #{up_forward.1} parent=11 // pred_check_branch
        %275 = sbr.rel (%p273) target = $region40
      $region39: #{up_forward.1} parent=11 // pred_region
        _
      $region40: #{up_forward.1} parent=11 // pred_fallthru
        _
    $region12: #{up_forward.1} parent=5 // pred_fallthru
      _
    %p276 = scmp.lt.s32.totalorder %s15, 2
    // Predicated region
    $region41: #{up_forward.1} parent=5 // pred_check
      %p277 = pneg %p276
    $region42: #{up_forward.1} parent=5 // pred_check_branch
      %279 = sbr.rel (%p277) target = $region44
    $region43: #{up_forward.1} parent=5 // pred_region
      // Predicated region
      $region45: #{up_forward.1} parent=43 // pred_check
        %p280 = pneg %p35
      $region46: #{up_forward.1} parent=43 // pred_check_branch
        %282 = sbr.rel (%p280) target = $region48
      $region47: #{up_forward.1} parent=43 // pred_region
        %s283 = smul.u32 2, %s15
        %p284 = scmp.lt.s32.totalorder %s283, 3
        %s285 = scalar_select %p284, %s283, 3
        %s286 = smul.addr %s285, 4
        %s287 = scalar_lea.vmem %s0, %s286
        %s288 = smul.u32 2, %s15
      $region48: #{up_forward.1} parent=43 // pred_fallthru
        _
      // Predicated region
      $region49: #{up_forward.1} parent=43 // pred_check
        %p289 = pneg %p61
      $region50: #{up_forward.1} parent=43 // pred_check_branch
        %291 = sbr.rel (%p289) target = $region52
      $region51: #{up_forward.1} parent=43 // pred_region
        %s292 = smul.u32 2, %s15
        %p293 = scmp.lt.s32.totalorder %s292, 3
        %s294 = scalar_select %p293, %s292, 3
        %s295 = smul.addr %s294, 2
        %s296 = smul.addr %s295, 2
        %s297 = scalar_lea.vmem %s1, %s296
        %s298 = smul.u32 2, %s15
      $region52: #{up_forward.1} parent=43 // pred_fallthru
        _
    $region44: #{up_forward.1} parent=5 // pred_fallthru
      _
    %p299 = scmp.le.s32.totalorder 1, %s15
    %p300 = scmp.lt.s32.totalorder %s15, 3
    %p301 = pnand %p299, %p300
    %p302 = pneg %p301
    // Predicated region
    $region53: #{up_forward.1} parent=5 // pred_check
      _
    $region54: #{up_forward.1} parent=5 // pred_check_branch
      %304 = sbr.rel (%p301) target = $region56
    $region55: #{up_forward.1} parent=5 // pred_region
      %s305 = ssub.s32 %s15, 1
      %s306 = smul.u32 2, %s20
      %p307 = scmp.lt.s32.totalorder %s306, 3
      %s308 = scalar_select %p307, %s306, 3
      %s309 = smul.addr %s308, 4
      %s310 = scalar_lea.vmem %s0, %s309
      %p311 = pneg %p41
      %p312 = pneg %p38
      %s313 = smul.u32 2, %s20
      %p314 = scmp.lt.s32.totalorder %s313, 3
      %s315 = scalar_select %p314, %s313, 3
      %s316 = smul.addr %s315, 2
      %s317 = smul.addr %s316, 2
      %s318 = scalar_lea.vmem %s1, %s317
      %p319 = pneg %p67
      %p320 = pneg %p64
      %p321 = pneg %p88
      %p322 = pneg %p85
      %p323 = pneg %p109
      %p324 = pneg %p106
      %p325 = pneg %p130
      %p326 = pneg %p127
      %p327 = pneg %p151
      %p328 = pneg %p148
      %p329 = pneg %p172
      %p330 = pneg %p169
      %p331 = pneg %p193
      %p332 = pneg %p190
      %p333 = pneg %p214
      %p334 = pneg %p211
      %p335 = pneg %p240
      %p336 = pneg %p237
      %s337 = smul.u32 2, %s20
      %p338 = scmp.lt.s32.totalorder %s337, 3
      %s339 = scalar_select %p338, %s337, 3
      %s340 = smul.addr %s339, 2
      %s341 = smul.addr %s340, 4
      %s342 = scalar_lea.vmem %s9, %s341
      %s343 = smul.u32 2, %s20
      %p344 = scmp.lt.s32.totalorder %s343, 3
      %s345 = scalar_select %p344, %s343, 3
      %s346 = smul.addr %s345, 4
      %s347 = scalar_lea.vmem %s0, %s346
      %s348 = smul.u32 2, %s20
      %s349 = smul.u32 2, %s20
      %p350 = scmp.lt.s32.totalorder %s349, 3
      %s351 = scalar_select %p350, %s349, 3
      %s352 = smul.addr %s351, 2
      %s353 = smul.addr %s352, 2
      %s354 = scalar_lea.vmem %s1, %s353
      %s355 = smul.u32 2, %s20
      %s356 = smul.u32 2, %s20
      %p357 = scmp.lt.s32.totalorder %s356, 3
      %s358 = scalar_select %p357, %s356, 3
      %s359 = smul.addr %s358, 2
      %s360 = smul.addr %s359, 4
      %s361 = scalar_lea.vmem %s9, %s360
      %s362 = smul.u32 2, %s20
      %v364 = vld [vmem:[%s5] sm:$0x3]
      %v365 = vld [vmem:[%s6] sm:$0xff]
      %v366 = vld [vmem:[%s6 + $0x8] sm:$0xff]
      %v367 = vld [vmem:[%s7] sm:$0xf]
      %v368 = vld [vmem:[%s8] sm:$0x3]
      %v369 = vld [vmem:[%s3] sm:$0xff]
      %v370 = vld [vmem:[%s3 + $0x8] sm:$0xff]
      %v371 = vld [vmem:[%s3 + $0x10] sm:$0xff]
      %v372 = vld [vmem:[%s3 + $0x18] sm:$0xff]
      %v373 = vld [vmem:[%s3 + $0x20] sm:$0xff]
      %v374 = vld [vmem:[%s3 + $0x28] sm:$0xff]
      %v375 = vld [vmem:[%s3 + $0x30] sm:$0xff]
      %v376 = vld [vmem:[%s3 + $0x38] sm:$0xff]
      %v377 = vld [vmem:[%s3 + $0x40] sm:$0xff]
      %v378 = vld [vmem:[%s3 + $0x48] sm:$0xff]
      %v379 = vld [vmem:[%s3 + $0x50] sm:$0xff]
      %v380 = vld [vmem:[%s3 + $0x58] sm:$0xff]
      %v381 = vld [vmem:[%s3 + $0x60] sm:$0xff]
      %v382 = vld [vmem:[%s3 + $0x68] sm:$0xff]
      %v383 = vld [vmem:[%s3 + $0x70] sm:$0xff]
      %v384 = vld [vmem:[%s3 + $0x78] sm:$0xff]
      %v385 = vld [vmem:[%s3 + $0x80] sm:$0xff]
      %v386 = vld [vmem:[%s3 + $0x88] sm:$0xff]
      %v387 = vld [vmem:[%s3 + $0x90] sm:$0xff]
      %v388 = vld [vmem:[%s3 + $0x98] sm:$0xff]
      %v389 = vld [vmem:[%s3 + $0xa0] sm:$0xff]
      %v390 = vld [vmem:[%s3 + $0xa8] sm:$0xff]
      %v391 = vld [vmem:[%s3 + $0xb0] sm:$0xff]
      %v392 = vld [vmem:[%s3 + $0xb8] sm:$0xff]
      %v393 = vld [vmem:[%s3 + $0xc0] sm:$0xff]
      %v394 = vld [vmem:[%s3 + $0xc8] sm:$0xff]
      %v395 = vld [vmem:[%s3 + $0xd0] sm:$0xff]
      %v396 = vld [vmem:[%s3 + $0xd8] sm:$0xff]
      %v397 = vld [vmem:[%s3 + $0xe0] sm:$0xff]
      %v398 = vld [vmem:[%s3 + $0xe8] sm:$0xff]
      %v399 = vld [vmem:[%s3 + $0xf0] sm:$0xff]
      %v400 = vld [vmem:[%s3 + $0xf8] sm:$0xff]
      %v401 = vld [vmem:[%s4] sm:$0xff]
      %v402 = vld [vmem:[%s2] sm:$0x3]
      %s403 = scalar_lea.vmem %s2, 2
      %v404 = vld [vmem:[%s403] sm:$0x3]
      %s405 = scalar_lea.vmem %s2, 4
      %v406 = vld [vmem:[%s405] sm:$0x3]
      %s407 = scalar_lea.vmem %s2, 6
      %v408 = vld [vmem:[%s407] sm:$0x3]
      %v409 = vld [vmem:[%s347] sm:$0xf]
      %vm410 = vcmask 64512
      %v412 = vsel %vm410, %v402, 0
      %vm414 = vcmask 1043456
      %v416 = vsel %vm414, %v409, 0
      %418 = vmatpush.bf16.msra.mxu0 0
      %419 = vmatpush.bf16.msra.mxu0 0
      %420 = vmatpush.bf16.msra.mxu0 0
      %421 = vmatpush.bf16.msra.mxu0 0
      %422 = vmatpush.bf16.msra.mxu0 0
      %423 = vmatpush.bf16.msra.mxu0 0
      %424 = vmatpush.bf16.msra.mxu0 0
      %425 = vmatpush.bf16.msra.mxu0 %v416
      %426 = vmatmul.bf16.gmra.mxu0 %v412
      %v427 = vpop.f32.mrf.mxu0
      %v428 = vadd.f32 0.0, %v427
      %v429 = vpop.f32.mrf.mxu0
      %430 = vdwg.mxu0
      %v431 = vpack.c.bf16 %v428, %v428
      %vm432 = vcmask 517120
      %433 = vst.msk [vmem:[#allocation2] sm:$0x3] %vm432, %v431
      %v435 = vsel %vm410, %v404, 0
      %437 = vmatpush.bf16.msra.mxu0 0
      %438 = vmatpush.bf16.msra.mxu0 0
      %439 = vmatpush.bf16.msra.mxu0 0
      %440 = vmatpush.bf16.msra.mxu0 0
      %441 = vmatpush.bf16.msra.mxu0 0
      %442 = vmatpush.bf16.msra.mxu0 0
      %443 = vmatpush.bf16.msra.mxu0 0
      %444 = vmatpush.bf16.msra.mxu0 %v416
      %445 = vmatmul.bf16.gmra.mxu0 %v435
      %v446 = vpop.f32.mrf.mxu0
      %v447 = vadd.f32 0.0, %v446
      %v448 = vpop.f32.mrf.mxu0
      %449 = vdwg.mxu0
      %v450 = vpack.c.bf16 %v447, %v447
      %v452 = vrot.slane %v450, 2
      %vm453 = vcmask 1041408
      %v456 = vsel %vm453, %v450, %v452
      %458 = vrot.lane.b32.xlu0 %v456, 64
      %v459 = vpop.permute.xlu0 %458
      %vm461 = vcmask 1041920
      %462 = vst.msk [vmem:[#allocation2] sm:$0x3] %vm461, %v459
      %v464 = vsel %vm410, %v406, 0
      %466 = vmatpush.bf16.msra.mxu0 0
      %467 = vmatpush.bf16.msra.mxu0 0
      %468 = vmatpush.bf16.msra.mxu0 0
      %469 = vmatpush.bf16.msra.mxu0 0
      %470 = vmatpush.bf16.msra.mxu0 0
      %471 = vmatpush.bf16.msra.mxu0 0
      %472 = vmatpush.bf16.msra.mxu0 0
      %473 = vmatpush.bf16.msra.mxu0 %v416
      %474 = vmatmul.bf16.gmra.mxu0 %v464
      %v475 = vpop.f32.mrf.mxu0
      %v476 = vadd.f32 0.0, %v475
      %v477 = vpop.f32.mrf.mxu0
      %478 = vdwg.mxu0
      %v479 = vpack.c.bf16 %v476, %v476
      %480 = vst.msk [vmem:[#allocation2 + $0x2] sm:$0x3] %vm432, %v479
      %v482 = vsel %vm410, %v408, 0
      %484 = vmatpush.bf16.msra.mxu0 0
      %485 = vmatpush.bf16.msra.mxu0 0
      %486 = vmatpush.bf16.msra.mxu0 0
      %487 = vmatpush.bf16.msra.mxu0 0
      %488 = vmatpush.bf16.msra.mxu0 0
      %489 = vmatpush.bf16.msra.mxu0 0
      %490 = vmatpush.bf16.msra.mxu0 0
      %491 = vmatpush.bf16.msra.mxu0 %v416
      %492 = vmatmul.bf16.gmra.mxu0 %v482
      %v493 = vpop.f32.mrf.mxu0
      %v494 = vadd.f32 0.0, %v493
      %v495 = vpop.f32.mrf.mxu0
      %496 = vdwg.mxu0
      %v497 = vpack.c.bf16 %v494, %v494
      %v499 = vrot.slane %v497, 2
      %v502 = vsel %vm453, %v497, %v499
      %504 = vrot.lane.b32.xlu0 %v502, 64
      %v505 = vpop.permute.xlu0 %504
      %507 = vst.msk [vmem:[#allocation2 + $0x2] sm:$0x3] %vm461, %v505
      %v508 = vld [vmem:[#allocation2] sm:$0xf]
      %510 = vst [vmem:[#allocation1] ss:$4 sm:$0xff] %v508
      %v511 = vld.sshfl [vmem:[#allocation1] sm:$0xff pattern:$0x73625140]
      %v512 = vld.sshfl [vmem:[#allocation1 + $0x8] sm:$0xff pattern:$0x73625140]
      %v547 = vunpack.c.l.b16 %v369
      %v548 = vunpack.c.h.b16 %v369
      %v549 = vunpack.c.l.b16 %v370
      %v550 = vunpack.c.h.b16 %v370
      %v551 = vunpack.c.l.b16 %v371
      %v552 = vunpack.c.h.b16 %v371
      %v553 = vunpack.c.l.b16 %v372
      %v554 = vunpack.c.h.b16 %v372
      %v555 = vunpack.c.l.b16 %v373
      %v556 = vunpack.c.h.b16 %v373
      %v557 = vunpack.c.l.b16 %v374
      %v558 = vunpack.c.h.b16 %v374
      %v559 = vunpack.c.l.b16 %v375
      %v560 = vunpack.c.h.b16 %v375
      %v561 = vunpack.c.l.b16 %v376
      %v562 = vunpack.c.h.b16 %v376
      %v563 = vunpack.c.l.b16 %v377
      %v564 = vunpack.c.h.b16 %v377
      %v565 = vunpack.c.l.b16 %v378
      %v566 = vunpack.c.h.b16 %v378
      %v567 = vunpack.c.l.b16 %v379
      %v568 = vunpack.c.h.b16 %v379
      %v569 = vunpack.c.l.b16 %v380
      %v570 = vunpack.c.h.b16 %v380
      %v571 = vunpack.c.l.b16 %v381
      %v572 = vunpack.c.h.b16 %v381
      %v573 = vunpack.c.l.b16 %v382
      %v574 = vunpack.c.h.b16 %v382
      %v575 = vunpack.c.l.b16 %v383
      %v576 = vunpack.c.h.b16 %v383
      %v577 = vunpack.c.l.b16 %v384
      %v578 = vunpack.c.h.b16 %v384
      %v579 = vunpack.c.l.b16 %v385
      %v580 = vunpack.c.h.b16 %v385
      %v581 = vunpack.c.l.b16 %v386
      %v582 = vunpack.c.h.b16 %v386
      %v583 = vunpack.c.l.b16 %v387
      %v584 = vunpack.c.h.b16 %v387
      %v585 = vunpack.c.l.b16 %v388
      %v586 = vunpack.c.h.b16 %v388
      %v587 = vunpack.c.l.b16 %v389
      %v588 = vunpack.c.h.b16 %v389
      %v589 = vunpack.c.l.b16 %v390
      %v590 = vunpack.c.h.b16 %v390
      %v591 = vunpack.c.l.b16 %v391
      %v592 = vunpack.c.h.b16 %v391
      %v593 = vunpack.c.l.b16 %v392
      %v594 = vunpack.c.h.b16 %v392
      %v595 = vunpack.c.l.b16 %v393
      %v596 = vunpack.c.h.b16 %v393
      %v597 = vunpack.c.l.b16 %v394
      %v598 = vunpack.c.h.b16 %v394
      %v599 = vunpack.c.l.b16 %v395
      %v600 = vunpack.c.h.b16 %v395
      %v601 = vunpack.c.l.b16 %v396
      %v602 = vunpack.c.h.b16 %v396
      %v603 = vunpack.c.l.b16 %v397
      %v604 = vunpack.c.h.b16 %v397
      %v605 = vunpack.c.l.b16 %v398
      %v606 = vunpack.c.h.b16 %v398
      %v607 = vunpack.c.l.b16 %v399
      %v608 = vunpack.c.h.b16 %v399
      %v609 = vunpack.c.l.b16 %v400
      %v610 = vunpack.c.h.b16 %v400
      %v611 = vpack.c.b16 %v549, %v547
      %v612 = vpack.c.b16 %v550, %v548
      %v613 = vpack.c.b16 %v553, %v551
      %v614 = vpack.c.b16 %v554, %v552
      %v615 = vpack.c.b16 %v557, %v555
      %v616 = vpack.c.b16 %v558, %v556
      %v617 = vpack.c.b16 %v561, %v559
      %v618 = vpack.c.b16 %v562, %v560
      %v619 = vpack.c.b16 %v565, %v563
      %v620 = vpack.c.b16 %v566, %v564
      %v621 = vpack.c.b16 %v569, %v567
      %v622 = vpack.c.b16 %v570, %v568
      %v623 = vpack.c.b16 %v573, %v571
      %v624 = vpack.c.b16 %v574, %v572
      %v625 = vpack.c.b16 %v577, %v575
      %v626 = vpack.c.b16 %v578, %v576
      %v627 = vpack.c.b16 %v581, %v579
      %v628 = vpack.c.b16 %v582, %v580
      %v629 = vpack.c.b16 %v585, %v583
      %v630 = vpack.c.b16 %v586, %v584
      %v631 = vpack.c.b16 %v589, %v587
      %v632 = vpack.c.b16 %v590, %v588
      %v633 = vpack.c.b16 %v593, %v591
      %v634 = vpack.c.b16 %v594, %v592
      %v635 = vpack.c.b16 %v597, %v595
      %v636 = vpack.c.b16 %v598, %v596
      %v637 = vpack.c.b16 %v601, %v599
      %v638 = vpack.c.b16 %v602, %v600
      %v639 = vpack.c.b16 %v605, %v603
      %v640 = vpack.c.b16 %v606, %v604
      %v641 = vpack.c.b16 %v609, %v607
      %v642 = vpack.c.b16 %v610, %v608
      %675 = vmatpush.bf16.msra.mxu0 %v625
      %676 = vmatpush.bf16.msra.mxu0 %v623
      %677 = vmatpush.bf16.msra.mxu0 %v621
      %678 = vmatpush.bf16.msra.mxu0 %v619
      %679 = vmatpush.bf16.msra.mxu0 %v617
      %680 = vmatpush.bf16.msra.mxu0 %v615
      %681 = vmatpush.bf16.msra.mxu0 %v613
      %682 = vmatpush.bf16.msra.mxu0 %v611
      %683 = vmatmul.bf16.gmra.mxu0 %v511
      %v684 = vpop.f32.mrf.mxu0
      %v685 = vadd.f32 0.0, %v684
      %v686 = vpop.f32.mrf.mxu0
      %687 = vdwg.mxu0
      %688 = vmatpush.bf16.msra.mxu0 %v641
      %689 = vmatpush.bf16.msra.mxu0 %v639
      %690 = vmatpush.bf16.msra.mxu0 %v637
      %691 = vmatpush.bf16.msra.mxu0 %v635
      %692 = vmatpush.bf16.msra.mxu0 %v633
      %693 = vmatpush.bf16.msra.mxu0 %v631
      %694 = vmatpush.bf16.msra.mxu0 %v629
      %695 = vmatpush.bf16.msra.mxu0 %v627
      %696 = vmatmul.bf16.gmra.mxu0 %v512
      %v697 = vpop.f32.mrf.mxu0
      %v698 = vadd.f32 %v685, %v697
      %v699 = vpop.f32.mrf.mxu0
      %700 = vdwg.mxu0
      %701 = vmatpush.bf16.msra.mxu0 %v626
      %702 = vmatpush.bf16.msra.mxu0 %v624
      %703 = vmatpush.bf16.msra.mxu0 %v622
      %704 = vmatpush.bf16.msra.mxu0 %v620
      %705 = vmatpush.bf16.msra.mxu0 %v618
      %706 = vmatpush.bf16.msra.mxu0 %v616
      %707 = vmatpush.bf16.msra.mxu0 %v614
      %708 = vmatpush.bf16.msra.mxu0 %v612
      %709 = vmatmul.bf16.gmra.mxu0 %v511
      %v710 = vpop.f32.mrf.mxu0
      %v711 = vadd.f32 0.0, %v710
      %v712 = vpop.f32.mrf.mxu0
      %713 = vdwg.mxu0
      %714 = vmatpush.bf16.msra.mxu0 %v642
      %715 = vmatpush.bf16.msra.mxu0 %v640
      %716 = vmatpush.bf16.msra.mxu0 %v638
      %717 = vmatpush.bf16.msra.mxu0 %v636
      %718 = vmatpush.bf16.msra.mxu0 %v634
      %719 = vmatpush.bf16.msra.mxu0 %v632
      %720 = vmatpush.bf16.msra.mxu0 %v630
      %721 = vmatpush.bf16.msra.mxu0 %v628
      %722 = vmatmul.bf16.gmra.mxu0 %v512
      %v723 = vpop.f32.mrf.mxu0
      %v724 = vadd.f32 %v711, %v723
      %v725 = vpop.f32.mrf.mxu0
      %726 = vdwg.mxu0
      %v729 = vrot.slane %v724, 4
      %v730 = vsel %vm414, %v698, %v729
      %v732 = vadd.f32 %v401, %v730
      %vm733 = vcmask 1044344
      %734 = vst.msk [vmem:[#allocation3] sm:$0xf] %vm733, 0
      %735 = vst.msk [vmem:[#allocation3 + $0x10] sm:$0xf] %vm733, 0
      %vm736 = vcmask 134144
      %737 = vst.msk [vmem:[#allocation3 + $0xc] sm:$0xf] %vm736, 0
      %738 = vst.msk [vmem:[#allocation3 + $0x1c] sm:$0xf] %vm736, 0
      %739 = vst [vmem:[#allocation3 + $0x4] sm:$0xcc] 0
      %740 = vst [vmem:[#allocation3 + $0x14] sm:$0xcc] 0
      %v741 = vld [vmem:[%s354] sm:$0xf]
      %743 = vst [vmem:[#allocation1] ss:$2 sm:$0xff] %v741
      %v744 = vld.sshfl [vmem:[#allocation1] sm:$0xff pattern:$0x75643120]
      %746 = vst [vmem:[#allocation3 + $0x4] sm:$0x33] %v744
      %748 = vst [vmem:[#allocation1] ss:$2 sm:$0xff] %v732
      %v749 = vld.sshfl [vmem:[#allocation1] sm:$0xff pattern:$0x75316420]
      %v750 = vld.sshfl [vmem:[#allocation1 + $0x8] sm:$0xff pattern:$0x75316420]
      %v753 = vpack.c.bf16 %v750, %v749
      %754 = vst [vmem:[#allocation3 + $0x14] sm:$0x33] %v753
      %v755 = vld [vmem:[#allocation3] sm:$0xff]
      %v756 = vld [vmem:[#allocation3 + $0x8] sm:$0xf]
      %v757 = vld [vmem:[#allocation3 + $0x10] sm:$0xff]
      %v758 = vld [vmem:[#allocation3 + $0x18] sm:$0xf]
      %760 = vst [vmem:[#allocation1] ss:$9 sm:$0xff] %v364
      %v761 = vld [vmem:[#allocation1] sm:$0xff]
      %v762 = vld [vmem:[#allocation1 + $0x9] sm:$0xff]
      %v763 = vpack.i.b16 %v761, %v761
      %v765 = vperm.slane %v763, 0
      %v766 = vpack.i.b16 %v762, %v762
      %v768 = vperm.slane %v766, 0
      %v769 = vunpack.c.l.bf16 %v755
      %v770 = vunpack.c.h.bf16 %v755
      %v771 = vunpack.c.l.bf16 %v756
      %v772 = vunpack.c.l.bf16 %v757
      %v773 = vunpack.c.h.bf16 %v757
      %v774 = vunpack.c.l.bf16 %v758
      %v775 = vunpack.c.l.bf16 %v765
      %v776 = vunpack.c.l.bf16 %v768
      %779 = vrot.lane.b32.xlu0 %v775, 111
      %v780 = vpop.permute.xlu0 %779
      %781 = vrot.lane.b32.xlu0 %v776, 111
      %v782 = vpop.permute.xlu0 %781
      %vm783 = vcmask 908288
      %v784 = vsel %vm783, %v780, %v782
      %v788 = vmul.f32 %v769, %v780
      %v789 = vmul.f32 %v770, %v784
      %v790 = vmul.f32 %v771, %v782
      %v791 = vmul.f32 %v772, %v780
      %v792 = vmul.f32 %v773, %v784
      %v793 = vmul.f32 %v774, %v782
      %v794 = vpack.c.bf16 %v789, %v788
      %v795 = vpack.c.bf16 %v790, %v790
      %v796 = vpack.c.bf16 %v792, %v791
      %v797 = vpack.c.bf16 %v793, %v793
      %v798 = vld [vmem:[#allocation3] sm:$0xff]
      %v799 = vld [vmem:[#allocation3 + $0x8] sm:$0xf]
      %v800 = vld [vmem:[#allocation3 + $0x10] sm:$0xff]
      %v801 = vld [vmem:[#allocation3 + $0x18] sm:$0xf]
      %802 = vst [vmem:[#allocation1] ss:$9 sm:$0xff] %v364
      %v803 = vld [vmem:[#allocation1] sm:$0xff]
      %v804 = vld [vmem:[#allocation1 + $0x9] sm:$0xff]
      %v805 = vshrl.u32 %v803, 16
      %v806 = vpack.i.b16 %v805, %v805
      %v808 = vperm.slane %v806, 0
      %v809 = vshrl.u32 %v804, 16
      %v810 = vpack.i.b16 %v809, %v809
      %v812 = vperm.slane %v810, 0
      %v813 = vunpack.c.l.bf16 %v798
      %v814 = vunpack.c.h.bf16 %v798
      %v815 = vunpack.c.l.bf16 %v799
      %v816 = vunpack.c.l.bf16 %v800
      %v817 = vunpack.c.h.bf16 %v800
      %v818 = vunpack.c.l.bf16 %v801
      %v819 = vunpack.c.l.bf16 %v808
      %v820 = vunpack.c.l.bf16 %v812
      %823 = vrot.lane.b32.xlu0 %v819, 113
      %v824 = vpop.permute.xlu0 %823
      %825 = vrot.lane.b32.xlu0 %v820, 113
      %v826 = vpop.permute.xlu0 %825
      %vm827 = vcmask 924672
      %v828 = vsel %vm827, %v824, %v826
      %v832 = vmul.f32 %v813, %v824
      %v833 = vmul.f32 %v814, %v828
      %v834 = vmul.f32 %v815, %v826
      %v835 = vmul.f32 %v816, %v824
      %v836 = vmul.f32 %v817, %v828
      %v837 = vmul.f32 %v818, %v826
      %v838 = vpack.c.bf16 %v833, %v832
      %v839 = vpack.c.bf16 %v834, %v834
      %v840 = vpack.c.bf16 %v836, %v835
      %v841 = vpack.c.bf16 %v837, %v837
      %v842 = vld [vmem:[#allocation3] sm:$0xff]
      %v843 = vld [vmem:[#allocation3 + $0x8] sm:$0xf]
      %v844 = vld [vmem:[#allocation3 + $0x10] sm:$0xff]
      %v845 = vld [vmem:[#allocation3 + $0x18] sm:$0xf]
      %v846 = vunpack.c.l.bf16 %v842
      %v847 = vunpack.c.h.bf16 %v842
      %v848 = vunpack.c.l.bf16 %v843
      %v849 = vunpack.c.l.bf16 %v844
      %v850 = vunpack.c.h.bf16 %v844
      %v851 = vunpack.c.l.bf16 %v845
      %852 = vrot.lane.b32.xlu0 %v775, 127
      %v853 = vpop.permute.xlu0 %852
      %854 = vrot.lane.b32.xlu0 %v776, 127
      %v855 = vpop.permute.xlu0 %854
      %vm856 = vcmask 1039360
      %v857 = vsel %vm856, %v853, %v855
      %v861 = vmul.f32 %v846, %v853
      %v862 = vmul.f32 %v847, %v857
      %v863 = vmul.f32 %v848, %v855
      %v864 = vmul.f32 %v849, %v853
      %v865 = vmul.f32 %v850, %v857
      %v866 = vmul.f32 %v851, %v855
      %v867 = vpack.c.bf16 %v862, %v861
      %v868 = vpack.c.bf16 %v863, %v863
      %v869 = vpack.c.bf16 %v865, %v864
      %v870 = vpack.c.bf16 %v866, %v866
      %v871 = vld [vmem:[#allocation3 + $0x4] sm:$0xff]
      %v872 = vld [vmem:[#allocation3 + $0x14] sm:$0xff]
      %v873 = vld [vmem:[#allocation3 + $0x4] sm:$0xff]
      %v874 = vld [vmem:[#allocation3 + $0xc] sm:$0xf]
      %v875 = vld [vmem:[#allocation3 + $0x14] sm:$0xff]
      %v876 = vld [vmem:[#allocation3 + $0x1c] sm:$0xf]
      %v877 = vunpack.c.l.bf16 %v873
      %v878 = vunpack.c.h.bf16 %v873
      %v879 = vunpack.c.l.bf16 %v874
      %v880 = vunpack.c.l.bf16 %v875
      %v881 = vunpack.c.h.bf16 %v875
      %v882 = vunpack.c.l.bf16 %v876
      %883 = vrot.lane.b32.xlu0 %v819, 1
      %v884 = vpop.permute.xlu0 %883
      %885 = vrot.lane.b32.xlu0 %v820, 1
      %v886 = vpop.permute.xlu0 %885
      %vm887 = vcmask 7168
      %v888 = vsel %vm887, %v884, %v886
      %v892 = vmul.f32 %v877, %v884
      %v893 = vmul.f32 %v878, %v888
      %v894 = vmul.f32 %v879, %v886
      %v895 = vmul.f32 %v880, %v884
      %v896 = vmul.f32 %v881, %v888
      %v897 = vmul.f32 %v882, %v886
      %v898 = vpack.c.bf16 %v893, %v892
      %v899 = vpack.c.bf16 %v894, %v894
      %v900 = vpack.c.bf16 %v896, %v895
      %v901 = vpack.c.bf16 %v897, %v897
      %902 = vrot.lane.b32.xlu0 %v775, 15
      %v903 = vpop.permute.xlu0 %902
      %904 = vrot.lane.b32.xlu0 %v776, 15
      %v905 = vpop.permute.xlu0 %904
      %vm906 = vcmask 121856
      %v907 = vsel %vm906, %v903, %v905
      %v911 = vmul.f32 %v877, %v903
      %v912 = vmul.f32 %v878, %v907
      %v913 = vmul.f32 %v879, %v905
      %v914 = vmul.f32 %v880, %v903
      %v915 = vmul.f32 %v881, %v907
      %v916 = vmul.f32 %v882, %v905
      %v917 = vpack.c.bf16 %v912, %v911
      %v918 = vpack.c.bf16 %v913, %v913
      %v919 = vpack.c.bf16 %v915, %v914
      %v920 = vpack.c.bf16 %v916, %v916
      %921 = vrot.lane.b32.xlu0 %v819, 17
      %v922 = vpop.permute.xlu0 %921
      %923 = vrot.lane.b32.xlu0 %v820, 17
      %v924 = vpop.permute.xlu0 %923
      %vm925 = vcmask 138240
      %v926 = vsel %vm925, %v922, %v924
      %v930 = vmul.f32 %v877, %v922
      %v931 = vmul.f32 %v878, %v926
      %v932 = vmul.f32 %v879, %v924
      %v933 = vmul.f32 %v880, %v922
      %v934 = vmul.f32 %v881, %v926
      %v935 = vmul.f32 %v882, %v924
      %v936 = vpack.c.bf16 %v931, %v930
      %v937 = vpack.c.bf16 %v932, %v932
      %v938 = vpack.c.bf16 %v934, %v933
      %v939 = vpack.c.bf16 %v935, %v935
      %v944 = vunpack.c.l.b16 %v794
      %v945 = vunpack.c.h.b16 %v794
      %v946 = vunpack.c.l.b16 %v795
      %v947 = vunpack.c.l.b16 %v796
      %v948 = vunpack.c.h.b16 %v796
      %v949 = vunpack.c.l.b16 %v797
      %v950 = vpack.c.b16 %v947, %v944
      %v951 = vpack.c.b16 %v948, %v945
      %v952 = vpack.c.b16 %v949, %v946
      %v957 = vunpack.c.l.b16 %v798
      %v958 = vunpack.c.h.b16 %v798
      %v959 = vunpack.c.l.b16 %v799
      %v960 = vunpack.c.l.b16 %v800
      %v961 = vunpack.c.h.b16 %v800
      %v962 = vunpack.c.l.b16 %v801
      %v963 = vpack.c.b16 %v960, %v957
      %v964 = vpack.c.b16 %v961, %v958
      %v965 = vpack.c.b16 %v962, %v959
      %966 = vrot.lane.b32.xlu0 %v963, 127
      %v967 = vpop.permute.xlu0 %966
      %968 = vrot.lane.b32.xlu0 %v964, 127
      %v969 = vpop.permute.xlu0 %968
      %970 = vrot.lane.b32.xlu0 %v965, 127
      %v971 = vpop.permute.xlu0 %970
      %vm972 = vcmask 1039360
      %v973 = vsel %vm972, %v967, %v969
      %v974 = vsel %vm972, %v969, %v971
      %v979 = vunpack.c.l.b16 %v838
      %v980 = vunpack.c.h.b16 %v838
      %v981 = vunpack.c.l.b16 %v839
      %v982 = vunpack.c.l.b16 %v840
      %v983 = vunpack.c.h.b16 %v840
      %v984 = vunpack.c.l.b16 %v841
      %v985 = vpack.c.b16 %v982, %v979
      %v986 = vpack.c.b16 %v983, %v980
      %v987 = vpack.c.b16 %v984, %v981
      %988 = vrot.lane.b32.xlu0 %v985, 126
      %v989 = vpop.permute.xlu0 %988
      %990 = vrot.lane.b32.xlu0 %v986, 126
      %v991 = vpop.permute.xlu0 %990
      %992 = vrot.lane.b32.xlu0 %v987, 126
      %v993 = vpop.permute.xlu0 %992
      %vm994 = vcmask 1031168
      %v995 = vsel %vm994, %v989, %v991
      %v996 = vsel %vm994, %v991, %v993
      %v1001 = vunpack.c.l.b16 %v867
      %v1002 = vunpack.c.h.b16 %v867
      %v1003 = vunpack.c.l.b16 %v868
      %v1004 = vunpack.c.l.b16 %v869
      %v1005 = vunpack.c.h.b16 %v869
      %v1006 = vunpack.c.l.b16 %v870
      %v1007 = vpack.c.b16 %v1004, %v1001
      %v1008 = vpack.c.b16 %v1005, %v1002
      %v1009 = vpack.c.b16 %v1006, %v1003
      %1010 = vrot.lane.b32.xlu0 %v1007, 112
      %v1011 = vpop.permute.xlu0 %1010
      %1012 = vrot.lane.b32.xlu0 %v1008, 112
      %v1013 = vpop.permute.xlu0 %1012
      %1014 = vrot.lane.b32.xlu0 %v1009, 112
      %v1015 = vpop.permute.xlu0 %1014
      %vm1016 = vcmask 916480
      %v1017 = vsel %vm1016, %v1011, %v1013
      %v1018 = vsel %vm1016, %v1013, %v1015
      %v1021 = vunpack.c.l.b16 %v871
      %v1022 = vunpack.c.h.b16 %v871
      %v1023 = vunpack.c.l.b16 %v872
      %v1024 = vunpack.c.h.b16 %v872
      %v1025 = vpack.c.b16 %v1023, %v1021
      %v1026 = vpack.c.b16 %v1024, %v1022
      %1027 = vrot.lane.b32.xlu0 %v1025, 111
      %v1028 = vpop.permute.xlu0 %1027
      %1029 = vrot.lane.b32.xlu0 %v1026, 111
      %v1030 = vpop.permute.xlu0 %1029
      %vm1031 = vcmask 908288
      %v1032 = vsel %vm1031, %v1028, %v1030
      %v1037 = vunpack.c.l.b16 %v898
      %v1038 = vunpack.c.h.b16 %v898
      %v1039 = vunpack.c.l.b16 %v899
      %v1040 = vunpack.c.l.b16 %v900
      %v1041 = vunpack.c.h.b16 %v900
      %v1042 = vunpack.c.l.b16 %v901
      %v1043 = vpack.c.b16 %v1040, %v1037
      %v1044 = vpack.c.b16 %v1041, %v1038
      %v1045 = vpack.c.b16 %v1042, %v1039
      %1046 = vrot.lane.b32.xlu0 %v1043, 110
      %v1047 = vpop.permute.xlu0 %1046
      %1048 = vrot.lane.b32.xlu0 %v1044, 110
      %v1049 = vpop.permute.xlu0 %1048
      %1050 = vrot.lane.b32.xlu0 %v1045, 110
      %v1051 = vpop.permute.xlu0 %1050
      %vm1052 = vcmask 900096
      %v1053 = vsel %vm1052, %v1047, %v1049
      %v1054 = vsel %vm1052, %v1049, %v1051
      %v1059 = vunpack.c.l.b16 %v917
      %v1060 = vunpack.c.h.b16 %v917
      %v1061 = vunpack.c.l.b16 %v918
      %v1062 = vunpack.c.l.b16 %v919
      %v1063 = vunpack.c.h.b16 %v919
      %v1064 = vunpack.c.l.b16 %v920
      %v1065 = vpack.c.b16 %v1062, %v1059
      %v1066 = vpack.c.b16 %v1063, %v1060
      %v1067 = vpack.c.b16 %v1064, %v1061
      %1068 = vrot.lane.b32.xlu0 %v1065, 96
      %v1069 = vpop.permute.xlu0 %1068
      %1070 = vrot.lane.b32.xlu0 %v1066, 96
      %v1071 = vpop.permute.xlu0 %1070
      %1072 = vrot.lane.b32.xlu0 %v1067, 96
      %v1073 = vpop.permute.xlu0 %1072
      %vm1074 = vcmask 785408
      %v1075 = vsel %vm1074, %v1069, %v1071
      %v1076 = vsel %vm1074, %v1071, %v1073
      %v1081 = vunpack.c.l.b16 %v873
      %v1082 = vunpack.c.h.b16 %v873
      %v1083 = vunpack.c.l.b16 %v874
      %v1084 = vunpack.c.l.b16 %v875
      %v1085 = vunpack.c.h.b16 %v875
      %v1086 = vunpack.c.l.b16 %v876
      %v1087 = vpack.c.b16 %v1084, %v1081
      %v1088 = vpack.c.b16 %v1085, %v1082
      %v1089 = vpack.c.b16 %v1086, %v1083
      %1090 = vrot.lane.b32.xlu0 %v1087, 95
      %v1091 = vpop.permute.xlu0 %1090
      %1092 = vrot.lane.b32.xlu0 %v1088, 95
      %v1093 = vpop.permute.xlu0 %1092
      %1094 = vrot.lane.b32.xlu0 %v1089, 95
      %v1095 = vpop.permute.xlu0 %1094
      %vm1096 = vcmask 777216
      %v1097 = vsel %vm1096, %v1091, %v1093
      %v1098 = vsel %vm1096, %v1093, %v1095
      %v1103 = vunpack.c.l.b16 %v936
      %v1104 = vunpack.c.h.b16 %v936
      %v1105 = vunpack.c.l.b16 %v937
      %v1106 = vunpack.c.l.b16 %v938
      %v1107 = vunpack.c.h.b16 %v938
      %v1108 = vunpack.c.l.b16 %v939
      %v1109 = vpack.c.b16 %v1106, %v1103
      %v1110 = vpack.c.b16 %v1107, %v1104
      %v1111 = vpack.c.b16 %v1108, %v1105
      %1112 = vrot.lane.b32.xlu0 %v1109, 94
      %v1113 = vpop.permute.xlu0 %1112
      %1114 = vrot.lane.b32.xlu0 %v1110, 94
      %v1115 = vpop.permute.xlu0 %1114
      %1116 = vrot.lane.b32.xlu0 %v1111, 94
      %v1117 = vpop.permute.xlu0 %1116
      %vm1118 = vcmask 769024
      %v1119 = vsel %vm1118, %v1113, %v1115
      %v1120 = vsel %vm1118, %v1115, %v1117
      %v1123 = vunpack.c.l.b16 %v365
      %v1124 = vunpack.c.h.b16 %v365
      %v1125 = vunpack.c.l.b16 %v366
      %v1126 = vunpack.c.h.b16 %v366
      %v1127 = vpack.c.b16 %v1125, %v1123
      %v1128 = vpack.c.b16 %v1126, %v1124
      %1130 = vrot.lane.b32.xlu0 %v950, 17
      %v1131 = vpop.permute.xlu0 %1130
      %1132 = vrot.lane.b32.xlu0 %v951, 17
      %v1133 = vpop.permute.xlu0 %1132
      %1134 = vrot.lane.b32.xlu0 %v952, 17
      %v1135 = vpop.permute.xlu0 %1134
      %1136 = vrot.lane.b32.xlu0 %v973, 17
      %v1137 = vpop.permute.xlu0 %1136
      %1138 = vrot.lane.b32.xlu0 %v974, 17
      %v1139 = vpop.permute.xlu0 %1138
      %1140 = vrot.lane.b32.xlu0 %v971, 17
      %v1141 = vpop.permute.xlu0 %1140
      %1142 = vrot.lane.b32.xlu0 %v995, 17
      %v1143 = vpop.permute.xlu0 %1142
      %1144 = vrot.lane.b32.xlu0 %v996, 17
      %v1145 = vpop.permute.xlu0 %1144
      %1146 = vrot.lane.b32.xlu0 %v993, 17
      %v1147 = vpop.permute.xlu0 %1146
      %1148 = vrot.lane.b32.xlu0 %v1017, 17
      %v1149 = vpop.permute.xlu0 %1148
      %1150 = vrot.lane.b32.xlu0 %v1018, 17
      %v1151 = vpop.permute.xlu0 %1150
      %1152 = vrot.lane.b32.xlu0 %v1015, 17
      %v1153 = vpop.permute.xlu0 %1152
      %1154 = vrot.lane.b32.xlu0 %v1028, 17
      %v1155 = vpop.permute.xlu0 %1154
      %1156 = vrot.lane.b32.xlu0 %v1032, 17
      %v1157 = vpop.permute.xlu0 %1156
      %1158 = vrot.lane.b32.xlu0 %v1030, 17
      %v1159 = vpop.permute.xlu0 %1158
      %1160 = vrot.lane.b32.xlu0 %v1047, 17
      %v1161 = vpop.permute.xlu0 %1160
      %1162 = vrot.lane.b32.xlu0 %v1053, 17
      %v1163 = vpop.permute.xlu0 %1162
      %1164 = vrot.lane.b32.xlu0 %v1054, 17
      %v1165 = vpop.permute.xlu0 %1164
      %1166 = vrot.lane.b32.xlu0 %v1069, 17
      %v1167 = vpop.permute.xlu0 %1166
      %1168 = vrot.lane.b32.xlu0 %v1075, 17
      %v1169 = vpop.permute.xlu0 %1168
      %1170 = vrot.lane.b32.xlu0 %v1076, 17
      %v1171 = vpop.permute.xlu0 %1170
      %1172 = vrot.lane.b32.xlu0 %v1091, 17
      %v1173 = vpop.permute.xlu0 %1172
      %1174 = vrot.lane.b32.xlu0 %v1097, 17
      %v1175 = vpop.permute.xlu0 %1174
      %1176 = vrot.lane.b32.xlu0 %v1098, 17
      %v1177 = vpop.permute.xlu0 %1176
      %1178 = vrot.lane.b32.xlu0 %v1113, 17
      %v1179 = vpop.permute.xlu0 %1178
      %1180 = vrot.lane.b32.xlu0 %v1119, 17
      %v1181 = vpop.permute.xlu0 %1180
      %1182 = vrot.lane.b32.xlu0 %v1120, 17
      %v1183 = vpop.permute.xlu0 %1182
      %vm1184 = vcmask 138240
      %v1185 = vsel %vm1184, %v1131, %v1133
      %v1186 = vsel %vm1184, %v1133, %v1135
      %v1187 = vsel %vm1184, %v1137, %v1139
      %v1188 = vsel %vm1184, %v1139, %v1141
      %v1189 = vsel %vm1184, %v1143, %v1145
      %v1190 = vsel %vm1184, %v1145, %v1147
      %v1191 = vsel %vm1184, %v1149, %v1151
      %v1192 = vsel %vm1184, %v1151, %v1153
      %v1193 = vsel %vm1184, %v1155, %v1157
      %v1194 = vsel %vm1184, %v1157, %v1159
      %v1195 = vsel %vm1184, %v1161, %v1163
      %v1196 = vsel %vm1184, %v1163, %v1165
      %v1197 = vsel %vm1184, %v1167, %v1169
      %v1198 = vsel %vm1184, %v1169, %v1171
      %v1199 = vsel %vm1184, %v1173, %v1175
      %v1200 = vsel %vm1184, %v1175, %v1177
      %v1201 = vsel %vm1184, %v1179, %v1181
      %v1202 = vsel %vm1184, %v1181, %v1183
      %vm1221 = vcmask 130048
      %v1223 = vsel %vm1221, %v1128, 0
      %1225 = vmatpush.bf16.msra.mxu0 %v1199
      %1226 = vmatpush.bf16.msra.mxu0 %v1197
      %1227 = vmatpush.bf16.msra.mxu0 %v1195
      %1228 = vmatpush.bf16.msra.mxu0 %v1193
      %1229 = vmatpush.bf16.msra.mxu0 %v1191
      %1230 = vmatpush.bf16.msra.mxu0 %v1189
      %1231 = vmatpush.bf16.msra.mxu0 %v1187
      %1232 = vmatpush.bf16.msra.mxu0 %v1185
      %1233 = vmatmul.bf16.gmra.mxu0 %v1127
      %v1234 = vpop.f32.mrf.mxu0
      %v1235 = vadd.f32 0.0, %v1234
      %v1236 = vpop.f32.mrf.mxu0
      %v1237 = vadd.f32 0.0, %v1236
      %1238 = vdwg.mxu0
      %1239 = vmatpush.bf16.msra.mxu0 0
      %1240 = vmatpush.bf16.msra.mxu0 0
      %1241 = vmatpush.bf16.msra.mxu0 0
      %1242 = vmatpush.bf16.msra.mxu0 0
      %1243 = vmatpush.bf16.msra.mxu0 0
      %1244 = vmatpush.bf16.msra.mxu0 0
      %1245 = vmatpush.bf16.msra.mxu0 0
      %1246 = vmatpush.bf16.msra.mxu0 %v1201
      %1247 = vmatmul.bf16.gmra.mxu0 %v1223
      %v1248 = vpop.f32.mrf.mxu0
      %v1249 = vadd.f32 %v1235, %v1248
      %v1250 = vpop.f32.mrf.mxu0
      %v1251 = vadd.f32 %v1237, %v1250
      %1252 = vdwg.mxu0
      %1253 = vmatpush.bf16.msra.mxu0 %v1200
      %1254 = vmatpush.bf16.msra.mxu0 %v1198
      %1255 = vmatpush.bf16.msra.mxu0 %v1196
      %1256 = vmatpush.bf16.msra.mxu0 %v1194
      %1257 = vmatpush.bf16.msra.mxu0 %v1192
      %1258 = vmatpush.bf16.msra.mxu0 %v1190
      %1259 = vmatpush.bf16.msra.mxu0 %v1188
      %1260 = vmatpush.bf16.msra.mxu0 %v1186
      %1261 = vmatmul.bf16.gmra.mxu0 %v1127
      %v1262 = vpop.f32.mrf.mxu0
      %v1263 = vadd.f32 0.0, %v1262
      %v1264 = vpop.f32.mrf.mxu0
      %v1265 = vadd.f32 0.0, %v1264
      %1266 = vdwg.mxu0
      %1267 = vmatpush.bf16.msra.mxu0 0
      %1268 = vmatpush.bf16.msra.mxu0 0
      %1269 = vmatpush.bf16.msra.mxu0 0
      %1270 = vmatpush.bf16.msra.mxu0 0
      %1271 = vmatpush.bf16.msra.mxu0 0
      %1272 = vmatpush.bf16.msra.mxu0 0
      %1273 = vmatpush.bf16.msra.mxu0 0
      %1274 = vmatpush.bf16.msra.mxu0 %v1202
      %1275 = vmatmul.bf16.gmra.mxu0 %v1223
      %v1276 = vpop.f32.mrf.mxu0
      %v1277 = vadd.f32 %v1263, %v1276
      %v1278 = vpop.f32.mrf.mxu0
      %v1279 = vadd.f32 %v1265, %v1278
      %1280 = vdwg.mxu0
      %v1281 = vadd.f32 %v1249, %v1277
      %1282 = vadd.xlane.f32.xlu0 %v1281
      %v1283 = vpop.xlane.xlu0 %1282
      %v1284 = vadd.f32 %v1251, %v1279
      %1285 = vadd.xlane.f32.xlu0 %v1284
      %v1286 = vpop.xlane.xlu0 %1285
      %v1287 = vrcp.pop 256.0
      %v1288 = vmul.f32 256.0, %v1287
      %v1289 = vsub.f32 1.0, %v1288
      %v1290 = vmul.f32 %v1287, %v1289
      %v1291 = vadd.f32 %v1287, %v1290
      %vm1292 = vweird.f32 %v1287
      %v1293 = vsel %vm1292, %v1287, %v1291
      %v1294 = vmul.f32 %v1283, %v1293
      %v1295 = vmul.f32 %v1286, %v1293
      %v1296 = vsub.f32 %v1249, %v1294
      %v1297 = vsub.f32 %v1277, %v1294
      %v1298 = vsub.f32 %v1251, %v1295
      %v1299 = vsub.f32 %v1279, %v1295
      %v1300 = vmul.f32 %v1296, %v1296
      %v1301 = vmul.f32 %v1297, %v1297
      %v1302 = vmul.f32 %v1298, %v1298
      %v1303 = vmul.f32 %v1299, %v1299
      %v1304 = vadd.f32 %v1300, %v1301
      %1305 = vadd.xlane.f32.xlu0 %v1304
      %v1306 = vpop.xlane.xlu0 %1305
      %v1307 = vadd.f32 %v1302, %v1303
      %1308 = vadd.xlane.f32.xlu0 %v1307
      %v1309 = vpop.xlane.xlu0 %1308
      %v1310 = vmul.f32 %v1306, %v1293
      %v1311 = vmul.f32 %v1309, %v1293
      %v1312 = vadd.f32 %v1310, 1e-05
      %v1313 = vadd.f32 %v1311, 1e-05
      %v1314 = vrsqrt.pop %v1312
      %v1315 = vmul.f32 %v1314, %v1312
      %v1316 = vmul.f32 %v1315, %v1314
      %v1317 = vmul.f32 0.5, %v1316
      %v1318 = vsub.f32 1.5, %v1317
      %v1319 = vmul.f32 %v1314, %v1318
      %vm1320 = vweird.f32 %v1312
      %vm1321 = vweird.f32 %v1314
      %vm1322 = vmor %vm1320, %vm1321
      %v1323 = vsel %vm1322, %v1314, %v1319
      %v1324 = vrsqrt.pop %v1313
      %v1325 = vmul.f32 %v1324, %v1313
      %v1326 = vmul.f32 %v1325, %v1324
      %v1327 = vmul.f32 0.5, %v1326
      %v1328 = vsub.f32 1.5, %v1327
      %v1329 = vmul.f32 %v1324, %v1328
      %vm1330 = vweird.f32 %v1313
      %vm1331 = vweird.f32 %v1324
      %vm1332 = vmor %vm1330, %vm1331
      %v1333 = vsel %vm1332, %v1324, %v1329
      %v1334 = vmul.f32 %v1296, %v1323
      %v1335 = vmul.f32 %v1297, %v1323
      %v1336 = vmul.f32 %v1298, %v1333
      %v1337 = vmul.f32 %v1299, %v1333
      %vm1338 = vcmp.ge.f32.partialorder %v1334, 0.0
      %vm1339 = vcmp.ge.f32.partialorder %v1335, 0.0
      %vm1340 = vcmp.ge.f32.partialorder %v1336, 0.0
      %vm1341 = vcmp.ge.f32.partialorder %v1337, 0.0
      %v1342 = vmul.f32 %v1334, 0.01
      %v1343 = vmul.f32 %v1335, 0.01
      %v1344 = vmul.f32 %v1336, 0.01
      %v1345 = vmul.f32 %v1337, 0.01
      %v1346 = vsel %vm1338, %v1334, %v1342
      %v1347 = vsel %vm1339, %v1335, %v1343
      %v1348 = vsel %vm1340, %v1336, %v1344
      %v1349 = vsel %vm1341, %v1337, %v1345
      %1350 = vst.msk [vmem:[#allocation4] sm:$0xf] %vm733, 0
      %1351 = vst.msk [vmem:[#allocation4 + $0x10] sm:$0xf] %vm733, 0
      %1352 = vst.msk [vmem:[#allocation4 + $0xc] sm:$0xf] %vm736, 0
      %1353 = vst.msk [vmem:[#allocation4 + $0x1c] sm:$0xf] %vm736, 0
      %v1354 = vpack.c.bf16 %v1347, %v1346
      %v1355 = vpack.c.bf16 %v1349, %v1348
      %1356 = vst [vmem:[#allocation4 + $0x4] sm:$0xff] %v1354
      %1357 = vst [vmem:[#allocation4 + $0x14] sm:$0xff] %v1355
      %v1358 = vld [vmem:[#allocation4] sm:$0xff]
      %v1359 = vld [vmem:[#allocation4 + $0x8] sm:$0xf]
      %v1360 = vld [vmem:[#allocation4 + $0x10] sm:$0xff]
      %v1361 = vld [vmem:[#allocation4 + $0x18] sm:$0xf]
      %v1362 = vunpack.c.l.bf16 %v1358
      %v1363 = vunpack.c.h.bf16 %v1358
      %v1364 = vunpack.c.l.bf16 %v1359
      %v1365 = vunpack.c.l.bf16 %v1360
      %v1366 = vunpack.c.h.bf16 %v1360
      %v1367 = vunpack.c.l.bf16 %v1361
      %v1368 = vmul.f32 %v1362, %v780
      %v1369 = vmul.f32 %v1363, %v784
      %v1370 = vmul.f32 %v1364, %v782
      %v1371 = vmul.f32 %v1365, %v780
      %v1372 = vmul.f32 %v1366, %v784
      %v1373 = vmul.f32 %v1367, %v782
      %v1374 = vpack.c.bf16 %v1369, %v1368
      %v1375 = vpack.c.bf16 %v1370, %v1370
      %v1376 = vpack.c.bf16 %v1372, %v1371
      %v1377 = vpack.c.bf16 %v1373, %v1373
      %v1378 = vmul.f32 %v1362, %v824
      %v1379 = vmul.f32 %v1363, %v828
      %v1380 = vmul.f32 %v1364, %v826
      %v1381 = vmul.f32 %v1365, %v824
      %v1382 = vmul.f32 %v1366, %v828
      %v1383 = vmul.f32 %v1367, %v826
      %v1384 = vpack.c.bf16 %v1379, %v1378
      %v1385 = vpack.c.bf16 %v1380, %v1380
      %v1386 = vpack.c.bf16 %v1382, %v1381
      %v1387 = vpack.c.bf16 %v1383, %v1383
      %v1388 = vmul.f32 %v1362, %v853
      %v1389 = vmul.f32 %v1363, %v857
      %v1390 = vmul.f32 %v1364, %v855
      %v1391 = vmul.f32 %v1365, %v853
      %v1392 = vmul.f32 %v1366, %v857
      %v1393 = vmul.f32 %v1367, %v855
      %v1394 = vpack.c.bf16 %v1389, %v1388
      %v1395 = vpack.c.bf16 %v1390, %v1390
      %v1396 = vpack.c.bf16 %v1392, %v1391
      %v1397 = vpack.c.bf16 %v1393, %v1393
      %v1398 = vld [vmem:[#allocation4 + $0x4] sm:$0xff]
      %v1399 = vld [vmem:[#allocation4 + $0x14] sm:$0xff]
      %v1400 = vld [vmem:[#allocation4 + $0x4] sm:$0xff]
      %v1401 = vld [vmem:[#allocation4 + $0xc] sm:$0xf]
      %v1402 = vld [vmem:[#allocation4 + $0x14] sm:$0xff]
      %v1403 = vld [vmem:[#allocation4 + $0x1c] sm:$0xf]
      %v1404 = vunpack.c.l.bf16 %v1400
      %v1405 = vunpack.c.h.bf16 %v1400
      %v1406 = vunpack.c.l.bf16 %v1401
      %v1407 = vunpack.c.l.bf16 %v1402
      %v1408 = vunpack.c.h.bf16 %v1402
      %v1409 = vunpack.c.l.bf16 %v1403
      %v1410 = vmul.f32 %v1404, %v884
      %v1411 = vmul.f32 %v1405, %v888
      %v1412 = vmul.f32 %v1406, %v886
      %v1413 = vmul.f32 %v1407, %v884
      %v1414 = vmul.f32 %v1408, %v888
      %v1415 = vmul.f32 %v1409, %v886
      %v1416 = vpack.c.bf16 %v1411, %v1410
      %v1417 = vpack.c.bf16 %v1412, %v1412
      %v1418 = vpack.c.bf16 %v1414, %v1413
      %v1419 = vpack.c.bf16 %v1415, %v1415
      %v1420 = vmul.f32 %v1404, %v903
      %v1421 = vmul.f32 %v1405, %v907
      %v1422 = vmul.f32 %v1406, %v905
      %v1423 = vmul.f32 %v1407, %v903
      %v1424 = vmul.f32 %v1408, %v907
      %v1425 = vmul.f32 %v1409, %v905
      %v1426 = vpack.c.bf16 %v1421, %v1420
      %v1427 = vpack.c.bf16 %v1422, %v1422
      %v1428 = vpack.c.bf16 %v1424, %v1423
      %v1429 = vpack.c.bf16 %v1425, %v1425
      %v1430 = vmul.f32 %v1404, %v922
      %v1431 = vmul.f32 %v1405, %v926
      %v1432 = vmul.f32 %v1406, %v924
      %v1433 = vmul.f32 %v1407, %v922
      %v1434 = vmul.f32 %v1408, %v926
      %v1435 = vmul.f32 %v1409, %v924
      %v1436 = vpack.c.bf16 %v1431, %v1430
      %v1437 = vpack.c.bf16 %v1432, %v1432
      %v1438 = vpack.c.bf16 %v1434, %v1433
      %v1439 = vpack.c.bf16 %v1435, %v1435
      %v1444 = vunpack.c.l.b16 %v1374
      %v1445 = vunpack.c.h.b16 %v1374
      %v1446 = vunpack.c.l.b16 %v1375
      %v1447 = vunpack.c.l.b16 %v1376
      %v1448 = vunpack.c.h.b16 %v1376
      %v1449 = vunpack.c.l.b16 %v1377
      %v1450 = vpack.c.b16 %v1447, %v1444
      %v1451 = vpack.c.b16 %v1448, %v1445
      %v1452 = vpack.c.b16 %v1449, %v1446
      %v1457 = vunpack.c.l.b16 %v1358
      %v1458 = vunpack.c.h.b16 %v1358
      %v1459 = vunpack.c.l.b16 %v1359
      %v1460 = vunpack.c.l.b16 %v1360
      %v1461 = vunpack.c.h.b16 %v1360
      %v1462 = vunpack.c.l.b16 %v1361
      %v1463 = vpack.c.b16 %v1460, %v1457
      %v1464 = vpack.c.b16 %v1461, %v1458
      %v1465 = vpack.c.b16 %v1462, %v1459
      %1466 = vrot.lane.b32.xlu0 %v1463, 127
      %v1467 = vpop.permute.xlu0 %1466
      %1468 = vrot.lane.b32.xlu0 %v1464, 127
      %v1469 = vpop.permute.xlu0 %1468
      %1470 = vrot.lane.b32.xlu0 %v1465, 127
      %v1471 = vpop.permute.xlu0 %1470
      %v1472 = vsel %vm972, %v1467, %v1469
      %v1473 = vsel %vm972, %v1469, %v1471
      %v1478 = vunpack.c.l.b16 %v1384
      %v1479 = vunpack.c.h.b16 %v1384
      %v1480 = vunpack.c.l.b16 %v1385
      %v1481 = vunpack.c.l.b16 %v1386
      %v1482 = vunpack.c.h.b16 %v1386
      %v1483 = vunpack.c.l.b16 %v1387
      %v1484 = vpack.c.b16 %v1481, %v1478
      %v1485 = vpack.c.b16 %v1482, %v1479
      %v1486 = vpack.c.b16 %v1483, %v1480
      %1487 = vrot.lane.b32.xlu0 %v1484, 126
      %v1488 = vpop.permute.xlu0 %1487
      %1489 = vrot.lane.b32.xlu0 %v1485, 126
      %v1490 = vpop.permute.xlu0 %1489
      %1491 = vrot.lane.b32.xlu0 %v1486, 126
      %v1492 = vpop.permute.xlu0 %1491
      %v1493 = vsel %vm994, %v1488, %v1490
      %v1494 = vsel %vm994, %v1490, %v1492
      %v1499 = vunpack.c.l.b16 %v1394
      %v1500 = vunpack.c.h.b16 %v1394
      %v1501 = vunpack.c.l.b16 %v1395
      %v1502 = vunpack.c.l.b16 %v1396
      %v1503 = vunpack.c.h.b16 %v1396
      %v1504 = vunpack.c.l.b16 %v1397
      %v1505 = vpack.c.b16 %v1502, %v1499
      %v1506 = vpack.c.b16 %v1503, %v1500
      %v1507 = vpack.c.b16 %v1504, %v1501
      %1508 = vrot.lane.b32.xlu0 %v1505, 112
      %v1509 = vpop.permute.xlu0 %1508
      %1510 = vrot.lane.b32.xlu0 %v1506, 112
      %v1511 = vpop.permute.xlu0 %1510
      %1512 = vrot.lane.b32.xlu0 %v1507, 112
      %v1513 = vpop.permute.xlu0 %1512
      %v1514 = vsel %vm1016, %v1509, %v1511
      %v1515 = vsel %vm1016, %v1511, %v1513
      %v1518 = vunpack.c.l.b16 %v1398
      %v1519 = vunpack.c.h.b16 %v1398
      %v1520 = vunpack.c.l.b16 %v1399
      %v1521 = vunpack.c.h.b16 %v1399
      %v1522 = vpack.c.b16 %v1520, %v1518
      %v1523 = vpack.c.b16 %v1521, %v1519
      %1524 = vrot.lane.b32.xlu0 %v1522, 111
      %v1525 = vpop.permute.xlu0 %1524
      %1526 = vrot.lane.b32.xlu0 %v1523, 111
      %v1527 = vpop.permute.xlu0 %1526
      %v1528 = vsel %vm1031, %v1525, %v1527
      %v1533 = vunpack.c.l.b16 %v1416
      %v1534 = vunpack.c.h.b16 %v1416
      %v1535 = vunpack.c.l.b16 %v1417
      %v1536 = vunpack.c.l.b16 %v1418
      %v1537 = vunpack.c.h.b16 %v1418
      %v1538 = vunpack.c.l.b16 %v1419
      %v1539 = vpack.c.b16 %v1536, %v1533
      %v1540 = vpack.c.b16 %v1537, %v1534
      %v1541 = vpack.c.b16 %v1538, %v1535
      %1542 = vrot.lane.b32.xlu0 %v1539, 110
      %v1543 = vpop.permute.xlu0 %1542
      %1544 = vrot.lane.b32.xlu0 %v1540, 110
      %v1545 = vpop.permute.xlu0 %1544
      %1546 = vrot.lane.b32.xlu0 %v1541, 110
      %v1547 = vpop.permute.xlu0 %1546
      %v1548 = vsel %vm1052, %v1543, %v1545
      %v1549 = vsel %vm1052, %v1545, %v1547
      %v1554 = vunpack.c.l.b16 %v1426
      %v1555 = vunpack.c.h.b16 %v1426
      %v1556 = vunpack.c.l.b16 %v1427
      %v1557 = vunpack.c.l.b16 %v1428
      %v1558 = vunpack.c.h.b16 %v1428
      %v1559 = vunpack.c.l.b16 %v1429
      %v1560 = vpack.c.b16 %v1557, %v1554
      %v1561 = vpack.c.b16 %v1558, %v1555
      %v1562 = vpack.c.b16 %v1559, %v1556
      %1563 = vrot.lane.b32.xlu0 %v1560, 96
      %v1564 = vpop.permute.xlu0 %1563
      %1565 = vrot.lane.b32.xlu0 %v1561, 96
      %v1566 = vpop.permute.xlu0 %1565
      %1567 = vrot.lane.b32.xlu0 %v1562, 96
      %v1568 = vpop.permute.xlu0 %1567
      %v1569 = vsel %vm1074, %v1564, %v1566
      %v1570 = vsel %vm1074, %v1566, %v1568
      %v1575 = vunpack.c.l.b16 %v1400
      %v1576 = vunpack.c.h.b16 %v1400
      %v1577 = vunpack.c.l.b16 %v1401
      %v1578 = vunpack.c.l.b16 %v1402
      %v1579 = vunpack.c.h.b16 %v1402
      %v1580 = vunpack.c.l.b16 %v1403
      %v1581 = vpack.c.b16 %v1578, %v1575
      %v1582 = vpack.c.b16 %v1579, %v1576
      %v1583 = vpack.c.b16 %v1580, %v1577
      %1584 = vrot.lane.b32.xlu0 %v1581, 95
      %v1585 = vpop.permute.xlu0 %1584
      %1586 = vrot.lane.b32.xlu0 %v1582, 95
      %v1587 = vpop.permute.xlu0 %1586
      %1588 = vrot.lane.b32.xlu0 %v1583, 95
      %v1589 = vpop.permute.xlu0 %1588
      %v1590 = vsel %vm1096, %v1585, %v1587
      %v1591 = vsel %vm1096, %v1587, %v1589
      %v1596 = vunpack.c.l.b16 %v1436
      %v1597 = vunpack.c.h.b16 %v1436
      %v1598 = vunpack.c.l.b16 %v1437
      %v1599 = vunpack.c.l.b16 %v1438
      %v1600 = vunpack.c.h.b16 %v1438
      %v1601 = vunpack.c.l.b16 %v1439
      %v1602 = vpack.c.b16 %v1599, %v1596
      %v1603 = vpack.c.b16 %v1600, %v1597
      %v1604 = vpack.c.b16 %v1601, %v1598
      %1605 = vrot.lane.b32.xlu0 %v1602, 94
      %v1606 = vpop.permute.xlu0 %1605
      %1607 = vrot.lane.b32.xlu0 %v1603, 94
      %v1608 = vpop.permute.xlu0 %1607
      %1609 = vrot.lane.b32.xlu0 %v1604, 94
      %v1610 = vpop.permute.xlu0 %1609
      %v1611 = vsel %vm1118, %v1606, %v1608
      %v1612 = vsel %vm1118, %v1608, %v1610
      %1614 = vst [vmem:[#allocation1] ss:$4 sm:$0xff] %v367
      %v1615 = vld.sshfl [vmem:[#allocation1] sm:$0xff pattern:$0x73625140]
      %v1616 = vld.sshfl [vmem:[#allocation1 + $0x8] sm:$0xff pattern:$0x73625140]
      %1618 = vrot.lane.b32.xlu0 %v1450, 17
      %v1619 = vpop.permute.xlu0 %1618
      %1620 = vrot.lane.b32.xlu0 %v1451, 17
      %v1621 = vpop.permute.xlu0 %1620
      %1622 = vrot.lane.b32.xlu0 %v1452, 17
      %v1623 = vpop.permute.xlu0 %1622
      %1624 = vrot.lane.b32.xlu0 %v1472, 17
      %v1625 = vpop.permute.xlu0 %1624
      %1626 = vrot.lane.b32.xlu0 %v1473, 17
      %v1627 = vpop.permute.xlu0 %1626
      %1628 = vrot.lane.b32.xlu0 %v1471, 17
      %v1629 = vpop.permute.xlu0 %1628
      %1630 = vrot.lane.b32.xlu0 %v1493, 17
      %v1631 = vpop.permute.xlu0 %1630
      %1632 = vrot.lane.b32.xlu0 %v1494, 17
      %v1633 = vpop.permute.xlu0 %1632
      %1634 = vrot.lane.b32.xlu0 %v1492, 17
      %v1635 = vpop.permute.xlu0 %1634
      %1636 = vrot.lane.b32.xlu0 %v1514, 17
      %v1637 = vpop.permute.xlu0 %1636
      %1638 = vrot.lane.b32.xlu0 %v1515, 17
      %v1639 = vpop.permute.xlu0 %1638
      %1640 = vrot.lane.b32.xlu0 %v1513, 17
      %v1641 = vpop.permute.xlu0 %1640
      %1642 = vrot.lane.b32.xlu0 %v1525, 17
      %v1643 = vpop.permute.xlu0 %1642
      %1644 = vrot.lane.b32.xlu0 %v1528, 17
      %v1645 = vpop.permute.xlu0 %1644
      %1646 = vrot.lane.b32.xlu0 %v1527, 17
      %v1647 = vpop.permute.xlu0 %1646
      %1648 = vrot.lane.b32.xlu0 %v1543, 17
      %v1649 = vpop.permute.xlu0 %1648
      %1650 = vrot.lane.b32.xlu0 %v1548, 17
      %v1651 = vpop.permute.xlu0 %1650
      %1652 = vrot.lane.b32.xlu0 %v1549, 17
      %v1653 = vpop.permute.xlu0 %1652
      %1654 = vrot.lane.b32.xlu0 %v1564, 17
      %v1655 = vpop.permute.xlu0 %1654
      %1656 = vrot.lane.b32.xlu0 %v1569, 17
      %v1657 = vpop.permute.xlu0 %1656
      %1658 = vrot.lane.b32.xlu0 %v1570, 17
      %v1659 = vpop.permute.xlu0 %1658
      %1660 = vrot.lane.b32.xlu0 %v1585, 17
      %v1661 = vpop.permute.xlu0 %1660
      %1662 = vrot.lane.b32.xlu0 %v1590, 17
      %v1663 = vpop.permute.xlu0 %1662
      %1664 = vrot.lane.b32.xlu0 %v1591, 17
      %v1665 = vpop.permute.xlu0 %1664
      %1666 = vrot.lane.b32.xlu0 %v1606, 17
      %v1667 = vpop.permute.xlu0 %1666
      %1668 = vrot.lane.b32.xlu0 %v1611, 17
      %v1669 = vpop.permute.xlu0 %1668
      %1670 = vrot.lane.b32.xlu0 %v1612, 17
      %v1671 = vpop.permute.xlu0 %1670
      %v1672 = vsel %vm1184, %v1619, %v1621
      %v1673 = vsel %vm1184, %v1621, %v1623
      %v1674 = vsel %vm1184, %v1625, %v1627
      %v1675 = vsel %vm1184, %v1627, %v1629
      %v1676 = vsel %vm1184, %v1631, %v1633
      %v1677 = vsel %vm1184, %v1633, %v1635
      %v1678 = vsel %vm1184, %v1637, %v1639
      %v1679 = vsel %vm1184, %v1639, %v1641
      %v1680 = vsel %vm1184, %v1643, %v1645
      %v1681 = vsel %vm1184, %v1645, %v1647
      %v1682 = vsel %vm1184, %v1649, %v1651
      %v1683 = vsel %vm1184, %v1651, %v1653
      %v1684 = vsel %vm1184, %v1655, %v1657
      %v1685 = vsel %vm1184, %v1657, %v1659
      %v1686 = vsel %vm1184, %v1661, %v1663
      %v1687 = vsel %vm1184, %v1663, %v1665
      %v1688 = vsel %vm1184, %v1667, %v1669
      %v1689 = vsel %vm1184, %v1669, %v1671
      %v1708 = vsel %vm1221, %v1616, 0
      %1710 = vmatpush.bf16.msra.mxu0 %v1686
      %1711 = vmatpush.bf16.msra.mxu0 %v1684
      %1712 = vmatpush.bf16.msra.mxu0 %v1682
      %1713 = vmatpush.bf16.msra.mxu0 %v1680
      %1714 = vmatpush.bf16.msra.mxu0 %v1678
      %1715 = vmatpush.bf16.msra.mxu0 %v1676
      %1716 = vmatpush.bf16.msra.mxu0 %v1674
      %1717 = vmatpush.bf16.msra.mxu0 %v1672
      %1718 = vmatmul.bf16.gmra.mxu0 %v1615
      %v1719 = vpop.f32.mrf.mxu0
      %v1720 = vadd.f32 0.0, %v1719
      %v1721 = vpop.f32.mrf.mxu0
      %1722 = vdwg.mxu0
      %1723 = vmatpush.bf16.msra.mxu0 0
      %1724 = vmatpush.bf16.msra.mxu0 0
      %1725 = vmatpush.bf16.msra.mxu0 0
      %1726 = vmatpush.bf16.msra.mxu0 0
      %1727 = vmatpush.bf16.msra.mxu0 0
      %1728 = vmatpush.bf16.msra.mxu0 0
      %1729 = vmatpush.bf16.msra.mxu0 0
      %1730 = vmatpush.bf16.msra.mxu0 %v1688
      %1731 = vmatmul.bf16.gmra.mxu0 %v1708
      %v1732 = vpop.f32.mrf.mxu0
      %v1733 = vadd.f32 %v1720, %v1732
      %v1734 = vpop.f32.mrf.mxu0
      %1735 = vdwg.mxu0
      %1736 = vmatpush.bf16.msra.mxu0 %v1687
      %1737 = vmatpush.bf16.msra.mxu0 %v1685
      %1738 = vmatpush.bf16.msra.mxu0 %v1683
      %1739 = vmatpush.bf16.msra.mxu0 %v1681
      %1740 = vmatpush.bf16.msra.mxu0 %v1679
      %1741 = vmatpush.bf16.msra.mxu0 %v1677
      %1742 = vmatpush.bf16.msra.mxu0 %v1675
      %1743 = vmatpush.bf16.msra.mxu0 %v1673
      %1744 = vmatmul.bf16.gmra.mxu0 %v1615
      %v1745 = vpop.f32.mrf.mxu0
      %v1746 = vadd.f32 0.0, %v1745
      %v1747 = vpop.f32.mrf.mxu0
      %1748 = vdwg.mxu0
      %1749 = vmatpush.bf16.msra.mxu0 0
      %1750 = vmatpush.bf16.msra.mxu0 0
      %1751 = vmatpush.bf16.msra.mxu0 0
      %1752 = vmatpush.bf16.msra.mxu0 0
      %1753 = vmatpush.bf16.msra.mxu0 0
      %1754 = vmatpush.bf16.msra.mxu0 0
      %1755 = vmatpush.bf16.msra.mxu0 0
      %1756 = vmatpush.bf16.msra.mxu0 %v1689
      %1757 = vmatmul.bf16.gmra.mxu0 %v1708
      %v1758 = vpop.f32.mrf.mxu0
      %v1759 = vadd.f32 %v1746, %v1758
      %v1760 = vpop.f32.mrf.mxu0
      %1761 = vdwg.mxu0
      %v1762 = vsel %vm414, %v1733, 0.0
      %v1763 = vsel %vm414, %v1759, 0.0
      %v1764 = vadd.f32 %v1762, %v1763
      %1765 = vadd.xlane.f32.xlu0 %v1764
      %v1766 = vpop.xlane.xlu0 %1765
      %v1767 = vmul.f32 %v1766, %v1293
      %v1768 = vsub.f32 %v1733, %v1767
      %v1769 = vsub.f32 %v1759, %v1767
      %v1770 = vmul.f32 %v1768, %v1768
      %v1771 = vmul.f32 %v1769, %v1769
      %v1772 = vsel %vm414, %v1770, 0.0
      %v1773 = vsel %vm414, %v1771, 0.0
      %v1774 = vadd.f32 %v1772, %v1773
      %1775 = vadd.xlane.f32.xlu0 %v1774
      %v1776 = vpop.xlane.xlu0 %1775
      %v1777 = vmul.f32 %v1776, %v1293
      %v1778 = vadd.f32 %v1777, 1e-05
      %v1779 = vrsqrt.pop %v1778
      %v1780 = vmul.f32 %v1779, %v1778
      %v1781 = vmul.f32 %v1780, %v1779
      %v1782 = vmul.f32 0.5, %v1781
      %v1783 = vsub.f32 1.5, %v1782
      %v1784 = vmul.f32 %v1779, %v1783
      %vm1785 = vweird.f32 %v1778
      %vm1786 = vweird.f32 %v1779
      %vm1787 = vmor %vm1785, %vm1786
      %v1788 = vsel %vm1787, %v1779, %v1784
      %v1789 = vmul.f32 %v1768, %v1788
      %v1790 = vmul.f32 %v1769, %v1788
      %vm1791 = vcmp.ge.f32.partialorder %v1789, 0.0
      %vm1792 = vcmp.ge.f32.partialorder %v1790, 0.0
      %v1793 = vmul.f32 %v1789, 0.01
      %v1794 = vmul.f32 %v1790, 0.01
      %v1795 = vsel %vm1791, %v1789, %v1793
      %v1796 = vsel %vm1792, %v1790, %v1794
      %v1797 = vpack.c.bf16 %v1795, %v1795
      %v1798 = vpack.c.bf16 %v1796, %v1796
      %vm1799 = vcmask 31744
      %v1801 = vsel %vm1799, %v368, 0
      %v1804 = vsel %vm453, %v1797, 0
      %v1807 = vsel %vm453, %v1798, 0
      %1809 = vmatpush.bf16.msra.mxu0 0
      %1810 = vmatpush.bf16.msra.mxu0 0
      %1811 = vmatpush.bf16.msra.mxu0 0
      %1812 = vmatpush.bf16.msra.mxu0 0
      %1813 = vmatpush.bf16.msra.mxu0 0
      %1814 = vmatpush.bf16.msra.mxu0 0
      %1815 = vmatpush.bf16.msra.mxu0 0
      %1816 = vmatpush.bf16.msra.mxu0 %v1804
      %1817 = vmatmul.bf16.gmra.mxu0 %v1801
      %v1818 = vpop.f32.mrf.mxu0
      %v1819 = vadd.f32 0.0, %v1818
      %v1820 = vpop.f32.mrf.mxu0
      %1821 = vdwg.mxu0
      %1822 = vmatpush.bf16.msra.mxu0 0
      %1823 = vmatpush.bf16.msra.mxu0 0
      %1824 = vmatpush.bf16.msra.mxu0 0
      %1825 = vmatpush.bf16.msra.mxu0 0
      %1826 = vmatpush.bf16.msra.mxu0 0
      %1827 = vmatpush.bf16.msra.mxu0 0
      %1828 = vmatpush.bf16.msra.mxu0 0
      %1829 = vmatpush.bf16.msra.mxu0 %v1807
      %1830 = vmatmul.bf16.gmra.mxu0 %v1801
      %v1831 = vpop.f32.mrf.mxu0
      %v1832 = vadd.f32 0.0, %v1831
      %v1833 = vpop.f32.mrf.mxu0
      %1834 = vdwg.mxu0
      %v1835 = vsel %vm414, %v1819, 0.0
      %v1836 = vsel %vm414, %v1832, 0.0
      %v1837 = vadd.f32 %v1835, %v1836
      %1838 = vadd.xlane.f32.xlu0 %v1837
      %v1839 = vpop.xlane.xlu0 %1838
      %v1840 = vmul.f32 %v1839, %v1293
      %v1841 = vsub.f32 %v1819, %v1840
      %v1842 = vsub.f32 %v1832, %v1840
      %v1843 = vmul.f32 %v1841, %v1841
      %v1844 = vmul.f32 %v1842, %v1842
      %v1845 = vsel %vm414, %v1843, 0.0
      %v1846 = vsel %vm414, %v1844, 0.0
      %v1847 = vadd.f32 %v1845, %v1846
      %1848 = vadd.xlane.f32.xlu0 %v1847
      %v1849 = vpop.xlane.xlu0 %1848
      %v1850 = vmul.f32 %v1849, %v1293
      %v1851 = vadd.f32 %v1850, 1e-05
      %v1852 = vrsqrt.pop %v1851
      %v1853 = vmul.f32 %v1852, %v1851
      %v1854 = vmul.f32 %v1853, %v1852
      %v1855 = vmul.f32 0.5, %v1854
      %v1856 = vsub.f32 1.5, %v1855
      %v1857 = vmul.f32 %v1852, %v1856
      %vm1858 = vweird.f32 %v1851
      %vm1859 = vweird.f32 %v1852
      %vm1860 = vmor %vm1858, %vm1859
      %v1861 = vsel %vm1860, %v1852, %v1857
      %v1862 = vmul.f32 %v1841, %v1861
      %v1863 = vmul.f32 %v1842, %v1861
      %vm1864 = vcmp.ge.f32.partialorder %v1862, 0.0
      %vm1865 = vcmp.ge.f32.partialorder %v1863, 0.0
      %v1866 = vmul.f32 %v1862, 0.01
      %v1867 = vmul.f32 %v1863, 0.01
      %v1868 = vsel %vm1864, %v1862, %v1866
      %v1869 = vsel %vm1865, %v1863, %v1867
      %v1872 = vrot.slane %v1869, 4
      %v1873 = vsel %vm414, %v1868, %v1872
      %1875 = vst [vmem:[%s361] sm:$0xff] %v1873
      %s1876 = scalar_lea.vmem %s347, 4
      %v1877 = vld [vmem:[%s1876] sm:$0xf]
      %v1879 = vsel %vm414, %v1877, 0
      %1881 = vmatpush.bf16.msra.mxu0 0
      %1882 = vmatpush.bf16.msra.mxu0 0
      %1883 = vmatpush.bf16.msra.mxu0 0
      %1884 = vmatpush.bf16.msra.mxu0 0
      %1885 = vmatpush.bf16.msra.mxu0 0
      %1886 = vmatpush.bf16.msra.mxu0 0
      %1887 = vmatpush.bf16.msra.mxu0 0
      %1888 = vmatpush.bf16.msra.mxu0 %v1879
      %1889 = vmatmul.bf16.gmra.mxu0 %v412
      %v1890 = vpop.f32.mrf.mxu0
      %v1891 = vadd.f32 0.0, %v1890
      %v1892 = vpop.f32.mrf.mxu0
      %1893 = vdwg.mxu0
      %v1894 = vpack.c.bf16 %v1891, %v1891
      %s1895 = scalar_lea.vmem [#allocation2], 4
      %1896 = vst.msk [vmem:[%s1895] sm:$0x3] %vm432, %v1894
      %1897 = vmatpush.bf16.msra.mxu0 0
      %1898 = vmatpush.bf16.msra.mxu0 0
      %1899 = vmatpush.bf16.msra.mxu0 0
      %1900 = vmatpush.bf16.msra.mxu0 0
      %1901 = vmatpush.bf16.msra.mxu0 0
      %1902 = vmatpush.bf16.msra.mxu0 0
      %1903 = vmatpush.bf16.msra.mxu0 0
      %1904 = vmatpush.bf16.msra.mxu0 %v1879
      %1905 = vmatmul.bf16.gmra.mxu0 %v435
      %v1906 = vpop.f32.mrf.mxu0
      %v1907 = vadd.f32 0.0, %v1906
      %v1908 = vpop.f32.mrf.mxu0
      %1909 = vdwg.mxu0
      %v1910 = vpack.c.bf16 %v1907, %v1907
      %v1912 = vrot.slane %v1910, 2
      %v1915 = vsel %vm453, %v1910, %v1912
      %1917 = vrot.lane.b32.xlu0 %v1915, 64
      %v1918 = vpop.permute.xlu0 %1917
      %1920 = vst.msk [vmem:[%s1895] sm:$0x3] %vm461, %v1918
      %1921 = vmatpush.bf16.msra.mxu0 0
      %1922 = vmatpush.bf16.msra.mxu0 0
      %1923 = vmatpush.bf16.msra.mxu0 0
      %1924 = vmatpush.bf16.msra.mxu0 0
      %1925 = vmatpush.bf16.msra.mxu0 0
      %1926 = vmatpush.bf16.msra.mxu0 0
      %1927 = vmatpush.bf16.msra.mxu0 0
      %1928 = vmatpush.bf16.msra.mxu0 %v1879
      %1929 = vmatmul.bf16.gmra.mxu0 %v464
      %v1930 = vpop.f32.mrf.mxu0
      %v1931 = vadd.f32 0.0, %v1930
      %v1932 = vpop.f32.mrf.mxu0
      %1933 = vdwg.mxu0
      %v1934 = vpack.c.bf16 %v1931, %v1931
      %1935 = vst.msk [vmem:[%s1895 + $0x2] sm:$0x3] %vm432, %v1934
      %1936 = vmatpush.bf16.msra.mxu0 0
      %1937 = vmatpush.bf16.msra.mxu0 0
      %1938 = vmatpush.bf16.msra.mxu0 0
      %1939 = vmatpush.bf16.msra.mxu0 0
      %1940 = vmatpush.bf16.msra.mxu0 0
      %1941 = vmatpush.bf16.msra.mxu0 0
      %1942 = vmatpush.bf16.msra.mxu0 0
      %1943 = vmatpush.bf16.msra.mxu0 %v1879
      %1944 = vmatmul.bf16.gmra.mxu0 %v482
      %v1945 = vpop.f32.mrf.mxu0
      %v1946 = vadd.f32 0.0, %v1945
      %v1947 = vpop.f32.mrf.mxu0
      %1948 = vdwg.mxu0
      %v1949 = vpack.c.bf16 %v1946, %v1946
      %v1951 = vrot.slane %v1949, 2
      %v1954 = vsel %vm453, %v1949, %v1951
      %1956 = vrot.lane.b32.xlu0 %v1954, 64
      %v1957 = vpop.permute.xlu0 %1956
      %1959 = vst.msk [vmem:[%s1895 + $0x2] sm:$0x3] %vm461, %v1957
      %v1960 = vld [vmem:[%s1895] sm:$0xf]
      %1962 = vst [vmem:[#allocation1] ss:$4 sm:$0xff] %v1960
      %v1963 = vld.sshfl [vmem:[#allocation1] sm:$0xff pattern:$0x73625140]
      %v1964 = vld.sshfl [vmem:[#allocation1 + $0x8] sm:$0xff pattern:$0x73625140]
      %1967 = vmatpush.bf16.msra.mxu0 %v625
      %1968 = vmatpush.bf16.msra.mxu0 %v623
      %1969 = vmatpush.bf16.msra.mxu0 %v621
      %1970 = vmatpush.bf16.msra.mxu0 %v619
      %1971 = vmatpush.bf16.msra.mxu0 %v617
      %1972 = vmatpush.bf16.msra.mxu0 %v615
      %1973 = vmatpush.bf16.msra.mxu0 %v613
      %1974 = vmatpush.bf16.msra.mxu0 %v611
      %1975 = vmatmul.bf16.gmra.mxu0 %v1963
      %v1976 = vpop.f32.mrf.mxu0
      %v1977 = vadd.f32 0.0, %v1976
      %v1978 = vpop.f32.mrf.mxu0
      %1979 = vdwg.mxu0
      %1980 = vmatpush.bf16.msra.mxu0 %v641
      %1981 = vmatpush.bf16.msra.mxu0 %v639
      %1982 = vmatpush.bf16.msra.mxu0 %v637
      %1983 = vmatpush.bf16.msra.mxu0 %v635
      %1984 = vmatpush.bf16.msra.mxu0 %v633
      %1985 = vmatpush.bf16.msra.mxu0 %v631
      %1986 = vmatpush.bf16.msra.mxu0 %v629
      %1987 = vmatpush.bf16.msra.mxu0 %v627
      %1988 = vmatmul.bf16.gmra.mxu0 %v1964
      %v1989 = vpop.f32.mrf.mxu0
      %v1990 = vadd.f32 %v1977, %v1989
      %v1991 = vpop.f32.mrf.mxu0
      %1992 = vdwg.mxu0
      %1993 = vmatpush.bf16.msra.mxu0 %v626
      %1994 = vmatpush.bf16.msra.mxu0 %v624
      %1995 = vmatpush.bf16.msra.mxu0 %v622
      %1996 = vmatpush.bf16.msra.mxu0 %v620
      %1997 = vmatpush.bf16.msra.mxu0 %v618
      %1998 = vmatpush.bf16.msra.mxu0 %v616
      %1999 = vmatpush.bf16.msra.mxu0 %v614
      %2000 = vmatpush.bf16.msra.mxu0 %v612
      %2001 = vmatmul.bf16.gmra.mxu0 %v1963
      %v2002 = vpop.f32.mrf.mxu0
      %v2003 = vadd.f32 0.0, %v2002
      %v2004 = vpop.f32.mrf.mxu0
      %2005 = vdwg.mxu0
      %2006 = vmatpush.bf16.msra.mxu0 %v642
      %2007 = vmatpush.bf16.msra.mxu0 %v640
      %2008 = vmatpush.bf16.msra.mxu0 %v638
      %2009 = vmatpush.bf16.msra.mxu0 %v636
      %2010 = vmatpush.bf16.msra.mxu0 %v634
      %2011 = vmatpush.bf16.msra.mxu0 %v632
      %2012 = vmatpush.bf16.msra.mxu0 %v630
      %2013 = vmatpush.bf16.msra.mxu0 %v628
      %2014 = vmatmul.bf16.gmra.mxu0 %v1964
      %v2015 = vpop.f32.mrf.mxu0
      %v2016 = vadd.f32 %v2003, %v2015
      %v2017 = vpop.f32.mrf.mxu0
      %2018 = vdwg.mxu0
      %v2021 = vrot.slane %v2016, 4
      %v2022 = vsel %vm414, %v1990, %v2021
      %v2024 = vadd.f32 %v401, %v2022
      %s2025 = scalar_lea.vmem [#allocation3], 32
      %2026 = vst.msk [vmem:[%s2025] sm:$0xf] %vm733, 0
      %2027 = vst.msk [vmem:[%s2025 + $0x10] sm:$0xf] %vm733, 0
      %2028 = vst.msk [vmem:[%s2025 + $0xc] sm:$0xf] %vm736, 0
      %2029 = vst.msk [vmem:[%s2025 + $0x1c] sm:$0xf] %vm736, 0
      %2030 = vst [vmem:[%s2025 + $0x4] sm:$0xcc] 0
      %2031 = vst [vmem:[%s2025 + $0x14] sm:$0xcc] 0
      %s2032 = scalar_lea.vmem %s354, 4
      %v2033 = vld [vmem:[%s2032] sm:$0xf]
      %2035 = vst [vmem:[#allocation1] ss:$2 sm:$0xff] %v2033
      %v2036 = vld.sshfl [vmem:[#allocation1] sm:$0xff pattern:$0x75643120]
      %2038 = vst [vmem:[%s2025 + $0x4] sm:$0x33] %v2036
      %2040 = vst [vmem:[#allocation1] ss:$2 sm:$0xff] %v2024
      %v2041 = vld.sshfl [vmem:[#allocation1] sm:$0xff pattern:$0x75316420]
      %v2042 = vld.sshfl [vmem:[#allocation1 + $0x8] sm:$0xff pattern:$0x75316420]
      %v2045 = vpack.c.bf16 %v2042, %v2041
      %2046 = vst [vmem:[%s2025 + $0x14] sm:$0x33] %v2045
      %v2047 = vld [vmem:[%s2025] sm:$0xff]
      %v2048 = vld [vmem:[%s2025 + $0x8] sm:$0xf]
      %v2049 = vld [vmem:[%s2025 + $0x10] sm:$0xff]
      %v2050 = vld [vmem:[%s2025 + $0x18] sm:$0xf]
      %v2051 = vunpack.c.l.bf16 %v2047
      %v2052 = vunpack.c.h.bf16 %v2047
      %v2053 = vunpack.c.l.bf16 %v2048
      %v2054 = vunpack.c.l.bf16 %v2049
      %v2055 = vunpack.c.h.bf16 %v2049
      %v2056 = vunpack.c.l.bf16 %v2050
      %v2057 = vmul.f32 %v2051, %v780
      %v2058 = vmul.f32 %v2052, %v784
      %v2059 = vmul.f32 %v2053, %v782
      %v2060 = vmul.f32 %v2054, %v780
      %v2061 = vmul.f32 %v2055, %v784
      %v2062 = vmul.f32 %v2056, %v782
      %v2063 = vpack.c.bf16 %v2058, %v2057
      %v2064 = vpack.c.bf16 %v2059, %v2059
      %v2065 = vpack.c.bf16 %v2061, %v2060
      %v2066 = vpack.c.bf16 %v2062, %v2062
      %v2067 = vmul.f32 %v2051, %v824
      %v2068 = vmul.f32 %v2052, %v828
      %v2069 = vmul.f32 %v2053, %v826
      %v2070 = vmul.f32 %v2054, %v824
      %v2071 = vmul.f32 %v2055, %v828
      %v2072 = vmul.f32 %v2056, %v826
      %v2073 = vpack.c.bf16 %v2068, %v2067
      %v2074 = vpack.c.bf16 %v2069, %v2069
      %v2075 = vpack.c.bf16 %v2071, %v2070
      %v2076 = vpack.c.bf16 %v2072, %v2072
      %v2077 = vmul.f32 %v2051, %v853
      %v2078 = vmul.f32 %v2052, %v857
      %v2079 = vmul.f32 %v2053, %v855
      %v2080 = vmul.f32 %v2054, %v853
      %v2081 = vmul.f32 %v2055, %v857
      %v2082 = vmul.f32 %v2056, %v855
      %v2083 = vpack.c.bf16 %v2078, %v2077
      %v2084 = vpack.c.bf16 %v2079, %v2079
      %v2085 = vpack.c.bf16 %v2081, %v2080
      %v2086 = vpack.c.bf16 %v2082, %v2082
      %v2087 = vld [vmem:[%s2025 + $0x4] sm:$0xff]
      %v2088 = vld [vmem:[%s2025 + $0x14] sm:$0xff]
      %v2089 = vld [vmem:[%s2025 + $0x4] sm:$0xff]
      %v2090 = vld [vmem:[%s2025 + $0xc] sm:$0xf]
      %v2091 = vld [vmem:[%s2025 + $0x14] sm:$0xff]
      %v2092 = vld [vmem:[%s2025 + $0x1c] sm:$0xf]
      %v2093 = vunpack.c.l.bf16 %v2089
      %v2094 = vunpack.c.h.bf16 %v2089
      %v2095 = vunpack.c.l.bf16 %v2090
      %v2096 = vunpack.c.l.bf16 %v2091
      %v2097 = vunpack.c.h.bf16 %v2091
      %v2098 = vunpack.c.l.bf16 %v2092
      %v2099 = vmul.f32 %v2093, %v884
      %v2100 = vmul.f32 %v2094, %v888
      %v2101 = vmul.f32 %v2095, %v886
      %v2102 = vmul.f32 %v2096, %v884
      %v2103 = vmul.f32 %v2097, %v888
      %v2104 = vmul.f32 %v2098, %v886
      %v2105 = vpack.c.bf16 %v2100, %v2099
      %v2106 = vpack.c.bf16 %v2101, %v2101
      %v2107 = vpack.c.bf16 %v2103, %v2102
      %v2108 = vpack.c.bf16 %v2104, %v2104
      %v2109 = vmul.f32 %v2093, %v903
      %v2110 = vmul.f32 %v2094, %v907
      %v2111 = vmul.f32 %v2095, %v905
      %v2112 = vmul.f32 %v2096, %v903
      %v2113 = vmul.f32 %v2097, %v907
      %v2114 = vmul.f32 %v2098, %v905
      %v2115 = vpack.c.bf16 %v2110, %v2109
      %v2116 = vpack.c.bf16 %v2111, %v2111
      %v2117 = vpack.c.bf16 %v2113, %v2112
      %v2118 = vpack.c.bf16 %v2114, %v2114
      %v2119 = vmul.f32 %v2093, %v922
      %v2120 = vmul.f32 %v2094, %v926
      %v2121 = vmul.f32 %v2095, %v924
      %v2122 = vmul.f32 %v2096, %v922
      %v2123 = vmul.f32 %v2097, %v926
      %v2124 = vmul.f32 %v2098, %v924
      %v2125 = vpack.c.bf16 %v2120, %v2119
      %v2126 = vpack.c.bf16 %v2121, %v2121
      %v2127 = vpack.c.bf16 %v2123, %v2122
      %v2128 = vpack.c.bf16 %v2124, %v2124
      %v2133 = vunpack.c.l.b16 %v2063
      %v2134 = vunpack.c.h.b16 %v2063
      %v2135 = vunpack.c.l.b16 %v2064
      %v2136 = vunpack.c.l.b16 %v2065
      %v2137 = vunpack.c.h.b16 %v2065
      %v2138 = vunpack.c.l.b16 %v2066
      %v2139 = vpack.c.b16 %v2136, %v2133
      %v2140 = vpack.c.b16 %v2137, %v2134
      %v2141 = vpack.c.b16 %v2138, %v2135
      %v2146 = vunpack.c.l.b16 %v2047
      %v2147 = vunpack.c.h.b16 %v2047
      %v2148 = vunpack.c.l.b16 %v2048
      %v2149 = vunpack.c.l.b16 %v2049
      %v2150 = vunpack.c.h.b16 %v2049
      %v2151 = vunpack.c.l.b16 %v2050
      %v2152 = vpack.c.b16 %v2149, %v2146
      %v2153 = vpack.c.b16 %v2150, %v2147
      %v2154 = vpack.c.b16 %v2151, %v2148
      %2155 = vrot.lane.b32.xlu0 %v2152, 127
      %v2156 = vpop.permute.xlu0 %2155
      %2157 = vrot.lane.b32.xlu0 %v2153, 127
      %v2158 = vpop.permute.xlu0 %2157
      %2159 = vrot.lane.b32.xlu0 %v2154, 127
      %v2160 = vpop.permute.xlu0 %2159
      %v2161 = vsel %vm972, %v2156, %v2158
      %v2162 = vsel %vm972, %v2158, %v2160
      %v2167 = vunpack.c.l.b16 %v2073
      %v2168 = vunpack.c.h.b16 %v2073
      %v2169 = vunpack.c.l.b16 %v2074
      %v2170 = vunpack.c.l.b16 %v2075
      %v2171 = vunpack.c.h.b16 %v2075
      %v2172 = vunpack.c.l.b16 %v2076
      %v2173 = vpack.c.b16 %v2170, %v2167
      %v2174 = vpack.c.b16 %v2171, %v2168
      %v2175 = vpack.c.b16 %v2172, %v2169
      %2176 = vrot.lane.b32.xlu0 %v2173, 126
      %v2177 = vpop.permute.xlu0 %2176
      %2178 = vrot.lane.b32.xlu0 %v2174, 126
      %v2179 = vpop.permute.xlu0 %2178
      %2180 = vrot.lane.b32.xlu0 %v2175, 126
      %v2181 = vpop.permute.xlu0 %2180
      %v2182 = vsel %vm994, %v2177, %v2179
      %v2183 = vsel %vm994, %v2179, %v2181
      %v2188 = vunpack.c.l.b16 %v2083
      %v2189 = vunpack.c.h.b16 %v2083
      %v2190 = vunpack.c.l.b16 %v2084
      %v2191 = vunpack.c.l.b16 %v2085
      %v2192 = vunpack.c.h.b16 %v2085
      %v2193 = vunpack.c.l.b16 %v2086
      %v2194 = vpack.c.b16 %v2191, %v2188
      %v2195 = vpack.c.b16 %v2192, %v2189
      %v2196 = vpack.c.b16 %v2193, %v2190
      %2197 = vrot.lane.b32.xlu0 %v2194, 112
      %v2198 = vpop.permute.xlu0 %2197
      %2199 = vrot.lane.b32.xlu0 %v2195, 112
      %v2200 = vpop.permute.xlu0 %2199
      %2201 = vrot.lane.b32.xlu0 %v2196, 112
      %v2202 = vpop.permute.xlu0 %2201
      %v2203 = vsel %vm1016, %v2198, %v2200
      %v2204 = vsel %vm1016, %v2200, %v2202
      %v2207 = vunpack.c.l.b16 %v2087
      %v2208 = vunpack.c.h.b16 %v2087
      %v2209 = vunpack.c.l.b16 %v2088
      %v2210 = vunpack.c.h.b16 %v2088
      %v2211 = vpack.c.b16 %v2209, %v2207
      %v2212 = vpack.c.b16 %v2210, %v2208
      %2213 = vrot.lane.b32.xlu0 %v2211, 111
      %v2214 = vpop.permute.xlu0 %2213
      %2215 = vrot.lane.b32.xlu0 %v2212, 111
      %v2216 = vpop.permute.xlu0 %2215
      %v2217 = vsel %vm1031, %v2214, %v2216
      %v2222 = vunpack.c.l.b16 %v2105
      %v2223 = vunpack.c.h.b16 %v2105
      %v2224 = vunpack.c.l.b16 %v2106
      %v2225 = vunpack.c.l.b16 %v2107
      %v2226 = vunpack.c.h.b16 %v2107
      %v2227 = vunpack.c.l.b16 %v2108
      %v2228 = vpack.c.b16 %v2225, %v2222
      %v2229 = vpack.c.b16 %v2226, %v2223
      %v2230 = vpack.c.b16 %v2227, %v2224
      %2231 = vrot.lane.b32.xlu0 %v2228, 110
      %v2232 = vpop.permute.xlu0 %2231
      %2233 = vrot.lane.b32.xlu0 %v2229, 110
      %v2234 = vpop.permute.xlu0 %2233
      %2235 = vrot.lane.b32.xlu0 %v2230, 110
      %v2236 = vpop.permute.xlu0 %2235
      %v2237 = vsel %vm1052, %v2232, %v2234
      %v2238 = vsel %vm1052, %v2234, %v2236
      %v2243 = vunpack.c.l.b16 %v2115
      %v2244 = vunpack.c.h.b16 %v2115
      %v2245 = vunpack.c.l.b16 %v2116
      %v2246 = vunpack.c.l.b16 %v2117
      %v2247 = vunpack.c.h.b16 %v2117
      %v2248 = vunpack.c.l.b16 %v2118
      %v2249 = vpack.c.b16 %v2246, %v2243
      %v2250 = vpack.c.b16 %v2247, %v2244
      %v2251 = vpack.c.b16 %v2248, %v2245
      %2252 = vrot.lane.b32.xlu0 %v2249, 96
      %v2253 = vpop.permute.xlu0 %2252
      %2254 = vrot.lane.b32.xlu0 %v2250, 96
      %v2255 = vpop.permute.xlu0 %2254
      %2256 = vrot.lane.b32.xlu0 %v2251, 96
      %v2257 = vpop.permute.xlu0 %2256
      %v2258 = vsel %vm1074, %v2253, %v2255
      %v2259 = vsel %vm1074, %v2255, %v2257
      %v2264 = vunpack.c.l.b16 %v2089
      %v2265 = vunpack.c.h.b16 %v2089
      %v2266 = vunpack.c.l.b16 %v2090
      %v2267 = vunpack.c.l.b16 %v2091
      %v2268 = vunpack.c.h.b16 %v2091
      %v2269 = vunpack.c.l.b16 %v2092
      %v2270 = vpack.c.b16 %v2267, %v2264
      %v2271 = vpack.c.b16 %v2268, %v2265
      %v2272 = vpack.c.b16 %v2269, %v2266
      %2273 = vrot.lane.b32.xlu0 %v2270, 95
      %v2274 = vpop.permute.xlu0 %2273
      %2275 = vrot.lane.b32.xlu0 %v2271, 95
      %v2276 = vpop.permute.xlu0 %2275
      %2277 = vrot.lane.b32.xlu0 %v2272, 95
      %v2278 = vpop.permute.xlu0 %2277
      %v2279 = vsel %vm1096, %v2274, %v2276
      %v2280 = vsel %vm1096, %v2276, %v2278
      %v2285 = vunpack.c.l.b16 %v2125
      %v2286 = vunpack.c.h.b16 %v2125
      %v2287 = vunpack.c.l.b16 %v2126
      %v2288 = vunpack.c.l.b16 %v2127
      %v2289 = vunpack.c.h.b16 %v2127
      %v2290 = vunpack.c.l.b16 %v2128
      %v2291 = vpack.c.b16 %v2288, %v2285
      %v2292 = vpack.c.b16 %v2289, %v2286
      %v2293 = vpack.c.b16 %v2290, %v2287
      %2294 = vrot.lane.b32.xlu0 %v2291, 94
      %v2295 = vpop.permute.xlu0 %2294
      %2296 = vrot.lane.b32.xlu0 %v2292, 94
      %v2297 = vpop.permute.xlu0 %2296
      %2298 = vrot.lane.b32.xlu0 %v2293, 94
      %v2299 = vpop.permute.xlu0 %2298
      %v2300 = vsel %vm1118, %v2295, %v2297
      %v2301 = vsel %vm1118, %v2297, %v2299
      %2302 = vrot.lane.b32.xlu0 %v2139, 17
      %v2303 = vpop.permute.xlu0 %2302
      %2304 = vrot.lane.b32.xlu0 %v2140, 17
      %v2305 = vpop.permute.xlu0 %2304
      %2306 = vrot.lane.b32.xlu0 %v2141, 17
      %v2307 = vpop.permute.xlu0 %2306
      %2308 = vrot.lane.b32.xlu0 %v2161, 17
      %v2309 = vpop.permute.xlu0 %2308
      %2310 = vrot.lane.b32.xlu0 %v2162, 17
      %v2311 = vpop.permute.xlu0 %2310
      %2312 = vrot.lane.b32.xlu0 %v2160, 17
      %v2313 = vpop.permute.xlu0 %2312
      %2314 = vrot.lane.b32.xlu0 %v2182, 17
      %v2315 = vpop.permute.xlu0 %2314
      %2316 = vrot.lane.b32.xlu0 %v2183, 17
      %v2317 = vpop.permute.xlu0 %2316
      %2318 = vrot.lane.b32.xlu0 %v2181, 17
      %v2319 = vpop.permute.xlu0 %2318
      %2320 = vrot.lane.b32.xlu0 %v2203, 17
      %v2321 = vpop.permute.xlu0 %2320
      %2322 = vrot.lane.b32.xlu0 %v2204, 17
      %v2323 = vpop.permute.xlu0 %2322
      %2324 = vrot.lane.b32.xlu0 %v2202, 17
      %v2325 = vpop.permute.xlu0 %2324
      %2326 = vrot.lane.b32.xlu0 %v2214, 17
      %v2327 = vpop.permute.xlu0 %2326
      %2328 = vrot.lane.b32.xlu0 %v2217, 17
      %v2329 = vpop.permute.xlu0 %2328
      %2330 = vrot.lane.b32.xlu0 %v2216, 17
      %v2331 = vpop.permute.xlu0 %2330
      %2332 = vrot.lane.b32.xlu0 %v2232, 17
      %v2333 = vpop.permute.xlu0 %2332
      %2334 = vrot.lane.b32.xlu0 %v2237, 17
      %v2335 = vpop.permute.xlu0 %2334
      %2336 = vrot.lane.b32.xlu0 %v2238, 17
      %v2337 = vpop.permute.xlu0 %2336
      %2338 = vrot.lane.b32.xlu0 %v2253, 17
      %v2339 = vpop.permute.xlu0 %2338
      %2340 = vrot.lane.b32.xlu0 %v2258, 17
      %v2341 = vpop.permute.xlu0 %2340
      %2342 = vrot.lane.b32.xlu0 %v2259, 17
      %v2343 = vpop.permute.xlu0 %2342
      %2344 = vrot.lane.b32.xlu0 %v2274, 17
      %v2345 = vpop.permute.xlu0 %2344
      %2346 = vrot.lane.b32.xlu0 %v2279, 17
      %v2347 = vpop.permute.xlu0 %2346
      %2348 = vrot.lane.b32.xlu0 %v2280, 17
      %v2349 = vpop.permute.xlu0 %2348
      %2350 = vrot.lane.b32.xlu0 %v2295, 17
      %v2351 = vpop.permute.xlu0 %2350
      %2352 = vrot.lane.b32.xlu0 %v2300, 17
      %v2353 = vpop.permute.xlu0 %2352
      %2354 = vrot.lane.b32.xlu0 %v2301, 17
      %v2355 = vpop.permute.xlu0 %2354
      %v2356 = vsel %vm1184, %v2303, %v2305
      %v2357 = vsel %vm1184, %v2305, %v2307
      %v2358 = vsel %vm1184, %v2309, %v2311
      %v2359 = vsel %vm1184, %v2311, %v2313
      %v2360 = vsel %vm1184, %v2315, %v2317
      %v2361 = vsel %vm1184, %v2317, %v2319
      %v2362 = vsel %vm1184, %v2321, %v2323
      %v2363 = vsel %vm1184, %v2323, %v2325
      %v2364 = vsel %vm1184, %v2327, %v2329
      %v2365 = vsel %vm1184, %v2329, %v2331
      %v2366 = vsel %vm1184, %v2333, %v2335
      %v2367 = vsel %vm1184, %v2335, %v2337
      %v2368 = vsel %vm1184, %v2339, %v2341
      %v2369 = vsel %vm1184, %v2341, %v2343
      %v2370 = vsel %vm1184, %v2345, %v2347
      %v2371 = vsel %vm1184, %v2347, %v2349
      %v2372 = vsel %vm1184, %v2351, %v2353
      %v2373 = vsel %vm1184, %v2353, %v2355
      %2392 = vmatpush.bf16.msra.mxu0 %v2370
      %2393 = vmatpush.bf16.msra.mxu0 %v2368
      %2394 = vmatpush.bf16.msra.mxu0 %v2366
      %2395 = vmatpush.bf16.msra.mxu0 %v2364
      %2396 = vmatpush.bf16.msra.mxu0 %v2362
      %2397 = vmatpush.bf16.msra.mxu0 %v2360
      %2398 = vmatpush.bf16.msra.mxu0 %v2358
      %2399 = vmatpush.bf16.msra.mxu0 %v2356
      %2400 = vmatmul.bf16.gmra.mxu0 %v1127
      %v2401 = vpop.f32.mrf.mxu0
      %v2402 = vadd.f32 0.0, %v2401
      %v2403 = vpop.f32.mrf.mxu0
      %v2404 = vadd.f32 0.0, %v2403
      %2405 = vdwg.mxu0
      %2406 = vmatpush.bf16.msra.mxu0 0
      %2407 = vmatpush.bf16.msra.mxu0 0
      %2408 = vmatpush.bf16.msra.mxu0 0
      %2409 = vmatpush.bf16.msra.mxu0 0
      %2410 = vmatpush.bf16.msra.mxu0 0
      %2411 = vmatpush.bf16.msra.mxu0 0
      %2412 = vmatpush.bf16.msra.mxu0 0
      %2413 = vmatpush.bf16.msra.mxu0 %v2372
      %2414 = vmatmul.bf16.gmra.mxu0 %v1223
      %v2415 = vpop.f32.mrf.mxu0
      %v2416 = vadd.f32 %v2402, %v2415
      %v2417 = vpop.f32.mrf.mxu0
      %v2418 = vadd.f32 %v2404, %v2417
      %2419 = vdwg.mxu0
      %2420 = vmatpush.bf16.msra.mxu0 %v2371
      %2421 = vmatpush.bf16.msra.mxu0 %v2369
      %2422 = vmatpush.bf16.msra.mxu0 %v2367
      %2423 = vmatpush.bf16.msra.mxu0 %v2365
      %2424 = vmatpush.bf16.msra.mxu0 %v2363
      %2425 = vmatpush.bf16.msra.mxu0 %v2361
      %2426 = vmatpush.bf16.msra.mxu0 %v2359
      %2427 = vmatpush.bf16.msra.mxu0 %v2357
      %2428 = vmatmul.bf16.gmra.mxu0 %v1127
      %v2429 = vpop.f32.mrf.mxu0
      %v2430 = vadd.f32 0.0, %v2429
      %v2431 = vpop.f32.mrf.mxu0
      %v2432 = vadd.f32 0.0, %v2431
      %2433 = vdwg.mxu0
      %2434 = vmatpush.bf16.msra.mxu0 0
      %2435 = vmatpush.bf16.msra.mxu0 0
      %2436 = vmatpush.bf16.msra.mxu0 0
      %2437 = vmatpush.bf16.msra.mxu0 0
      %2438 = vmatpush.bf16.msra.mxu0 0
      %2439 = vmatpush.bf16.msra.mxu0 0
      %2440 = vmatpush.bf16.msra.mxu0 0
      %2441 = vmatpush.bf16.msra.mxu0 %v2373
      %2442 = vmatmul.bf16.gmra.mxu0 %v1223
      %v2443 = vpop.f32.mrf.mxu0
      %v2444 = vadd.f32 %v2430, %v2443
      %v2445 = vpop.f32.mrf.mxu0
      %v2446 = vadd.f32 %v2432, %v2445
      %2447 = vdwg.mxu0
      %v2448 = vadd.f32 %v2416, %v2444
      %2449 = vadd.xlane.f32.xlu0 %v2448
      %v2450 = vpop.xlane.xlu0 %2449
      %v2451 = vadd.f32 %v2418, %v2446
      %2452 = vadd.xlane.f32.xlu0 %v2451
      %v2453 = vpop.xlane.xlu0 %2452
      %v2454 = vmul.f32 %v2450, %v1293
      %v2455 = vmul.f32 %v2453, %v1293
      %v2456 = vsub.f32 %v2416, %v2454
      %v2457 = vsub.f32 %v2444, %v2454
      %v2458 = vsub.f32 %v2418, %v2455
      %v2459 = vsub.f32 %v2446, %v2455
      %v2460 = vmul.f32 %v2456, %v2456
      %v2461 = vmul.f32 %v2457, %v2457
      %v2462 = vmul.f32 %v2458, %v2458
      %v2463 = vmul.f32 %v2459, %v2459
      %v2464 = vadd.f32 %v2460, %v2461
      %2465 = vadd.xlane.f32.xlu0 %v2464
      %v2466 = vpop.xlane.xlu0 %2465
      %v2467 = vadd.f32 %v2462, %v2463
      %2468 = vadd.xlane.f32.xlu0 %v2467
      %v2469 = vpop.xlane.xlu0 %2468
      %v2470 = vmul.f32 %v2466, %v1293
      %v2471 = vmul.f32 %v2469, %v1293
      %v2472 = vadd.f32 %v2470, 1e-05
      %v2473 = vadd.f32 %v2471, 1e-05
      %v2474 = vrsqrt.pop %v2472
      %v2475 = vmul.f32 %v2474, %v2472
      %v2476 = vmul.f32 %v2475, %v2474
      %v2477 = vmul.f32 0.5, %v2476
      %v2478 = vsub.f32 1.5, %v2477
      %v2479 = vmul.f32 %v2474, %v2478
      %vm2480 = vweird.f32 %v2472
      %vm2481 = vweird.f32 %v2474
      %vm2482 = vmor %vm2480, %vm2481
      %v2483 = vsel %vm2482, %v2474, %v2479
      %v2484 = vrsqrt.pop %v2473
      %v2485 = vmul.f32 %v2484, %v2473
      %v2486 = vmul.f32 %v2485, %v2484
      %v2487 = vmul.f32 0.5, %v2486
      %v2488 = vsub.f32 1.5, %v2487
      %v2489 = vmul.f32 %v2484, %v2488
      %vm2490 = vweird.f32 %v2473
      %vm2491 = vweird.f32 %v2484
      %vm2492 = vmor %vm2490, %vm2491
      %v2493 = vsel %vm2492, %v2484, %v2489
      %v2494 = vmul.f32 %v2456, %v2483
      %v2495 = vmul.f32 %v2457, %v2483
      %v2496 = vmul.f32 %v2458, %v2493
      %v2497 = vmul.f32 %v2459, %v2493
      %vm2498 = vcmp.ge.f32.partialorder %v2494, 0.0
      %vm2499 = vcmp.ge.f32.partialorder %v2495, 0.0
      %vm2500 = vcmp.ge.f32.partialorder %v2496, 0.0
      %vm2501 = vcmp.ge.f32.partialorder %v2497, 0.0
      %v2502 = vmul.f32 %v2494, 0.01
      %v2503 = vmul.f32 %v2495, 0.01
      %v2504 = vmul.f32 %v2496, 0.01
      %v2505 = vmul.f32 %v2497, 0.01
      %v2506 = vsel %vm2498, %v2494, %v2502
      %v2507 = vsel %vm2499, %v2495, %v2503
      %v2508 = vsel %vm2500, %v2496, %v2504
      %v2509 = vsel %vm2501, %v2497, %v2505
      %s2510 = scalar_lea.vmem [#allocation4], 32
      %2511 = vst.msk [vmem:[%s2510] sm:$0xf] %vm733, 0
      %2512 = vst.msk [vmem:[%s2510 + $0x10] sm:$0xf] %vm733, 0
      %2513 = vst.msk [vmem:[%s2510 + $0xc] sm:$0xf] %vm736, 0
      %2514 = vst.msk [vmem:[%s2510 + $0x1c] sm:$0xf] %vm736, 0
      %v2515 = vpack.c.bf16 %v2507, %v2506
      %v2516 = vpack.c.bf16 %v2509, %v2508
      %2517 = vst [vmem:[%s2510 + $0x4] sm:$0xff] %v2515
      %2518 = vst [vmem:[%s2510 + $0x14] sm:$0xff] %v2516
      %v2519 = vld [vmem:[%s2510] sm:$0xff]
      %v2520 = vld [vmem:[%s2510 + $0x8] sm:$0xf]
      %v2521 = vld [vmem:[%s2510 + $0x10] sm:$0xff]
      %v2522 = vld [vmem:[%s2510 + $0x18] sm:$0xf]
      %v2523 = vunpack.c.l.bf16 %v2519
      %v2524 = vunpack.c.h.bf16 %v2519
      %v2525 = vunpack.c.l.bf16 %v2520
      %v2526 = vunpack.c.l.bf16 %v2521
      %v2527 = vunpack.c.h.bf16 %v2521
      %v2528 = vunpack.c.l.bf16 %v2522
      %v2529 = vmul.f32 %v2523, %v780
      %v2530 = vmul.f32 %v2524, %v784
      %v2531 = vmul.f32 %v2525, %v782
      %v2532 = vmul.f32 %v2526, %v780
      %v2533 = vmul.f32 %v2527, %v784
      %v2534 = vmul.f32 %v2528, %v782
      %v2535 = vpack.c.bf16 %v2530, %v2529
      %v2536 = vpack.c.bf16 %v2531, %v2531
      %v2537 = vpack.c.bf16 %v2533, %v2532
      %v2538 = vpack.c.bf16 %v2534, %v2534
      %v2539 = vmul.f32 %v2523, %v824
      %v2540 = vmul.f32 %v2524, %v828
      %v2541 = vmul.f32 %v2525, %v826
      %v2542 = vmul.f32 %v2526, %v824
      %v2543 = vmul.f32 %v2527, %v828
      %v2544 = vmul.f32 %v2528, %v826
      %v2545 = vpack.c.bf16 %v2540, %v2539
      %v2546 = vpack.c.bf16 %v2541, %v2541
      %v2547 = vpack.c.bf16 %v2543, %v2542
      %v2548 = vpack.c.bf16 %v2544, %v2544
      %v2549 = vmul.f32 %v2523, %v853
      %v2550 = vmul.f32 %v2524, %v857
      %v2551 = vmul.f32 %v2525, %v855
      %v2552 = vmul.f32 %v2526, %v853
      %v2553 = vmul.f32 %v2527, %v857
      %v2554 = vmul.f32 %v2528, %v855
      %v2555 = vpack.c.bf16 %v2550, %v2549
      %v2556 = vpack.c.bf16 %v2551, %v2551
      %v2557 = vpack.c.bf16 %v2553, %v2552
      %v2558 = vpack.c.bf16 %v2554, %v2554
      %v2559 = vld [vmem:[%s2510 + $0x4] sm:$0xff]
      %v2560 = vld [vmem:[%s2510 + $0x14] sm:$0xff]
      %v2561 = vld [vmem:[%s2510 + $0x4] sm:$0xff]
      %v2562 = vld [vmem:[%s2510 + $0xc] sm:$0xf]
      %v2563 = vld [vmem:[%s2510 + $0x14] sm:$0xff]
      %v2564 = vld [vmem:[%s2510 + $0x1c] sm:$0xf]
      %v2565 = vunpack.c.l.bf16 %v2561
      %v2566 = vunpack.c.h.bf16 %v2561
      %v2567 = vunpack.c.l.bf16 %v2562
      %v2568 = vunpack.c.l.bf16 %v2563
      %v2569 = vunpack.c.h.bf16 %v2563
      %v2570 = vunpack.c.l.bf16 %v2564
      %v2571 = vmul.f32 %v2565, %v884
      %v2572 = vmul.f32 %v2566, %v888
      %v2573 = vmul.f32 %v2567, %v886
      %v2574 = vmul.f32 %v2568, %v884
      %v2575 = vmul.f32 %v2569, %v888
      %v2576 = vmul.f32 %v2570, %v886
      %v2577 = vpack.c.bf16 %v2572, %v2571
      %v2578 = vpack.c.bf16 %v2573, %v2573
      %v2579 = vpack.c.bf16 %v2575, %v2574
      %v2580 = vpack.c.bf16 %v2576, %v2576
      %v2581 = vmul.f32 %v2565, %v903
      %v2582 = vmul.f32 %v2566, %v907
      %v2583 = vmul.f32 %v2567, %v905
      %v2584 = vmul.f32 %v2568, %v903
      %v2585 = vmul.f32 %v2569, %v907
      %v2586 = vmul.f32 %v2570, %v905
      %v2587 = vpack.c.bf16 %v2582, %v2581
      %v2588 = vpack.c.bf16 %v2583, %v2583
      %v2589 = vpack.c.bf16 %v2585, %v2584
      %v2590 = vpack.c.bf16 %v2586, %v2586
      %v2591 = vmul.f32 %v2565, %v922
      %v2592 = vmul.f32 %v2566, %v926
      %v2593 = vmul.f32 %v2567, %v924
      %v2594 = vmul.f32 %v2568, %v922
      %v2595 = vmul.f32 %v2569, %v926
      %v2596 = vmul.f32 %v2570, %v924
      %v2597 = vpack.c.bf16 %v2592, %v2591
      %v2598 = vpack.c.bf16 %v2593, %v2593
      %v2599 = vpack.c.bf16 %v2595, %v2594
      %v2600 = vpack.c.bf16 %v2596, %v2596
      %v2605 = vunpack.c.l.b16 %v2535
      %v2606 = vunpack.c.h.b16 %v2535
      %v2607 = vunpack.c.l.b16 %v2536
      %v2608 = vunpack.c.l.b16 %v2537
      %v2609 = vunpack.c.h.b16 %v2537
      %v2610 = vunpack.c.l.b16 %v2538
      %v2611 = vpack.c.b16 %v2608, %v2605
      %v2612 = vpack.c.b16 %v2609, %v2606
      %v2613 = vpack.c.b16 %v2610, %v2607
      %v2618 = vunpack.c.l.b16 %v2519
      %v2619 = vunpack.c.h.b16 %v2519
      %v2620 = vunpack.c.l.b16 %v2520
      %v2621 = vunpack.c.l.b16 %v2521
      %v2622 = vunpack.c.h.b16 %v2521
      %v2623 = vunpack.c.l.b16 %v2522
      %v2624 = vpack.c.b16 %v2621, %v2618
      %v2625 = vpack.c.b16 %v2622, %v2619
      %v2626 = vpack.c.b16 %v2623, %v2620
      %2627 = vrot.lane.b32.xlu0 %v2624, 127
      %v2628 = vpop.permute.xlu0 %2627
      %2629 = vrot.lane.b32.xlu0 %v2625, 127
      %v2630 = vpop.permute.xlu0 %2629
      %2631 = vrot.lane.b32.xlu0 %v2626, 127
      %v2632 = vpop.permute.xlu0 %2631
      %v2633 = vsel %vm972, %v2628, %v2630
      %v2634 = vsel %vm972, %v2630, %v2632
      %v2639 = vunpack.c.l.b16 %v2545
      %v2640 = vunpack.c.h.b16 %v2545
      %v2641 = vunpack.c.l.b16 %v2546
      %v2642 = vunpack.c.l.b16 %v2547
      %v2643 = vunpack.c.h.b16 %v2547
      %v2644 = vunpack.c.l.b16 %v2548
      %v2645 = vpack.c.b16 %v2642, %v2639
      %v2646 = vpack.c.b16 %v2643, %v2640
      %v2647 = vpack.c.b16 %v2644, %v2641
      %2648 = vrot.lane.b32.xlu0 %v2645, 126
      %v2649 = vpop.permute.xlu0 %2648
      %2650 = vrot.lane.b32.xlu0 %v2646, 126
      %v2651 = vpop.permute.xlu0 %2650
      %2652 = vrot.lane.b32.xlu0 %v2647, 126
      %v2653 = vpop.permute.xlu0 %2652
      %v2654 = vsel %vm994, %v2649, %v2651
      %v2655 = vsel %vm994, %v2651, %v2653
      %v2660 = vunpack.c.l.b16 %v2555
      %v2661 = vunpack.c.h.b16 %v2555
      %v2662 = vunpack.c.l.b16 %v2556
      %v2663 = vunpack.c.l.b16 %v2557
      %v2664 = vunpack.c.h.b16 %v2557
      %v2665 = vunpack.c.l.b16 %v2558
      %v2666 = vpack.c.b16 %v2663, %v2660
      %v2667 = vpack.c.b16 %v2664, %v2661
      %v2668 = vpack.c.b16 %v2665, %v2662
      %2669 = vrot.lane.b32.xlu0 %v2666, 112
      %v2670 = vpop.permute.xlu0 %2669
      %2671 = vrot.lane.b32.xlu0 %v2667, 112
      %v2672 = vpop.permute.xlu0 %2671
      %2673 = vrot.lane.b32.xlu0 %v2668, 112
      %v2674 = vpop.permute.xlu0 %2673
      %v2675 = vsel %vm1016, %v2670, %v2672
      %v2676 = vsel %vm1016, %v2672, %v2674
      %v2679 = vunpack.c.l.b16 %v2559
      %v2680 = vunpack.c.h.b16 %v2559
      %v2681 = vunpack.c.l.b16 %v2560
      %v2682 = vunpack.c.h.b16 %v2560
      %v2683 = vpack.c.b16 %v2681, %v2679
      %v2684 = vpack.c.b16 %v2682, %v2680
      %2685 = vrot.lane.b32.xlu0 %v2683, 111
      %v2686 = vpop.permute.xlu0 %2685
      %2687 = vrot.lane.b32.xlu0 %v2684, 111
      %v2688 = vpop.permute.xlu0 %2687
      %v2689 = vsel %vm1031, %v2686, %v2688
      %v2694 = vunpack.c.l.b16 %v2577
      %v2695 = vunpack.c.h.b16 %v2577
      %v2696 = vunpack.c.l.b16 %v2578
      %v2697 = vunpack.c.l.b16 %v2579
      %v2698 = vunpack.c.h.b16 %v2579
      %v2699 = vunpack.c.l.b16 %v2580
      %v2700 = vpack.c.b16 %v2697, %v2694
      %v2701 = vpack.c.b16 %v2698, %v2695
      %v2702 = vpack.c.b16 %v2699, %v2696
      %2703 = vrot.lane.b32.xlu0 %v2700, 110
      %v2704 = vpop.permute.xlu0 %2703
      %2705 = vrot.lane.b32.xlu0 %v2701, 110
      %v2706 = vpop.permute.xlu0 %2705
      %2707 = vrot.lane.b32.xlu0 %v2702, 110
      %v2708 = vpop.permute.xlu0 %2707
      %v2709 = vsel %vm1052, %v2704, %v2706
      %v2710 = vsel %vm1052, %v2706, %v2708
      %v2715 = vunpack.c.l.b16 %v2587
      %v2716 = vunpack.c.h.b16 %v2587
      %v2717 = vunpack.c.l.b16 %v2588
      %v2718 = vunpack.c.l.b16 %v2589
      %v2719 = vunpack.c.h.b16 %v2589
      %v2720 = vunpack.c.l.b16 %v2590
      %v2721 = vpack.c.b16 %v2718, %v2715
      %v2722 = vpack.c.b16 %v2719, %v2716
      %v2723 = vpack.c.b16 %v2720, %v2717
      %2724 = vrot.lane.b32.xlu0 %v2721, 96
      %v2725 = vpop.permute.xlu0 %2724
      %2726 = vrot.lane.b32.xlu0 %v2722, 96
      %v2727 = vpop.permute.xlu0 %2726
      %2728 = vrot.lane.b32.xlu0 %v2723, 96
      %v2729 = vpop.permute.xlu0 %2728
      %v2730 = vsel %vm1074, %v2725, %v2727
      %v2731 = vsel %vm1074, %v2727, %v2729
      %v2736 = vunpack.c.l.b16 %v2561
      %v2737 = vunpack.c.h.b16 %v2561
      %v2738 = vunpack.c.l.b16 %v2562
      %v2739 = vunpack.c.l.b16 %v2563
      %v2740 = vunpack.c.h.b16 %v2563
      %v2741 = vunpack.c.l.b16 %v2564
      %v2742 = vpack.c.b16 %v2739, %v2736
      %v2743 = vpack.c.b16 %v2740, %v2737
      %v2744 = vpack.c.b16 %v2741, %v2738
      %2745 = vrot.lane.b32.xlu0 %v2742, 95
      %v2746 = vpop.permute.xlu0 %2745
      %2747 = vrot.lane.b32.xlu0 %v2743, 95
      %v2748 = vpop.permute.xlu0 %2747
      %2749 = vrot.lane.b32.xlu0 %v2744, 95
      %v2750 = vpop.permute.xlu0 %2749
      %v2751 = vsel %vm1096, %v2746, %v2748
      %v2752 = vsel %vm1096, %v2748, %v2750
      %v2757 = vunpack.c.l.b16 %v2597
      %v2758 = vunpack.c.h.b16 %v2597
      %v2759 = vunpack.c.l.b16 %v2598
      %v2760 = vunpack.c.l.b16 %v2599
      %v2761 = vunpack.c.h.b16 %v2599
      %v2762 = vunpack.c.l.b16 %v2600
      %v2763 = vpack.c.b16 %v2760, %v2757
      %v2764 = vpack.c.b16 %v2761, %v2758
      %v2765 = vpack.c.b16 %v2762, %v2759
      %2766 = vrot.lane.b32.xlu0 %v2763, 94
      %v2767 = vpop.permute.xlu0 %2766
      %2768 = vrot.lane.b32.xlu0 %v2764, 94
      %v2769 = vpop.permute.xlu0 %2768
      %2770 = vrot.lane.b32.xlu0 %v2765, 94
      %v2771 = vpop.permute.xlu0 %2770
      %v2772 = vsel %vm1118, %v2767, %v2769
      %v2773 = vsel %vm1118, %v2769, %v2771
      %2774 = vst [vmem:[#allocation1] ss:$4 sm:$0xff] %v367
      %v2775 = vld.sshfl [vmem:[#allocation1] sm:$0xff pattern:$0x73625140]
      %v2776 = vld.sshfl [vmem:[#allocation1 + $0x8] sm:$0xff pattern:$0x73625140]
      %2778 = vrot.lane.b32.xlu0 %v2611, 17
      %v2779 = vpop.permute.xlu0 %2778
      %2780 = vrot.lane.b32.xlu0 %v2612, 17
      %v2781 = vpop.permute.xlu0 %2780
      %2782 = vrot.lane.b32.xlu0 %v2613, 17
      %v2783 = vpop.permute.xlu0 %2782
      %2784 = vrot.lane.b32.xlu0 %v2633, 17
      %v2785 = vpop.permute.xlu0 %2784
      %2786 = vrot.lane.b32.xlu0 %v2634, 17
      %v2787 = vpop.permute.xlu0 %2786
      %2788 = vrot.lane.b32.xlu0 %v2632, 17
      %v2789 = vpop.permute.xlu0 %2788
      %2790 = vrot.lane.b32.xlu0 %v2654, 17
      %v2791 = vpop.permute.xlu0 %2790
      %2792 = vrot.lane.b32.xlu0 %v2655, 17
      %v2793 = vpop.permute.xlu0 %2792
      %2794 = vrot.lane.b32.xlu0 %v2653, 17
      %v2795 = vpop.permute.xlu0 %2794
      %2796 = vrot.lane.b32.xlu0 %v2675, 17
      %v2797 = vpop.permute.xlu0 %2796
      %2798 = vrot.lane.b32.xlu0 %v2676, 17
      %v2799 = vpop.permute.xlu0 %2798
      %2800 = vrot.lane.b32.xlu0 %v2674, 17
      %v2801 = vpop.permute.xlu0 %2800
      %2802 = vrot.lane.b32.xlu0 %v2686, 17
      %v2803 = vpop.permute.xlu0 %2802
      %2804 = vrot.lane.b32.xlu0 %v2689, 17
      %v2805 = vpop.permute.xlu0 %2804
      %2806 = vrot.lane.b32.xlu0 %v2688, 17
      %v2807 = vpop.permute.xlu0 %2806
      %2808 = vrot.lane.b32.xlu0 %v2704, 17
      %v2809 = vpop.permute.xlu0 %2808
      %2810 = vrot.lane.b32.xlu0 %v2709, 17
      %v2811 = vpop.permute.xlu0 %2810
      %2812 = vrot.lane.b32.xlu0 %v2710, 17
      %v2813 = vpop.permute.xlu0 %2812
      %2814 = vrot.lane.b32.xlu0 %v2725, 17
      %v2815 = vpop.permute.xlu0 %2814
      %2816 = vrot.lane.b32.xlu0 %v2730, 17
      %v2817 = vpop.permute.xlu0 %2816
      %2818 = vrot.lane.b32.xlu0 %v2731, 17
      %v2819 = vpop.permute.xlu0 %2818
      %2820 = vrot.lane.b32.xlu0 %v2746, 17
      %v2821 = vpop.permute.xlu0 %2820
      %2822 = vrot.lane.b32.xlu0 %v2751, 17
      %v2823 = vpop.permute.xlu0 %2822
      %2824 = vrot.lane.b32.xlu0 %v2752, 17
      %v2825 = vpop.permute.xlu0 %2824
      %2826 = vrot.lane.b32.xlu0 %v2767, 17
      %v2827 = vpop.permute.xlu0 %2826
      %2828 = vrot.lane.b32.xlu0 %v2772, 17
      %v2829 = vpop.permute.xlu0 %2828
      %2830 = vrot.lane.b32.xlu0 %v2773, 17
      %v2831 = vpop.permute.xlu0 %2830
      %v2832 = vsel %vm1184, %v2779, %v2781
      %v2833 = vsel %vm1184, %v2781, %v2783
      %v2834 = vsel %vm1184, %v2785, %v2787
      %v2835 = vsel %vm1184, %v2787, %v2789
      %v2836 = vsel %vm1184, %v2791, %v2793
      %v2837 = vsel %vm1184, %v2793, %v2795
      %v2838 = vsel %vm1184, %v2797, %v2799
      %v2839 = vsel %vm1184, %v2799, %v2801
      %v2840 = vsel %vm1184, %v2803, %v2805
      %v2841 = vsel %vm1184, %v2805, %v2807
      %v2842 = vsel %vm1184, %v2809, %v2811
      %v2843 = vsel %vm1184, %v2811, %v2813
      %v2844 = vsel %vm1184, %v2815, %v2817
      %v2845 = vsel %vm1184, %v2817, %v2819
      %v2846 = vsel %vm1184, %v2821, %v2823
      %v2847 = vsel %vm1184, %v2823, %v2825
      %v2848 = vsel %vm1184, %v2827, %v2829
      %v2849 = vsel %vm1184, %v2829, %v2831
      %v2868 = vsel %vm1221, %v2776, 0
      %2870 = vmatpush.bf16.msra.mxu0 %v2846
      %2871 = vmatpush.bf16.msra.mxu0 %v2844
      %2872 = vmatpush.bf16.msra.mxu0 %v2842
      %2873 = vmatpush.bf16.msra.mxu0 %v2840
      %2874 = vmatpush.bf16.msra.mxu0 %v2838
      %2875 = vmatpush.bf16.msra.mxu0 %v2836
      %2876 = vmatpush.bf16.msra.mxu0 %v2834
      %2877 = vmatpush.bf16.msra.mxu0 %v2832
      %2878 = vmatmul.bf16.gmra.mxu0 %v2775
      %v2879 = vpop.f32.mrf.mxu0
      %v2880 = vadd.f32 0.0, %v2879
      %v2881 = vpop.f32.mrf.mxu0
      %2882 = vdwg.mxu0
      %2883 = vmatpush.bf16.msra.mxu0 0
      %2884 = vmatpush.bf16.msra.mxu0 0
      %2885 = vmatpush.bf16.msra.mxu0 0
      %2886 = vmatpush.bf16.msra.mxu0 0
      %2887 = vmatpush.bf16.msra.mxu0 0
      %2888 = vmatpush.bf16.msra.mxu0 0
      %2889 = vmatpush.bf16.msra.mxu0 0
      %2890 = vmatpush.bf16.msra.mxu0 %v2848
      %2891 = vmatmul.bf16.gmra.mxu0 %v2868
      %v2892 = vpop.f32.mrf.mxu0
      %v2893 = vadd.f32 %v2880, %v2892
      %v2894 = vpop.f32.mrf.mxu0
      %2895 = vdwg.mxu0
      %2896 = vmatpush.bf16.msra.mxu0 %v2847
      %2897 = vmatpush.bf16.msra.mxu0 %v2845
      %2898 = vmatpush.bf16.msra.mxu0 %v2843
      %2899 = vmatpush.bf16.msra.mxu0 %v2841
      %2900 = vmatpush.bf16.msra.mxu0 %v2839
      %2901 = vmatpush.bf16.msra.mxu0 %v2837
      %2902 = vmatpush.bf16.msra.mxu0 %v2835
      %2903 = vmatpush.bf16.msra.mxu0 %v2833
      %2904 = vmatmul.bf16.gmra.mxu0 %v2775
      %v2905 = vpop.f32.mrf.mxu0
      %v2906 = vadd.f32 0.0, %v2905
      %v2907 = vpop.f32.mrf.mxu0
      %2908 = vdwg.mxu0
      %2909 = vmatpush.bf16.msra.mxu0 0
      %2910 = vmatpush.bf16.msra.mxu0 0
      %2911 = vmatpush.bf16.msra.mxu0 0
      %2912 = vmatpush.bf16.msra.mxu0 0
      %2913 = vmatpush.bf16.msra.mxu0 0
      %2914 = vmatpush.bf16.msra.mxu0 0
      %2915 = vmatpush.bf16.msra.mxu0 0
      %2916 = vmatpush.bf16.msra.mxu0 %v2849
      %2917 = vmatmul.bf16.gmra.mxu0 %v2868
      %v2918 = vpop.f32.mrf.mxu0
      %v2919 = vadd.f32 %v2906, %v2918
      %v2920 = vpop.f32.mrf.mxu0
      %2921 = vdwg.mxu0
      %v2922 = vsel %vm414, %v2893, 0.0
      %v2923 = vsel %vm414, %v2919, 0.0
      %v2924 = vadd.f32 %v2922, %v2923
      %2925 = vadd.xlane.f32.xlu0 %v2924
      %v2926 = vpop.xlane.xlu0 %2925
      %v2927 = vmul.f32 %v2926, %v1293
      %v2928 = vsub.f32 %v2893, %v2927
      %v2929 = vsub.f32 %v2919, %v2927
      %v2930 = vmul.f32 %v2928, %v2928
      %v2931 = vmul.f32 %v2929, %v2929
      %v2932 = vsel %vm414, %v2930, 0.0
      %v2933 = vsel %vm414, %v2931, 0.0
      %v2934 = vadd.f32 %v2932, %v2933
      %2935 = vadd.xlane.f32.xlu0 %v2934
      %v2936 = vpop.xlane.xlu0 %2935
      %v2937 = vmul.f32 %v2936, %v1293
      %v2938 = vadd.f32 %v2937, 1e-05
      %v2939 = vrsqrt.pop %v2938
      %v2940 = vmul.f32 %v2939, %v2938
      %v2941 = vmul.f32 %v2940, %v2939
      %v2942 = vmul.f32 0.5, %v2941
      %v2943 = vsub.f32 1.5, %v2942
      %v2944 = vmul.f32 %v2939, %v2943
      %vm2945 = vweird.f32 %v2938
      %vm2946 = vweird.f32 %v2939
      %vm2947 = vmor %vm2945, %vm2946
      %v2948 = vsel %vm2947, %v2939, %v2944
      %v2949 = vmul.f32 %v2928, %v2948
      %v2950 = vmul.f32 %v2929, %v2948
      %vm2951 = vcmp.ge.f32.partialorder %v2949, 0.0
      %vm2952 = vcmp.ge.f32.partialorder %v2950, 0.0
      %v2953 = vmul.f32 %v2949, 0.01
      %v2954 = vmul.f32 %v2950, 0.01
      %v2955 = vsel %vm2951, %v2949, %v2953
      %v2956 = vsel %vm2952, %v2950, %v2954
      %v2957 = vpack.c.bf16 %v2955, %v2955
      %v2958 = vpack.c.bf16 %v2956, %v2956
      %v2960 = vsel %vm453, %v2957, 0
      %v2963 = vsel %vm453, %v2958, 0
      %2965 = vmatpush.bf16.msra.mxu0 0
      %2966 = vmatpush.bf16.msra.mxu0 0
      %2967 = vmatpush.bf16.msra.mxu0 0
      %2968 = vmatpush.bf16.msra.mxu0 0
      %2969 = vmatpush.bf16.msra.mxu0 0
      %2970 = vmatpush.bf16.msra.mxu0 0
      %2971 = vmatpush.bf16.msra.mxu0 0
      %2972 = vmatpush.bf16.msra.mxu0 %v2960
      %2973 = vmatmul.bf16.gmra.mxu0 %v1801
      %v2974 = vpop.f32.mrf.mxu0
      %v2975 = vadd.f32 0.0, %v2974
      %v2976 = vpop.f32.mrf.mxu0
      %2977 = vdwg.mxu0
      %2978 = vmatpush.bf16.msra.mxu0 0
      %2979 = vmatpush.bf16.msra.mxu0 0
      %2980 = vmatpush.bf16.msra.mxu0 0
      %2981 = vmatpush.bf16.msra.mxu0 0
      %2982 = vmatpush.bf16.msra.mxu0 0
      %2983 = vmatpush.bf16.msra.mxu0 0
      %2984 = vmatpush.bf16.msra.mxu0 0
      %2985 = vmatpush.bf16.msra.mxu0 %v2963
      %2986 = vmatmul.bf16.gmra.mxu0 %v1801
      %v2987 = vpop.f32.mrf.mxu0
      %v2988 = vadd.f32 0.0, %v2987
      %v2989 = vpop.f32.mrf.mxu0
      %2990 = vdwg.mxu0
      %v2991 = vsel %vm414, %v2975, 0.0
      %v2992 = vsel %vm414, %v2988, 0.0
      %v2993 = vadd.f32 %v2991, %v2992
      %2994 = vadd.xlane.f32.xlu0 %v2993
      %v2995 = vpop.xlane.xlu0 %2994
      %v2996 = vmul.f32 %v2995, %v1293
      %v2997 = vsub.f32 %v2975, %v2996
      %v2998 = vsub.f32 %v2988, %v2996
      %v2999 = vmul.f32 %v2997, %v2997
      %v3000 = vmul.f32 %v2998, %v2998
      %v3001 = vsel %vm414, %v2999, 0.0
      %v3002 = vsel %vm414, %v3000, 0.0
      %v3003 = vadd.f32 %v3001, %v3002
      %3004 = vadd.xlane.f32.xlu0 %v3003
      %v3005 = vpop.xlane.xlu0 %3004
      %v3006 = vmul.f32 %v3005, %v1293
      %v3007 = vadd.f32 %v3006, 1e-05
      %v3008 = vrsqrt.pop %v3007
      %v3009 = vmul.f32 %v3008, %v3007
      %v3010 = vmul.f32 %v3009, %v3008
      %v3011 = vmul.f32 0.5, %v3010
      %v3012 = vsub.f32 1.5, %v3011
      %v3013 = vmul.f32 %v3008, %v3012
      %vm3014 = vweird.f32 %v3007
      %vm3015 = vweird.f32 %v3008
      %vm3016 = vmor %vm3014, %vm3015
      %v3017 = vsel %vm3016, %v3008, %v3013
      %v3018 = vmul.f32 %v2997, %v3017
      %v3019 = vmul.f32 %v2998, %v3017
      %vm3020 = vcmp.ge.f32.partialorder %v3018, 0.0
      %vm3021 = vcmp.ge.f32.partialorder %v3019, 0.0
      %v3022 = vmul.f32 %v3018, 0.01
      %v3023 = vmul.f32 %v3019, 0.01
      %v3024 = vsel %vm3020, %v3018, %v3022
      %v3025 = vsel %vm3021, %v3019, %v3023
      %v3028 = vrot.slane %v3025, 4
      %v3029 = vsel %vm414, %v3024, %v3028
      %s3031 = scalar_lea.vmem %s361, 8
      %3032 = vst [vmem:[%s3031] sm:$0xff] %v3029
      %s3033 = smul.u32 2, %s20
      %p3034 = scmp.lt.s32.totalorder %s3033, 3
      %s3035 = scalar_select %p3034, %s3033, 3
      %s3036 = smul.addr %s3035, 2
      %s3037 = smul.addr %s3036, 4
      %s3038 = scalar_lea.vmem %s9, %s3037
      // Predicated region
      $region57: #{up_forward.1} parent=55 // pred_check
        %p3039 = pneg %p237
      $region58: #{up_forward.1} parent=55 // pred_check_branch
        %3041 = sbr.rel (%p3039) target = $region60
      $region59: #{up_forward.1} parent=55 // pred_region
        %s3042 = smul.u32 2, %s20
      $region60: #{up_forward.1} parent=55 // pred_fallthru
        _
    $region56: #{up_forward.1} parent=5 // pred_fallthru
      _
    %p3043 = scmp.le.s32.totalorder 2, %s15
    // Predicated region
    $region61: #{up_forward.1} parent=5 // pred_check
      %p3044 = pneg %p3043
    $region62: #{up_forward.1} parent=5 // pred_check_branch
      %3046 = sbr.rel (%p3044) target = $region64
    $region63: #{up_forward.1} parent=5 // pred_region
      %s3047 = ssub.s32 %s15, 2
      // Predicated region
      $region65: #{up_forward.1} parent=63 // pred_check
        %p3048 = pneg %p243
      $region66: #{up_forward.1} parent=63 // pred_check_branch
        %3050 = sbr.rel (%p3048) target = $region68
      $region67: #{up_forward.1} parent=63 // pred_region
        %s3051 = smul.u32 2, %s21
        %p3052 = scmp.lt.s32.totalorder %s3051, 3
        %s3053 = scalar_select %p3052, %s3051, 3
        %s3054 = smul.addr %s3053, 2
        %s3055 = smul.addr %s3054, 4
        %s3056 = scalar_lea.vmem %s9, %s3055
      $region68: #{up_forward.1} parent=63 // pred_fallthru
        _
    $region64: #{up_forward.1} parent=5 // pred_fallthru
      _
  $region6: #{up_forward.1} parent=0 // loop_footer
    %s19 = sadd.s32 1, %s15
  $region7: #{up_forward.1} parent=0 // loop_footer_branch
    %14 = sbr.rel target = $region3
  $region8: #{up_forward.1} parent=0 // loop_exit
    _

</llo_original>
